<compile_context>
chip_gen: v6e
topology: v6e:2x2x1
jax: 0.10.0
libtpu: 0.0.40
codegen_flags: <defaults>
</compile_context>

<pallas_src>
import functools

import jax
import jax.numpy as jnp
from jax.experimental import pallas as pl
from jax.experimental.pallas import tpu as pltpu

H = 32          # cfg.gt.dim_hidden
HEADS = 4       # cfg.gt.attn_heads
LAYERS = 2      # cfg.gt.layers
EPS_LN = 1e-5
OUT_PAD = 128   # lane-dense padding for the head output


# ----------------------------- fused Pallas kernel ---------------------------

def _layernorm(x, g, b):
    mean = jnp.mean(x, axis=-1, keepdims=True)
    var = jnp.mean((x - mean) ** 2, axis=-1, keepdims=True)
    return (x - mean) * jax.lax.rsqrt(var + EPS_LN) * g + b


def _fused_gt_kernel(*refs, heads, layers):
    """Whole GTModel forward in one kernel.

    refs = (x, enc_w, enc_b, pre_w, pre_b, pre_ln_g, pre_ln_b,
            [wqkv, bqkv, wo, bo, ln_g, ln_b] * layers,
            head_w_pad, head_b_pad,          # inputs
            o_ref,                           # output
            ctx_ref)                         # VMEM scratch [N, H]
    """
    it = iter(refs)
    x_ref = next(it)
    enc_w, enc_b = next(it), next(it)
    pre_w, pre_b = next(it), next(it)
    pre_g, pre_beta = next(it), next(it)
    layer_refs = [tuple(next(it) for _ in range(6)) for _ in range(layers)]
    head_w, head_b = next(it), next(it)
    o_ref = next(it)
    ctx_ref = next(it)

    x = x_ref[...]                                                    # [N, F_in]

    # FeatureEncoder: node encoder Linear (edge encoder / BN disabled).
    h = jnp.dot(x, enc_w[...], preferred_element_type=jnp.float32) + enc_b[...]

    # input dropout: eval mode -> identity.
    # GTPreNN: Linear -> LayerNorm -> ReLU.
    h = jnp.dot(h, pre_w[...], preferred_element_type=jnp.float32) + pre_b[...]
    h = jnp.maximum(_layernorm(h, pre_g[...], pre_beta[...]), 0.0)    # [N, H]

    dim_h = h.shape[1]
    dh = dim_h // heads
    scale = 1.0 / jnp.sqrt(jnp.float32(dh))                           # hoisted

    # GT layers: dense global MHA + fixed residual, then LayerNorm.
    for (wqkv_r, bqkv_r, wo_r, bo_r, g_r, beta_r) in layer_refs:
        qkv = jnp.dot(h, wqkv_r[...],
                      preferred_element_type=jnp.float32) + bqkv_r[...]  # [N, 3H]
        q = qkv[:, 0 * dim_h:1 * dim_h]
        k = qkv[:, 1 * dim_h:2 * dim_h]
        v = qkv[:, 2 * dim_h:3 * dim_h]

        for hh in range(heads):                      # static unroll over heads
            sl = slice(hh * dh, (hh + 1) * dh)
            qh, kh, vh = q[:, sl], k[:, sl], v[:, sl]
            s = jnp.dot(qh, kh.T, preferred_element_type=jnp.float32) * scale
            s = s - jnp.max(s, axis=-1, keepdims=True)
            p = jnp.exp(s)
            denom = jnp.sum(p, axis=-1, keepdims=True)
            p = p * pl.reciprocal(denom, approx=True)       # EUP, not VALU div
            ctx_ref[:, sl] = jnp.dot(p, vh, preferred_element_type=jnp.float32)

        ctx = ctx_ref[...]                                           # [N, H]
        attn = jnp.dot(ctx, wo_r[...],
                       preferred_element_type=jnp.float32) + bo_r[...]
        h = attn + h                                  # residual ('Fixed')
        h = _layernorm(h, g_r[...], beta_r[...])

    # cfg.gt.l2_norm = True (F.normalize, p=2, dim=-1)
    nrm2 = jnp.sum(h * h, axis=-1, keepdims=True)
    h = h * jax.lax.rsqrt(jnp.maximum(nrm2, 1e-24))

    # post_gt node head: Linear(dim_h -> dim_out), zero-padded to OUT_PAD lanes
    # so the final store is lane-dense.
    out = jnp.dot(h, head_w[...], preferred_element_type=jnp.float32) + head_b[...]
    o_ref[...] = out.astype(o_ref.dtype)


# ----------------------------- parameters ------------------------------------

def init_params(key, dim_in, dim_out):
    def dense(k, fi, fo):
        kw, _ = jax.random.split(k)
        scale = 1.0 / jnp.sqrt(jnp.float32(fi))
        w = jax.random.normal(kw, (fi, fo), jnp.float32) * scale
        b = jnp.zeros((1, fo), jnp.float32)
        return w, b

    keys = jax.random.split(key, 4 + LAYERS)
    params = {"dim_out": dim_out}
    params["enc_w"], params["enc_b"] = dense(keys[0], dim_in, H)      # node encoder
    params["pre_w"], params["pre_b"] = dense(keys[1], H, H)           # GTPreNN linear
    params["pre_ln_g"] = jnp.ones((1, H), jnp.float32)
    params["pre_ln_b"] = jnp.zeros((1, H), jnp.float32)

    params["layers"] = []
    for i in range(LAYERS):
        lk = jax.random.split(keys[2 + i], 4)
        wq, bq = dense(lk[0], H, H)
        wk, bk = dense(lk[1], H, H)
        wv, bv = dense(lk[2], H, H)
        wo, bo = dense(lk[3], H, H)
        lp = {
            # fused QKV projection: one [H, 3H] matmul instead of three [H, H]
            "wqkv": jnp.concatenate([wq, wk, wv], axis=1),
            "bqkv": jnp.concatenate([bq, bk, bv], axis=1),
            "wo": wo, "bo": bo,
            "ln_g": jnp.ones((1, H), jnp.float32),
            "ln_b": jnp.zeros((1, H), jnp.float32),
        }
        params["layers"].append(lp)

    head_w, head_b = dense(keys[2 + LAYERS], H, dim_out)
    # zero-pad the head to OUT_PAD output lanes -> unmasked lane-dense store.
    params["head_w_pad"] = jnp.pad(head_w, ((0, 0), (0, OUT_PAD - dim_out)))
    params["head_b_pad"] = jnp.pad(head_b, ((0, 0), (0, OUT_PAD - dim_out)))
    return params


# ----------------------------- forward ---------------------------------------

def gt_model_forward(x, params):
    n = x.shape[0]
    flat = [x,
            params["enc_w"], params["enc_b"],
            params["pre_w"], params["pre_b"],
            params["pre_ln_g"], params["pre_ln_b"]]
    for lp in params["layers"]:
        flat += [lp["wqkv"], lp["bqkv"], lp["wo"], lp["bo"],
                 lp["ln_g"], lp["ln_b"]]
    flat += [params["head_w_pad"], params["head_b_pad"]]

    out_pad = pl.pallas_call(
        functools.partial(_fused_gt_kernel, heads=HEADS, layers=LAYERS),
        out_shape=jax.ShapeDtypeStruct((n, OUT_PAD), jnp.float32),
        scratch_shapes=[pltpu.VMEM((n, H), jnp.float32)],   # per-head ctx slab
    )(*flat)
    return out_pad[:, :params["dim_out"]]
    # TODO(synk): hetero node/edge types, virtual nodes, sparse-edge local GNN
    # message passing and jumping-knowledge concat are not instantiated in this
    # synthetic (homogeneous, dense-attention) configuration.
    # TODO(synk): for real graph sizes (N >~ 2k) switch the attention block to
    # a kv-tiled online-softmax (flash) loop with a node-tiled grid marked
    # "parallel" instead of materializing the full [N, N] score matrix.


# ----------------------------- main -------------------------------------------

if __name__ == "__main__":
    N_NODES = 64
    DIM_IN = 16
    DIM_OUT = 2

    key = jax.random.PRNGKey(0)
    kx, kp = jax.random.split(key)
    x = jax.random.normal(kx, (N_NODES, DIM_IN), jnp.float32)
    params = init_params(kp, DIM_IN, DIM_OUT)

    out = gt_model_forward(x, params)
    jax.block_until_ready(out)
    assert out.shape == (N_NODES, DIM_OUT)
    assert bool(jnp.all(jnp.isfinite(out)))
    print("KERNEL_OK")
</pallas_src>

<mosaic_0001>
module attributes {stable_mosaic.version = 11 : i64} {
  func.func @_fused_gt_kernel(%arg0: memref<64x16xf32, #tpu.memory_space<vmem>>, %arg1: memref<16x32xf32, #tpu.memory_space<vmem>>, %arg2: memref<1x32xf32, #tpu.memory_space<vmem>>, %arg3: memref<32x32xf32, #tpu.memory_space<vmem>>, %arg4: memref<1x32xf32, #tpu.memory_space<vmem>>, %arg5: memref<1x32xf32, #tpu.memory_space<vmem>>, %arg6: memref<1x32xf32, #tpu.memory_space<vmem>>, %arg7: memref<32x96xf32, #tpu.memory_space<vmem>>, %arg8: memref<1x96xf32, #tpu.memory_space<vmem>>, %arg9: memref<32x32xf32, #tpu.memory_space<vmem>>, %arg10: memref<1x32xf32, #tpu.memory_space<vmem>>, %arg11: memref<1x32xf32, #tpu.memory_space<vmem>>, %arg12: memref<1x32xf32, #tpu.memory_space<vmem>>, %arg13: memref<32x96xf32, #tpu.memory_space<vmem>>, %arg14: memref<1x96xf32, #tpu.memory_space<vmem>>, %arg15: memref<32x32xf32, #tpu.memory_space<vmem>>, %arg16: memref<1x32xf32, #tpu.memory_space<vmem>>, %arg17: memref<1x32xf32, #tpu.memory_space<vmem>>, %arg18: memref<1x32xf32, #tpu.memory_space<vmem>>, %arg19: memref<32x128xf32, #tpu.memory_space<vmem>>, %arg20: memref<1x128xf32, #tpu.memory_space<vmem>>, %arg21: memref<64x128xf32, #tpu.memory_space<vmem>>, %arg22: memref<64x32xf32, #tpu.memory_space<vmem>>) attributes {dimension_semantics = [], scalar_prefetch = 0 : i64, scratch_operands = 1 : i64, tpu.core_type = #tpu.core_type<tc>} {
    %c0 = arith.constant 0 : index
    %c0_0 = arith.constant 0 : index
    %0 = vector.load %arg0[%c0, %c0_0] : memref<64x16xf32, #tpu.memory_space<vmem>>, vector<64x16xf32>
    %c0_1 = arith.constant 0 : index
    %c0_2 = arith.constant 0 : index
    %1 = vector.load %arg1[%c0_1, %c0_2] : memref<16x32xf32, #tpu.memory_space<vmem>>, vector<16x32xf32>
    %cst = arith.constant dense<0.000000e+00> : vector<64x32xf32>
    %2 = tpu.matmul %0, %1, %cst {dimension_numbers = #tpu.dot_dimension_numbers<[1], [0], [0], [1], [0, 0, 1, 1], [], []>} : vector<64x16xf32>, vector<16x32xf32>, vector<64x32xf32> -> vector<64x32xf32>
    %c0_3 = arith.constant 0 : index
    %c0_4 = arith.constant 0 : index
    %3 = vector.load %arg2[%c0_3, %c0_4] : memref<1x32xf32, #tpu.memory_space<vmem>>, vector<1x32xf32>
    %4 = vector.broadcast %3 : vector<1x32xf32> to vector<64x32xf32>
    %5 = arith.addf %2, %4 : vector<64x32xf32>
    %c0_5 = arith.constant 0 : index
    %c0_6 = arith.constant 0 : index
    %6 = vector.load %arg3[%c0_5, %c0_6] : memref<32x32xf32, #tpu.memory_space<vmem>>, vector<32x32xf32>
    %cst_7 = arith.constant dense<0.000000e+00> : vector<64x32xf32>
    %7 = tpu.matmul %5, %6, %cst_7 {dimension_numbers = #tpu.dot_dimension_numbers<[1], [0], [0], [1], [0, 0, 1, 1], [], []>} : vector<64x32xf32>, vector<32x32xf32>, vector<64x32xf32> -> vector<64x32xf32>
    %c0_8 = arith.constant 0 : index
    %c0_9 = arith.constant 0 : index
    %8 = vector.load %arg4[%c0_8, %c0_9] : memref<1x32xf32, #tpu.memory_space<vmem>>, vector<1x32xf32>
    %9 = vector.broadcast %8 : vector<1x32xf32> to vector<64x32xf32>
    %10 = arith.addf %7, %9 : vector<64x32xf32>
    %c0_10 = arith.constant 0 : index
    %c0_11 = arith.constant 0 : index
    %11 = vector.load %arg5[%c0_10, %c0_11] : memref<1x32xf32, #tpu.memory_space<vmem>>, vector<1x32xf32>
    %c0_12 = arith.constant 0 : index
    %c0_13 = arith.constant 0 : index
    %12 = vector.load %arg6[%c0_12, %c0_13] : memref<1x32xf32, #tpu.memory_space<vmem>>, vector<1x32xf32>
    %cst_14 = arith.constant dense<0.000000e+00> : vector<64xf32>
    %13 = vector.multi_reduction <add>, %10, %cst_14 [1] : vector<64x32xf32> to vector<64xf32>
    %14 = vector.shape_cast %13 : vector<64xf32> to vector<64x1xf32>
    %cst_15 = arith.constant 3.200000e+01 : f32
    %15 = vector.broadcast %cst_15 : f32 to vector<64x1xf32>
    %16 = arith.divf %14, %15 : vector<64x1xf32>
    %17 = vector.broadcast %16 : vector<64x1xf32> to vector<64x32xf32>
    %18 = arith.subf %10, %17 : vector<64x32xf32>
    %19 = arith.mulf %18, %18 : vector<64x32xf32>
    %cst_16 = arith.constant dense<0.000000e+00> : vector<64xf32>
    %20 = vector.multi_reduction <add>, %19, %cst_16 [1] : vector<64x32xf32> to vector<64xf32>
    %21 = vector.shape_cast %20 : vector<64xf32> to vector<64x1xf32>
    %cst_17 = arith.constant 3.200000e+01 : f32
    %22 = vector.broadcast %cst_17 : f32 to vector<64x1xf32>
    %23 = arith.divf %21, %22 : vector<64x1xf32>
    %24 = vector.broadcast %16 : vector<64x1xf32> to vector<64x32xf32>
    %25 = arith.subf %10, %24 : vector<64x32xf32>
    %cst_18 = arith.constant 9.99999974E-6 : f32
    %26 = vector.broadcast %cst_18 : f32 to vector<64x1xf32>
    %27 = arith.addf %23, %26 : vector<64x1xf32>
    %28 = math.rsqrt %27 : vector<64x1xf32>
    %29 = vector.broadcast %28 : vector<64x1xf32> to vector<64x32xf32>
    %30 = arith.mulf %25, %29 : vector<64x32xf32>
    %31 = vector.broadcast %11 : vector<1x32xf32> to vector<64x32xf32>
    %32 = arith.mulf %30, %31 : vector<64x32xf32>
    %33 = vector.broadcast %12 : vector<1x32xf32> to vector<64x32xf32>
    %34 = arith.addf %32, %33 : vector<64x32xf32>
    %cst_19 = arith.constant 0.000000e+00 : f32
    %35 = vector.broadcast %cst_19 : f32 to vector<64x32xf32>
    %36 = arith.maximumf %34, %35 : vector<64x32xf32>
    %cst_20 = arith.constant 8.000000e+00 : f32
    %37 = math.sqrt %cst_20 : f32
    %cst_21 = arith.constant 1.000000e+00 : f32
    %38 = arith.divf %cst_21, %37 : f32
    %c0_22 = arith.constant 0 : index
    %c0_23 = arith.constant 0 : index
    %39 = vector.load %arg7[%c0_22, %c0_23] : memref<32x96xf32, #tpu.memory_space<vmem>>, vector<32x96xf32>
    %cst_24 = arith.constant dense<0.000000e+00> : vector<64x96xf32>
    %40 = tpu.matmul %36, %39, %cst_24 {dimension_numbers = #tpu.dot_dimension_numbers<[1], [0], [0], [1], [0, 0, 1, 1], [], []>} : vector<64x32xf32>, vector<32x96xf32>, vector<64x96xf32> -> vector<64x96xf32>
    %c0_25 = arith.constant 0 : index
    %c0_26 = arith.constant 0 : index
    %41 = vector.load %arg8[%c0_25, %c0_26] : memref<1x96xf32, #tpu.memory_space<vmem>>, vector<1x96xf32>
    %42 = vector.broadcast %41 : vector<1x96xf32> to vector<64x96xf32>
    %43 = arith.addf %40, %42 : vector<64x96xf32>
    %44 = vector.extract_strided_slice %43 {offsets = [0, 0], sizes = [64, 32], strides = [1, 1]} : vector<64x96xf32> to vector<64x32xf32>
    %45 = vector.extract_strided_slice %43 {offsets = [0, 32], sizes = [64, 32], strides = [1, 1]} : vector<64x96xf32> to vector<64x32xf32>
    %46 = vector.extract_strided_slice %43 {offsets = [0, 64], sizes = [64, 32], strides = [1, 1]} : vector<64x96xf32> to vector<64x32xf32>
    %47 = vector.extract_strided_slice %44 {offsets = [0, 0], sizes = [64, 8], strides = [1, 1]} : vector<64x32xf32> to vector<64x8xf32>
    %48 = vector.extract_strided_slice %45 {offsets = [0, 0], sizes = [64, 8], strides = [1, 1]} : vector<64x32xf32> to vector<64x8xf32>
    %49 = vector.extract_strided_slice %46 {offsets = [0, 0], sizes = [64, 8], strides = [1, 1]} : vector<64x32xf32> to vector<64x8xf32>
    %50 = tpu.transpose %48, [1, 0] : vector<64x8xf32> -> vector<8x64xf32>
    %cst_27 = arith.constant dense<0.000000e+00> : vector<64x64xf32>
    %51 = tpu.matmul %47, %50, %cst_27 {dimension_numbers = #tpu.dot_dimension_numbers<[1], [0], [0], [1], [0, 0, 1, 1], [], []>} : vector<64x8xf32>, vector<8x64xf32>, vector<64x64xf32> -> vector<64x64xf32>
    %52 = vector.broadcast %38 : f32 to vector<64x64xf32>
    %53 = arith.mulf %51, %52 : vector<64x64xf32>
    %cst_28 = arith.constant dense<0xFF800000> : vector<64xf32>
    %54 = vector.multi_reduction <maximumf>, %53, %cst_28 [1] : vector<64x64xf32> to vector<64xf32>
    %55 = vector.shape_cast %54 : vector<64xf32> to vector<64x1xf32>
    %56 = vector.broadcast %55 : vector<64x1xf32> to vector<64x64xf32>
    %57 = arith.subf %53, %56 : vector<64x64xf32>
    %58 = math.exp %57 : vector<64x64xf32>
    %cst_29 = arith.constant dense<0.000000e+00> : vector<64xf32>
    %59 = vector.multi_reduction <add>, %58, %cst_29 [1] : vector<64x64xf32> to vector<64xf32>
    %60 = vector.shape_cast %59 : vector<64xf32> to vector<64x1xf32>
    %61 = tpu.reciprocal %60 {approx = true} : vector<64x1xf32> -> vector<64x1xf32>
    %62 = vector.broadcast %61 : vector<64x1xf32> to vector<64x64xf32>
    %63 = arith.mulf %58, %62 : vector<64x64xf32>
    %cst_30 = arith.constant dense<0.000000e+00> : vector<64x8xf32>
    %64 = tpu.matmul %63, %49, %cst_30 {dimension_numbers = #tpu.dot_dimension_numbers<[1], [0], [0], [1], [0, 0, 1, 1], [], []>} : vector<64x64xf32>, vector<64x8xf32>, vector<64x8xf32> -> vector<64x8xf32>
    %c0_31 = arith.constant 0 : index
    %c0_32 = arith.constant 0 : index
    %65 = vector.load %arg22[%c0_31, %c0_32] : memref<64x32xf32, #tpu.memory_space<vmem>>, vector<64x8xf32>
    tpu.vector_store %arg22[%c0_31, %c0_32], %64 {strides = array<i32>} : memref<64x32xf32, #tpu.memory_space<vmem>>, vector<64x8xf32>,
    %66 = vector.extract_strided_slice %44 {offsets = [0, 8], sizes = [64, 8], strides = [1, 1]} : vector<64x32xf32> to vector<64x8xf32>
    %67 = vector.extract_strided_slice %45 {offsets = [0, 8], sizes = [64, 8], strides = [1, 1]} : vector<64x32xf32> to vector<64x8xf32>
    %68 = vector.extract_strided_slice %46 {offsets = [0, 8], sizes = [64, 8], strides = [1, 1]} : vector<64x32xf32> to vector<64x8xf32>
    %69 = tpu.transpose %67, [1, 0] : vector<64x8xf32> -> vector<8x64xf32>
    %cst_33 = arith.constant dense<0.000000e+00> : vector<64x64xf32>
    %70 = tpu.matmul %66, %69, %cst_33 {dimension_numbers = #tpu.dot_dimension_numbers<[1], [0], [0], [1], [0, 0, 1, 1], [], []>} : vector<64x8xf32>, vector<8x64xf32>, vector<64x64xf32> -> vector<64x64xf32>
    %71 = vector.broadcast %38 : f32 to vector<64x64xf32>
    %72 = arith.mulf %70, %71 : vector<64x64xf32>
    %cst_34 = arith.constant dense<0xFF800000> : vector<64xf32>
    %73 = vector.multi_reduction <maximumf>, %72, %cst_34 [1] : vector<64x64xf32> to vector<64xf32>
    %74 = vector.shape_cast %73 : vector<64xf32> to vector<64x1xf32>
    %75 = vector.broadcast %74 : vector<64x1xf32> to vector<64x64xf32>
    %76 = arith.subf %72, %75 : vector<64x64xf32>
    %77 = math.exp %76 : vector<64x64xf32>
    %cst_35 = arith.constant dense<0.000000e+00> : vector<64xf32>
    %78 = vector.multi_reduction <add>, %77, %cst_35 [1] : vector<64x64xf32> to vector<64xf32>
    %79 = vector.shape_cast %78 : vector<64xf32> to vector<64x1xf32>
    %80 = tpu.reciprocal %79 {approx = true} : vector<64x1xf32> -> vector<64x1xf32>
    %81 = vector.broadcast %80 : vector<64x1xf32> to vector<64x64xf32>
    %82 = arith.mulf %77, %81 : vector<64x64xf32>
    %cst_36 = arith.constant dense<0.000000e+00> : vector<64x8xf32>
    %83 = tpu.matmul %82, %68, %cst_36 {dimension_numbers = #tpu.dot_dimension_numbers<[1], [0], [0], [1], [0, 0, 1, 1], [], []>} : vector<64x64xf32>, vector<64x8xf32>, vector<64x8xf32> -> vector<64x8xf32>
    %c0_37 = arith.constant 0 : index
    %c8 = arith.constant 8 : index
    %84 = vector.load %arg22[%c0_37, %c8] : memref<64x32xf32, #tpu.memory_space<vmem>>, vector<64x8xf32>
    tpu.vector_store %arg22[%c0_37, %c8], %83 {strides = array<i32>} : memref<64x32xf32, #tpu.memory_space<vmem>>, vector<64x8xf32>,
    %85 = vector.extract_strided_slice %44 {offsets = [0, 16], sizes = [64, 8], strides = [1, 1]} : vector<64x32xf32> to vector<64x8xf32>
    %86 = vector.extract_strided_slice %45 {offsets = [0, 16], sizes = [64, 8], strides = [1, 1]} : vector<64x32xf32> to vector<64x8xf32>
    %87 = vector.extract_strided_slice %46 {offsets = [0, 16], sizes = [64, 8], strides = [1, 1]} : vector<64x32xf32> to vector<64x8xf32>
    %88 = tpu.transpose %86, [1, 0] : vector<64x8xf32> -> vector<8x64xf32>
    %cst_38 = arith.constant dense<0.000000e+00> : vector<64x64xf32>
    %89 = tpu.matmul %85, %88, %cst_38 {dimension_numbers = #tpu.dot_dimension_numbers<[1], [0], [0], [1], [0, 0, 1, 1], [], []>} : vector<64x8xf32>, vector<8x64xf32>, vector<64x64xf32> -> vector<64x64xf32>
    %90 = vector.broadcast %38 : f32 to vector<64x64xf32>
    %91 = arith.mulf %89, %90 : vector<64x64xf32>
    %cst_39 = arith.constant dense<0xFF800000> : vector<64xf32>
    %92 = vector.multi_reduction <maximumf>, %91, %cst_39 [1] : vector<64x64xf32> to vector<64xf32>
    %93 = vector.shape_cast %92 : vector<64xf32> to vector<64x1xf32>
    %94 = vector.broadcast %93 : vector<64x1xf32> to vector<64x64xf32>
    %95 = arith.subf %91, %94 : vector<64x64xf32>
    %96 = math.exp %95 : vector<64x64xf32>
    %cst_40 = arith.constant dense<0.000000e+00> : vector<64xf32>
    %97 = vector.multi_reduction <add>, %96, %cst_40 [1] : vector<64x64xf32> to vector<64xf32>
    %98 = vector.shape_cast %97 : vector<64xf32> to vector<64x1xf32>
    %99 = tpu.reciprocal %98 {approx = true} : vector<64x1xf32> -> vector<64x1xf32>
    %100 = vector.broadcast %99 : vector<64x1xf32> to vector<64x64xf32>
    %101 = arith.mulf %96, %100 : vector<64x64xf32>
    %cst_41 = arith.constant dense<0.000000e+00> : vector<64x8xf32>
    %102 = tpu.matmul %101, %87, %cst_41 {dimension_numbers = #tpu.dot_dimension_numbers<[1], [0], [0], [1], [0, 0, 1, 1], [], []>} : vector<64x64xf32>, vector<64x8xf32>, vector<64x8xf32> -> vector<64x8xf32>
    %c0_42 = arith.constant 0 : index
    %c16 = arith.constant 16 : index
    %103 = vector.load %arg22[%c0_42, %c16] : memref<64x32xf32, #tpu.memory_space<vmem>>, vector<64x8xf32>
    tpu.vector_store %arg22[%c0_42, %c16], %102 {strides = array<i32>} : memref<64x32xf32, #tpu.memory_space<vmem>>, vector<64x8xf32>,
    %104 = vector.extract_strided_slice %44 {offsets = [0, 24], sizes = [64, 8], strides = [1, 1]} : vector<64x32xf32> to vector<64x8xf32>
    %105 = vector.extract_strided_slice %45 {offsets = [0, 24], sizes = [64, 8], strides = [1, 1]} : vector<64x32xf32> to vector<64x8xf32>
    %106 = vector.extract_strided_slice %46 {offsets = [0, 24], sizes = [64, 8], strides = [1, 1]} : vector<64x32xf32> to vector<64x8xf32>
    %107 = tpu.transpose %105, [1, 0] : vector<64x8xf32> -> vector<8x64xf32>
    %cst_43 = arith.constant dense<0.000000e+00> : vector<64x64xf32>
    %108 = tpu.matmul %104, %107, %cst_43 {dimension_numbers = #tpu.dot_dimension_numbers<[1], [0], [0], [1], [0, 0, 1, 1], [], []>} : vector<64x8xf32>, vector<8x64xf32>, vector<64x64xf32> -> vector<64x64xf32>
    %109 = vector.broadcast %38 : f32 to vector<64x64xf32>
    %110 = arith.mulf %108, %109 : vector<64x64xf32>
    %cst_44 = arith.constant dense<0xFF800000> : vector<64xf32>
    %111 = vector.multi_reduction <maximumf>, %110, %cst_44 [1] : vector<64x64xf32> to vector<64xf32>
    %112 = vector.shape_cast %111 : vector<64xf32> to vector<64x1xf32>
    %113 = vector.broadcast %112 : vector<64x1xf32> to vector<64x64xf32>
    %114 = arith.subf %110, %113 : vector<64x64xf32>
    %115 = math.exp %114 : vector<64x64xf32>
    %cst_45 = arith.constant dense<0.000000e+00> : vector<64xf32>
    %116 = vector.multi_reduction <add>, %115, %cst_45 [1] : vector<64x64xf32> to vector<64xf32>
    %117 = vector.shape_cast %116 : vector<64xf32> to vector<64x1xf32>
    %118 = tpu.reciprocal %117 {approx = true} : vector<64x1xf32> -> vector<64x1xf32>
    %119 = vector.broadcast %118 : vector<64x1xf32> to vector<64x64xf32>
    %120 = arith.mulf %115, %119 : vector<64x64xf32>
    %cst_46 = arith.constant dense<0.000000e+00> : vector<64x8xf32>
    %121 = tpu.matmul %120, %106, %cst_46 {dimension_numbers = #tpu.dot_dimension_numbers<[1], [0], [0], [1], [0, 0, 1, 1], [], []>} : vector<64x64xf32>, vector<64x8xf32>, vector<64x8xf32> -> vector<64x8xf32>
    %c0_47 = arith.constant 0 : index
    %c24 = arith.constant 24 : index
    %122 = vector.load %arg22[%c0_47, %c24] : memref<64x32xf32, #tpu.memory_space<vmem>>, vector<64x8xf32>
    tpu.vector_store %arg22[%c0_47, %c24], %121 {strides = array<i32>} : memref<64x32xf32, #tpu.memory_space<vmem>>, vector<64x8xf32>,
    %c0_48 = arith.constant 0 : index
    %c0_49 = arith.constant 0 : index
    %123 = vector.load %arg22[%c0_48, %c0_49] : memref<64x32xf32, #tpu.memory_space<vmem>>, vector<64x32xf32>
    %c0_50 = arith.constant 0 : index
    %c0_51 = arith.constant 0 : index
    %124 = vector.load %arg9[%c0_50, %c0_51] : memref<32x32xf32, #tpu.memory_space<vmem>>, vector<32x32xf32>
    %cst_52 = arith.constant dense<0.000000e+00> : vector<64x32xf32>
    %125 = tpu.matmul %123, %124, %cst_52 {dimension_numbers = #tpu.dot_dimension_numbers<[1], [0], [0], [1], [0, 0, 1, 1], [], []>} : vector<64x32xf32>, vector<32x32xf32>, vector<64x32xf32> -> vector<64x32xf32>
    %c0_53 = arith.constant 0 : index
    %c0_54 = arith.constant 0 : index
    %126 = vector.load %arg10[%c0_53, %c0_54] : memref<1x32xf32, #tpu.memory_space<vmem>>, vector<1x32xf32>
    %127 = vector.broadcast %126 : vector<1x32xf32> to vector<64x32xf32>
    %128 = arith.addf %125, %127 : vector<64x32xf32>
    %129 = arith.addf %128, %36 : vector<64x32xf32>
    %c0_55 = arith.constant 0 : index
    %c0_56 = arith.constant 0 : index
    %130 = vector.load %arg11[%c0_55, %c0_56] : memref<1x32xf32, #tpu.memory_space<vmem>>, vector<1x32xf32>
    %c0_57 = arith.constant 0 : index
    %c0_58 = arith.constant 0 : index
    %131 = vector.load %arg12[%c0_57, %c0_58] : memref<1x32xf32, #tpu.memory_space<vmem>>, vector<1x32xf32>
    %cst_59 = arith.constant dense<0.000000e+00> : vector<64xf32>
    %132 = vector.multi_reduction <add>, %129, %cst_59 [1] : vector<64x32xf32> to vector<64xf32>
    %133 = vector.shape_cast %132 : vector<64xf32> to vector<64x1xf32>
    %cst_60 = arith.constant 3.200000e+01 : f32
    %134 = vector.broadcast %cst_60 : f32 to vector<64x1xf32>
    %135 = arith.divf %133, %134 : vector<64x1xf32>
    %136 = vector.broadcast %135 : vector<64x1xf32> to vector<64x32xf32>
    %137 = arith.subf %129, %136 : vector<64x32xf32>
    %138 = arith.mulf %137, %137 : vector<64x32xf32>
    %cst_61 = arith.constant dense<0.000000e+00> : vector<64xf32>
    %139 = vector.multi_reduction <add>, %138, %cst_61 [1] : vector<64x32xf32> to vector<64xf32>
    %140 = vector.shape_cast %139 : vector<64xf32> to vector<64x1xf32>
    %cst_62 = arith.constant 3.200000e+01 : f32
    %141 = vector.broadcast %cst_62 : f32 to vector<64x1xf32>
    %142 = arith.divf %140, %141 : vector<64x1xf32>
    %143 = vector.broadcast %135 : vector<64x1xf32> to vector<64x32xf32>
    %144 = arith.subf %129, %143 : vector<64x32xf32>
    %cst_63 = arith.constant 9.99999974E-6 : f32
    %145 = vector.broadcast %cst_63 : f32 to vector<64x1xf32>
    %146 = arith.addf %142, %145 : vector<64x1xf32>
    %147 = math.rsqrt %146 : vector<64x1xf32>
    %148 = vector.broadcast %147 : vector<64x1xf32> to vector<64x32xf32>
    %149 = arith.mulf %144, %148 : vector<64x32xf32>
    %150 = vector.broadcast %130 : vector<1x32xf32> to vector<64x32xf32>
    %151 = arith.mulf %149, %150 : vector<64x32xf32>
    %152 = vector.broadcast %131 : vector<1x32xf32> to vector<64x32xf32>
    %153 = arith.addf %151, %152 : vector<64x32xf32>
    %c0_64 = arith.constant 0 : index
    %c0_65 = arith.constant 0 : index
    %154 = vector.load %arg13[%c0_64, %c0_65] : memref<32x96xf32, #tpu.memory_space<vmem>>, vector<32x96xf32>
    %cst_66 = arith.constant dense<0.000000e+00> : vector<64x96xf32>
    %155 = tpu.matmul %153, %154, %cst_66 {dimension_numbers = #tpu.dot_dimension_numbers<[1], [0], [0], [1], [0, 0, 1, 1], [], []>} : vector<64x32xf32>, vector<32x96xf32>, vector<64x96xf32> -> vector<64x96xf32>
    %c0_67 = arith.constant 0 : index
    %c0_68 = arith.constant 0 : index
    %156 = vector.load %arg14[%c0_67, %c0_68] : memref<1x96xf32, #tpu.memory_space<vmem>>, vector<1x96xf32>
    %157 = vector.broadcast %156 : vector<1x96xf32> to vector<64x96xf32>
    %158 = arith.addf %155, %157 : vector<64x96xf32>
    %159 = vector.extract_strided_slice %158 {offsets = [0, 0], sizes = [64, 32], strides = [1, 1]} : vector<64x96xf32> to vector<64x32xf32>
    %160 = vector.extract_strided_slice %158 {offsets = [0, 32], sizes = [64, 32], strides = [1, 1]} : vector<64x96xf32> to vector<64x32xf32>
    %161 = vector.extract_strided_slice %158 {offsets = [0, 64], sizes = [64, 32], strides = [1, 1]} : vector<64x96xf32> to vector<64x32xf32>
    %162 = vector.extract_strided_slice %159 {offsets = [0, 0], sizes = [64, 8], strides = [1, 1]} : vector<64x32xf32> to vector<64x8xf32>
    %163 = vector.extract_strided_slice %160 {offsets = [0, 0], sizes = [64, 8], strides = [1, 1]} : vector<64x32xf32> to vector<64x8xf32>
    %164 = vector.extract_strided_slice %161 {offsets = [0, 0], sizes = [64, 8], strides = [1, 1]} : vector<64x32xf32> to vector<64x8xf32>
    %165 = tpu.transpose %163, [1, 0] : vector<64x8xf32> -> vector<8x64xf32>
    %cst_69 = arith.constant dense<0.000000e+00> : vector<64x64xf32>
    %166 = tpu.matmul %162, %165, %cst_69 {dimension_numbers = #tpu.dot_dimension_numbers<[1], [0], [0], [1], [0, 0, 1, 1], [], []>} : vector<64x8xf32>, vector<8x64xf32>, vector<64x64xf32> -> vector<64x64xf32>
    %167 = vector.broadcast %38 : f32 to vector<64x64xf32>
    %168 = arith.mulf %166, %167 : vector<64x64xf32>
    %cst_70 = arith.constant dense<0xFF800000> : vector<64xf32>
    %169 = vector.multi_reduction <maximumf>, %168, %cst_70 [1] : vector<64x64xf32> to vector<64xf32>
    %170 = vector.shape_cast %169 : vector<64xf32> to vector<64x1xf32>
    %171 = vector.broadcast %170 : vector<64x1xf32> to vector<64x64xf32>
    %172 = arith.subf %168, %171 : vector<64x64xf32>
    %173 = math.exp %172 : vector<64x64xf32>
    %cst_71 = arith.constant dense<0.000000e+00> : vector<64xf32>
    %174 = vector.multi_reduction <add>, %173, %cst_71 [1] : vector<64x64xf32> to vector<64xf32>
    %175 = vector.shape_cast %174 : vector<64xf32> to vector<64x1xf32>
    %176 = tpu.reciprocal %175 {approx = true} : vector<64x1xf32> -> vector<64x1xf32>
    %177 = vector.broadcast %176 : vector<64x1xf32> to vector<64x64xf32>
    %178 = arith.mulf %173, %177 : vector<64x64xf32>
    %cst_72 = arith.constant dense<0.000000e+00> : vector<64x8xf32>
    %179 = tpu.matmul %178, %164, %cst_72 {dimension_numbers = #tpu.dot_dimension_numbers<[1], [0], [0], [1], [0, 0, 1, 1], [], []>} : vector<64x64xf32>, vector<64x8xf32>, vector<64x8xf32> -> vector<64x8xf32>
    %c0_73 = arith.constant 0 : index
    %c0_74 = arith.constant 0 : index
    %180 = vector.load %arg22[%c0_73, %c0_74] : memref<64x32xf32, #tpu.memory_space<vmem>>, vector<64x8xf32>
    tpu.vector_store %arg22[%c0_73, %c0_74], %179 {strides = array<i32>} : memref<64x32xf32, #tpu.memory_space<vmem>>, vector<64x8xf32>,
    %181 = vector.extract_strided_slice %159 {offsets = [0, 8], sizes = [64, 8], strides = [1, 1]} : vector<64x32xf32> to vector<64x8xf32>
    %182 = vector.extract_strided_slice %160 {offsets = [0, 8], sizes = [64, 8], strides = [1, 1]} : vector<64x32xf32> to vector<64x8xf32>
    %183 = vector.extract_strided_slice %161 {offsets = [0, 8], sizes = [64, 8], strides = [1, 1]} : vector<64x32xf32> to vector<64x8xf32>
    %184 = tpu.transpose %182, [1, 0] : vector<64x8xf32> -> vector<8x64xf32>
    %cst_75 = arith.constant dense<0.000000e+00> : vector<64x64xf32>
    %185 = tpu.matmul %181, %184, %cst_75 {dimension_numbers = #tpu.dot_dimension_numbers<[1], [0], [0], [1], [0, 0, 1, 1], [], []>} : vector<64x8xf32>, vector<8x64xf32>, vector<64x64xf32> -> vector<64x64xf32>
    %186 = vector.broadcast %38 : f32 to vector<64x64xf32>
    %187 = arith.mulf %185, %186 : vector<64x64xf32>
    %cst_76 = arith.constant dense<0xFF800000> : vector<64xf32>
    %188 = vector.multi_reduction <maximumf>, %187, %cst_76 [1] : vector<64x64xf32> to vector<64xf32>
    %189 = vector.shape_cast %188 : vector<64xf32> to vector<64x1xf32>
    %190 = vector.broadcast %189 : vector<64x1xf32> to vector<64x64xf32>
    %191 = arith.subf %187, %190 : vector<64x64xf32>
    %192 = math.exp %191 : vector<64x64xf32>
    %cst_77 = arith.constant dense<0.000000e+00> : vector<64xf32>
    %193 = vector.multi_reduction <add>, %192, %cst_77 [1] : vector<64x64xf32> to vector<64xf32>
    %194 = vector.shape_cast %193 : vector<64xf32> to vector<64x1xf32>
    %195 = tpu.reciprocal %194 {approx = true} : vector<64x1xf32> -> vector<64x1xf32>
    %196 = vector.broadcast %195 : vector<64x1xf32> to vector<64x64xf32>
    %197 = arith.mulf %192, %196 : vector<64x64xf32>
    %cst_78 = arith.constant dense<0.000000e+00> : vector<64x8xf32>
    %198 = tpu.matmul %197, %183, %cst_78 {dimension_numbers = #tpu.dot_dimension_numbers<[1], [0], [0], [1], [0, 0, 1, 1], [], []>} : vector<64x64xf32>, vector<64x8xf32>, vector<64x8xf32> -> vector<64x8xf32>
    %c0_79 = arith.constant 0 : index
    %c8_80 = arith.constant 8 : index
    %199 = vector.load %arg22[%c0_79, %c8_80] : memref<64x32xf32, #tpu.memory_space<vmem>>, vector<64x8xf32>
    tpu.vector_store %arg22[%c0_79, %c8_80], %198 {strides = array<i32>} : memref<64x32xf32, #tpu.memory_space<vmem>>, vector<64x8xf32>,
    %200 = vector.extract_strided_slice %159 {offsets = [0, 16], sizes = [64, 8], strides = [1, 1]} : vector<64x32xf32> to vector<64x8xf32>
    %201 = vector.extract_strided_slice %160 {offsets = [0, 16], sizes = [64, 8], strides = [1, 1]} : vector<64x32xf32> to vector<64x8xf32>
    %202 = vector.extract_strided_slice %161 {offsets = [0, 16], sizes = [64, 8], strides = [1, 1]} : vector<64x32xf32> to vector<64x8xf32>
    %203 = tpu.transpose %201, [1, 0] : vector<64x8xf32> -> vector<8x64xf32>
    %cst_81 = arith.constant dense<0.000000e+00> : vector<64x64xf32>
    %204 = tpu.matmul %200, %203, %cst_81 {dimension_numbers = #tpu.dot_dimension_numbers<[1], [0], [0], [1], [0, 0, 1, 1], [], []>} : vector<64x8xf32>, vector<8x64xf32>, vector<64x64xf32> -> vector<64x64xf32>
    %205 = vector.broadcast %38 : f32 to vector<64x64xf32>
    %206 = arith.mulf %204, %205 : vector<64x64xf32>
    %cst_82 = arith.constant dense<0xFF800000> : vector<64xf32>
    %207 = vector.multi_reduction <maximumf>, %206, %cst_82 [1] : vector<64x64xf32> to vector<64xf32>
    %208 = vector.shape_cast %207 : vector<64xf32> to vector<64x1xf32>
    %209 = vector.broadcast %208 : vector<64x1xf32> to vector<64x64xf32>
    %210 = arith.subf %206, %209 : vector<64x64xf32>
    %211 = math.exp %210 : vector<64x64xf32>
    %cst_83 = arith.constant dense<0.000000e+00> : vector<64xf32>
    %212 = vector.multi_reduction <add>, %211, %cst_83 [1] : vector<64x64xf32> to vector<64xf32>
    %213 = vector.shape_cast %212 : vector<64xf32> to vector<64x1xf32>
    %214 = tpu.reciprocal %213 {approx = true} : vector<64x1xf32> -> vector<64x1xf32>
    %215 = vector.broadcast %214 : vector<64x1xf32> to vector<64x64xf32>
    %216 = arith.mulf %211, %215 : vector<64x64xf32>
    %cst_84 = arith.constant dense<0.000000e+00> : vector<64x8xf32>
    %217 = tpu.matmul %216, %202, %cst_84 {dimension_numbers = #tpu.dot_dimension_numbers<[1], [0], [0], [1], [0, 0, 1, 1], [], []>} : vector<64x64xf32>, vector<64x8xf32>, vector<64x8xf32> -> vector<64x8xf32>
    %c0_85 = arith.constant 0 : index
    %c16_86 = arith.constant 16 : index
    %218 = vector.load %arg22[%c0_85, %c16_86] : memref<64x32xf32, #tpu.memory_space<vmem>>, vector<64x8xf32>
    tpu.vector_store %arg22[%c0_85, %c16_86], %217 {strides = array<i32>} : memref<64x32xf32, #tpu.memory_space<vmem>>, vector<64x8xf32>,
    %219 = vector.extract_strided_slice %159 {offsets = [0, 24], sizes = [64, 8], strides = [1, 1]} : vector<64x32xf32> to vector<64x8xf32>
    %220 = vector.extract_strided_slice %160 {offsets = [0, 24], sizes = [64, 8], strides = [1, 1]} : vector<64x32xf32> to vector<64x8xf32>
    %221 = vector.extract_strided_slice %161 {offsets = [0, 24], sizes = [64, 8], strides = [1, 1]} : vector<64x32xf32> to vector<64x8xf32>
    %222 = tpu.transpose %220, [1, 0] : vector<64x8xf32> -> vector<8x64xf32>
    %cst_87 = arith.constant dense<0.000000e+00> : vector<64x64xf32>
    %223 = tpu.matmul %219, %222, %cst_87 {dimension_numbers = #tpu.dot_dimension_numbers<[1], [0], [0], [1], [0, 0, 1, 1], [], []>} : vector<64x8xf32>, vector<8x64xf32>, vector<64x64xf32> -> vector<64x64xf32>
    %224 = vector.broadcast %38 : f32 to vector<64x64xf32>
    %225 = arith.mulf %223, %224 : vector<64x64xf32>
    %cst_88 = arith.constant dense<0xFF800000> : vector<64xf32>
    %226 = vector.multi_reduction <maximumf>, %225, %cst_88 [1] : vector<64x64xf32> to vector<64xf32>
    %227 = vector.shape_cast %226 : vector<64xf32> to vector<64x1xf32>
    %228 = vector.broadcast %227 : vector<64x1xf32> to vector<64x64xf32>
    %229 = arith.subf %225, %228 : vector<64x64xf32>
    %230 = math.exp %229 : vector<64x64xf32>
    %cst_89 = arith.constant dense<0.000000e+00> : vector<64xf32>
    %231 = vector.multi_reduction <add>, %230, %cst_89 [1] : vector<64x64xf32> to vector<64xf32>
    %232 = vector.shape_cast %231 : vector<64xf32> to vector<64x1xf32>
    %233 = tpu.reciprocal %232 {approx = true} : vector<64x1xf32> -> vector<64x1xf32>
    %234 = vector.broadcast %233 : vector<64x1xf32> to vector<64x64xf32>
    %235 = arith.mulf %230, %234 : vector<64x64xf32>
    %cst_90 = arith.constant dense<0.000000e+00> : vector<64x8xf32>
    %236 = tpu.matmul %235, %221, %cst_90 {dimension_numbers = #tpu.dot_dimension_numbers<[1], [0], [0], [1], [0, 0, 1, 1], [], []>} : vector<64x64xf32>, vector<64x8xf32>, vector<64x8xf32> -> vector<64x8xf32>
    %c0_91 = arith.constant 0 : index
    %c24_92 = arith.constant 24 : index
    %237 = vector.load %arg22[%c0_91, %c24_92] : memref<64x32xf32, #tpu.memory_space<vmem>>, vector<64x8xf32>
    tpu.vector_store %arg22[%c0_91, %c24_92], %236 {strides = array<i32>} : memref<64x32xf32, #tpu.memory_space<vmem>>, vector<64x8xf32>,
    %c0_93 = arith.constant 0 : index
    %c0_94 = arith.constant 0 : index
    %238 = vector.load %arg22[%c0_93, %c0_94] : memref<64x32xf32, #tpu.memory_space<vmem>>, vector<64x32xf32>
    %c0_95 = arith.constant 0 : index
    %c0_96 = arith.constant 0 : index
    %239 = vector.load %arg15[%c0_95, %c0_96] : memref<32x32xf32, #tpu.memory_space<vmem>>, vector<32x32xf32>
    %cst_97 = arith.constant dense<0.000000e+00> : vector<64x32xf32>
    %240 = tpu.matmul %238, %239, %cst_97 {dimension_numbers = #tpu.dot_dimension_numbers<[1], [0], [0], [1], [0, 0, 1, 1], [], []>} : vector<64x32xf32>, vector<32x32xf32>, vector<64x32xf32> -> vector<64x32xf32>
    %c0_98 = arith.constant 0 : index
    %c0_99 = arith.constant 0 : index
    %241 = vector.load %arg16[%c0_98, %c0_99] : memref<1x32xf32, #tpu.memory_space<vmem>>, vector<1x32xf32>
    %242 = vector.broadcast %241 : vector<1x32xf32> to vector<64x32xf32>
    %243 = arith.addf %240, %242 : vector<64x32xf32>
    %244 = arith.addf %243, %153 : vector<64x32xf32>
    %c0_100 = arith.constant 0 : index
    %c0_101 = arith.constant 0 : index
    %245 = vector.load %arg17[%c0_100, %c0_101] : memref<1x32xf32, #tpu.memory_space<vmem>>, vector<1x32xf32>
    %c0_102 = arith.constant 0 : index
    %c0_103 = arith.constant 0 : index
    %246 = vector.load %arg18[%c0_102, %c0_103] : memref<1x32xf32, #tpu.memory_space<vmem>>, vector<1x32xf32>
    %cst_104 = arith.constant dense<0.000000e+00> : vector<64xf32>
    %247 = vector.multi_reduction <add>, %244, %cst_104 [1] : vector<64x32xf32> to vector<64xf32>
    %248 = vector.shape_cast %247 : vector<64xf32> to vector<64x1xf32>
    %cst_105 = arith.constant 3.200000e+01 : f32
    %249 = vector.broadcast %cst_105 : f32 to vector<64x1xf32>
    %250 = arith.divf %248, %249 : vector<64x1xf32>
    %251 = vector.broadcast %250 : vector<64x1xf32> to vector<64x32xf32>
    %252 = arith.subf %244, %251 : vector<64x32xf32>
    %253 = arith.mulf %252, %252 : vector<64x32xf32>
    %cst_106 = arith.constant dense<0.000000e+00> : vector<64xf32>
    %254 = vector.multi_reduction <add>, %253, %cst_106 [1] : vector<64x32xf32> to vector<64xf32>
    %255 = vector.shape_cast %254 : vector<64xf32> to vector<64x1xf32>
    %cst_107 = arith.constant 3.200000e+01 : f32
    %256 = vector.broadcast %cst_107 : f32 to vector<64x1xf32>
    %257 = arith.divf %255, %256 : vector<64x1xf32>
    %258 = vector.broadcast %250 : vector<64x1xf32> to vector<64x32xf32>
    %259 = arith.subf %244, %258 : vector<64x32xf32>
    %cst_108 = arith.constant 9.99999974E-6 : f32
    %260 = vector.broadcast %cst_108 : f32 to vector<64x1xf32>
    %261 = arith.addf %257, %260 : vector<64x1xf32>
    %262 = math.rsqrt %261 : vector<64x1xf32>
    %263 = vector.broadcast %262 : vector<64x1xf32> to vector<64x32xf32>
    %264 = arith.mulf %259, %263 : vector<64x32xf32>
    %265 = vector.broadcast %245 : vector<1x32xf32> to vector<64x32xf32>
    %266 = arith.mulf %264, %265 : vector<64x32xf32>
    %267 = vector.broadcast %246 : vector<1x32xf32> to vector<64x32xf32>
    %268 = arith.addf %266, %267 : vector<64x32xf32>
    %269 = arith.mulf %268, %268 : vector<64x32xf32>
    %cst_109 = arith.constant dense<0.000000e+00> : vector<64xf32>
    %270 = vector.multi_reduction <add>, %269, %cst_109 [1] : vector<64x32xf32> to vector<64xf32>
    %271 = vector.shape_cast %270 : vector<64xf32> to vector<64x1xf32>
    %cst_110 = arith.constant 1.000000e-24 : f32
    %272 = vector.broadcast %cst_110 : f32 to vector<64x1xf32>
    %273 = arith.maximumf %271, %272 : vector<64x1xf32>
    %274 = math.rsqrt %273 : vector<64x1xf32>
    %275 = vector.broadcast %274 : vector<64x1xf32> to vector<64x32xf32>
    %276 = arith.mulf %268, %275 : vector<64x32xf32>
    %c0_111 = arith.constant 0 : index
    %c0_112 = arith.constant 0 : index
    %277 = vector.load %arg19[%c0_111, %c0_112] : memref<32x128xf32, #tpu.memory_space<vmem>>, vector<32x128xf32>
    %cst_113 = arith.constant dense<0.000000e+00> : vector<64x128xf32>
    %278 = tpu.matmul %276, %277, %cst_113 {dimension_numbers = #tpu.dot_dimension_numbers<[1], [0], [0], [1], [0, 0, 1, 1], [], []>} : vector<64x32xf32>, vector<32x128xf32>, vector<64x128xf32> -> vector<64x128xf32>
    %c0_114 = arith.constant 0 : index
    %c0_115 = arith.constant 0 : index
    %279 = vector.load %arg20[%c0_114, %c0_115] : memref<1x128xf32, #tpu.memory_space<vmem>>, vector<1x128xf32>
    %280 = vector.broadcast %279 : vector<1x128xf32> to vector<64x128xf32>
    %281 = arith.addf %278, %280 : vector<64x128xf32>
    %c0_116 = arith.constant 0 : index
    %c0_117 = arith.constant 0 : index
    %282 = vector.load %arg21[%c0_116, %c0_117] : memref<64x128xf32, #tpu.memory_space<vmem>>, vector<64x128xf32>
    tpu.vector_store %arg21[%c0_116, %c0_117], %281 {strides = array<i32>} : memref<64x128xf32, #tpu.memory_space<vmem>>, vector<64x128xf32>,
    return
  }
}

</mosaic_0001>

<llo_original>
// kernel: tpu_custom_call.1
$region0: #{tpu_custom_call.1}
  #allocation0 [shape = 'u32[]', space=smem, size = 0x4, offset = 0x4, fixed_abs, tag = 'smem constant byte address 0x4 - core index']
  #allocation1 [shape = 'u32[144,128]{1,0:T(1,128)}', space=vmem, size = 0x12000, scoped, tag = 'internal scratch']
  #allocation2 [shape = 'f32[64,32]{1,0:T(8,128)}', space=vmem, size = 0x8000, scoped, tag = 'scratch operand']
  %s0 = inlined_call_operand.vmem [shape: f32[64,16], index: 0, kind: input, shape index: {}]
  %s1 = inlined_call_operand.hbm [shape: f32[16,32], index: 1, kind: input, shape index: {}]
  %s2 = inlined_call_operand.hbm [shape: f32[1,32], index: 2, kind: input, shape index: {}]
  %s3 = inlined_call_operand.vmem [shape: f32[32,32], index: 3, kind: input, shape index: {}]
  %s4 = inlined_call_operand.hbm [shape: f32[1,32], index: 4, kind: input, shape index: {}]
  %s5 = inlined_call_operand.hbm [shape: f32[1,32], index: 5, kind: input, shape index: {}]
  %s6 = inlined_call_operand.hbm [shape: f32[1,32], index: 6, kind: input, shape index: {}]
  %s7 = inlined_call_operand.vmem [shape: f32[32,96], index: 7, kind: input, shape index: {}]
  %s8 = inlined_call_operand.hbm [shape: f32[1,96], index: 8, kind: input, shape index: {}]
  %s9 = inlined_call_operand.vmem [shape: f32[32,32], index: 9, kind: input, shape index: {}]
  %s10 = inlined_call_operand.vmem [shape: f32[1,32], index: 10, kind: input, shape index: {}]
  %s11 = inlined_call_operand.vmem [shape: f32[1,32], index: 11, kind: input, shape index: {}]
  %s12 = inlined_call_operand.vmem [shape: f32[1,32], index: 12, kind: input, shape index: {}]
  %s13 = inlined_call_operand.hbm [shape: f32[32,96], index: 13, kind: input, shape index: {}]
  %s14 = inlined_call_operand.vmem [shape: f32[1,96], index: 14, kind: input, shape index: {}]
  %s15 = inlined_call_operand.hbm [shape: f32[32,32], index: 15, kind: input, shape index: {}]
  %s16 = inlined_call_operand.vmem [shape: f32[1,32], index: 16, kind: input, shape index: {}]
  %s17 = inlined_call_operand.vmem [shape: f32[1,32], index: 17, kind: input, shape index: {}]
  %s18 = inlined_call_operand.vmem [shape: f32[1,32], index: 18, kind: input, shape index: {}]
  %s19 = inlined_call_operand.hbm [shape: f32[32,128], index: 19, kind: input, shape index: {}]
  %s20 = inlined_call_operand.vmem [shape: f32[1,128], index: 20, kind: input, shape index: {}]
  %s21 = inlined_call_operand.hbm [shape: f32[64,128], index: 21, kind: output, shape index: {}]
  %s22 = sld [smem:[#allocation0]]
  $region130: #{tpu_custom_call.1} parent=0
    _
  %s24 = ssub.s32 1, %s22
  %s25 = scalar_select 0, %s24, %s22
  $region1: #{tpu_custom_call.1} parent=0
    #allocation3 [shape = 'u8[8192]{0}', space=vmem, size = 0x2000, scoped, tag = 'input window, operand 1, single buffered']
    #allocation4 [shape = 's32[1]{0}', space=sflag, size = 0x4, scoped, tag = 'scoped memory for tpu_custom_call.1']
    #allocation5 [shape = 's32[1]{0}', space=sflag, size = 0x4, scoped, tag = 'scoped memory for tpu_custom_call.1']
    #allocation6 [shape = 'u8[512]{0}', space=vmem, size = 0x400, scoped, tag = 'input window, operand 2, single buffered']
    #allocation7 [shape = 's32[1]{0}', space=sflag, size = 0x4, scoped, tag = 'scoped memory for tpu_custom_call.1']
    #allocation8 [shape = 'u8[512]{0}', space=vmem, size = 0x400, scoped, tag = 'input window, operand 4, single buffered']
    #allocation9 [shape = 'u8[512]{0}', space=vmem, size = 0x400, scoped, tag = 'input window, operand 5, single buffered']
    #allocation10 [shape = 's32[1]{0}', space=sflag, size = 0x4, scoped, tag = 'scoped memory for tpu_custom_call.1']
    #allocation11 [shape = 'u8[512]{0}', space=vmem, size = 0x400, scoped, tag = 'input window, operand 6, single buffered']
    #allocation12 [shape = 'u8[512]{0}', space=vmem, size = 0x400, scoped, tag = 'input window, operand 8, single buffered']
    #allocation13 [shape = 's32[1]{0}', space=sflag, size = 0x4, scoped, tag = 'scoped memory for tpu_custom_call.1']
    #allocation14 [shape = 'u8[16384]{0}', space=vmem, size = 0x4000, scoped, tag = 'input window, operand 13, single buffered']
    #allocation15 [shape = 'u8[16384]{0}', space=vmem, size = 0x4000, scoped, tag = 'input window, operand 15, single buffered']
    #allocation16 [shape = 's32[1]{0}', space=sflag, size = 0x4, scoped, tag = 'scoped memory for tpu_custom_call.1']
    #allocation17 [shape = 'u8[16384]{0}', space=vmem, size = 0x4000, scoped, tag = 'input window, operand 19, single buffered']
    #allocation18 [shape = 'u8[32768]{0}', space=vmem, size = 0x8000, scoped, tag = 'output window, operand 0, single buffered']
    %26 = vsyncpa [#allocation4], 0
    %27 = vsyncpa [#allocation7], 0
    %28 = vsyncpa [#allocation10], 0
    %29 = vsyncpa [#allocation13], 0
    %30 = vsyncpa [#allocation16], 0
    %31 = vsyncpa [#allocation5], 0
    // Predicated region
    $region2: #{tpu_custom_call.1} parent=1 // pred_check
      _
    $region3: #{tpu_custom_call.1} parent=1 // pred_check_branch
      %33 = sbr.rel (0) target = $region5
    $region4: #{tpu_custom_call.1} parent=1 // pred_region
      _
    $region5: #{tpu_custom_call.1} parent=1 // pred_fallthru
      _
    // Predicated region
    $region6: #{tpu_custom_call.1} parent=1 // pred_check
      _
    $region7: #{tpu_custom_call.1} parent=1 // pred_check_branch
      %35 = sbr.rel (0) target = $region9
    $region8: #{tpu_custom_call.1} parent=1 // pred_region
      %s37 = ssub.s32 256, 256
      %38 = vsyncadd [#allocation4], %s37
      %s39 = sshll.u32 [#allocation3], 4
      %s40 = int_to_ptr.vmem [resolvable:$true] %s39
      %45 = dma.hbm_to_vmem [thread:$0]  %s1, 256, %s40, [#allocation4], 128, 128, 8
    $region9: #{tpu_custom_call.1} parent=1 // pred_fallthru
      _
    // Predicated region
    $region10: #{tpu_custom_call.1} parent=1 // pred_check
      _
    $region11: #{tpu_custom_call.1} parent=1 // pred_check_branch
      %47 = sbr.rel (0) target = $region13
    $region12: #{tpu_custom_call.1} parent=1 // pred_region
      %s49 = ssub.s32 16, 16
      %50 = vsyncadd [#allocation7], %s49
      %s52 = sshll.u32 [#allocation6], 4
      %s53 = int_to_ptr.vmem [resolvable:$true] %s52
      %55 = dma.hbm_to_vmem [thread:$0]  %s2, 16, %s53, [#allocation7]
    $region13: #{tpu_custom_call.1} parent=1 // pred_fallthru
      _
    // Predicated region
    $region14: #{tpu_custom_call.1} parent=1 // pred_check
      _
    $region15: #{tpu_custom_call.1} parent=1 // pred_check_branch
      %57 = sbr.rel (0) target = $region17
    $region16: #{tpu_custom_call.1} parent=1 // pred_region
      _
    $region17: #{tpu_custom_call.1} parent=1 // pred_fallthru
      _
    // Predicated region
    $region18: #{tpu_custom_call.1} parent=1 // pred_check
      _
    $region19: #{tpu_custom_call.1} parent=1 // pred_check_branch
      %59 = sbr.rel (0) target = $region21
    $region20: #{tpu_custom_call.1} parent=1 // pred_region
      %s61 = ssub.s32 16, 16
      %62 = vsyncadd [#allocation7], %s61
      %s64 = sshll.u32 [#allocation8], 4
      %s65 = int_to_ptr.vmem [resolvable:$true] %s64
      %67 = dma.hbm_to_vmem [thread:$0]  %s4, 16, %s65, [#allocation7]
    $region21: #{tpu_custom_call.1} parent=1 // pred_fallthru
      _
    // Predicated region
    $region22: #{tpu_custom_call.1} parent=1 // pred_check
      _
    $region23: #{tpu_custom_call.1} parent=1 // pred_check_branch
      %69 = sbr.rel (0) target = $region25
    $region24: #{tpu_custom_call.1} parent=1 // pred_region
      %s71 = ssub.s32 16, 16
      %72 = vsyncadd [#allocation10], %s71
      %s74 = sshll.u32 [#allocation9], 4
      %s75 = int_to_ptr.vmem [resolvable:$true] %s74
      %77 = dma.hbm_to_vmem [thread:$0]  %s5, 16, %s75, [#allocation10]
    $region25: #{tpu_custom_call.1} parent=1 // pred_fallthru
      _
    // Predicated region
    $region26: #{tpu_custom_call.1} parent=1 // pred_check
      _
    $region27: #{tpu_custom_call.1} parent=1 // pred_check_branch
      %79 = sbr.rel (0) target = $region29
    $region28: #{tpu_custom_call.1} parent=1 // pred_region
      %s81 = ssub.s32 16, 16
      %82 = vsyncadd [#allocation10], %s81
      %s84 = sshll.u32 [#allocation11], 4
      %s85 = int_to_ptr.vmem [resolvable:$true] %s84
      %87 = dma.hbm_to_vmem [thread:$0]  %s6, 16, %s85, [#allocation10]
    $region29: #{tpu_custom_call.1} parent=1 // pred_fallthru
      _
    // Predicated region
    $region30: #{tpu_custom_call.1} parent=1 // pred_check
      _
    $region31: #{tpu_custom_call.1} parent=1 // pred_check_branch
      %89 = sbr.rel (0) target = $region33
    $region32: #{tpu_custom_call.1} parent=1 // pred_region
      _
    $region33: #{tpu_custom_call.1} parent=1 // pred_fallthru
      _
    // Predicated region
    $region34: #{tpu_custom_call.1} parent=1 // pred_check
      _
    $region35: #{tpu_custom_call.1} parent=1 // pred_check_branch
      %91 = sbr.rel (0) target = $region37
    $region36: #{tpu_custom_call.1} parent=1 // pred_region
      %s93 = ssub.s32 16, 16
      %94 = vsyncadd [#allocation13], %s93
      %s96 = sshll.u32 [#allocation12], 4
      %s97 = int_to_ptr.vmem [resolvable:$true] %s96
      %99 = dma.hbm_to_vmem [thread:$0]  %s8, 16, %s97, [#allocation13]
    $region37: #{tpu_custom_call.1} parent=1 // pred_fallthru
      _
    // Predicated region
    $region38: #{tpu_custom_call.1} parent=1 // pred_check
      _
    $region39: #{tpu_custom_call.1} parent=1 // pred_check_branch
      %101 = sbr.rel (0) target = $region41
    $region40: #{tpu_custom_call.1} parent=1 // pred_region
      _
    $region41: #{tpu_custom_call.1} parent=1 // pred_fallthru
      _
    // Predicated region
    $region42: #{tpu_custom_call.1} parent=1 // pred_check
      _
    $region43: #{tpu_custom_call.1} parent=1 // pred_check_branch
      %103 = sbr.rel (0) target = $region45
    $region44: #{tpu_custom_call.1} parent=1 // pred_region
      _
    $region45: #{tpu_custom_call.1} parent=1 // pred_fallthru
      _
    // Predicated region
    $region46: #{tpu_custom_call.1} parent=1 // pred_check
      _
    $region47: #{tpu_custom_call.1} parent=1 // pred_check_branch
      %105 = sbr.rel (0) target = $region49
    $region48: #{tpu_custom_call.1} parent=1 // pred_region
      _
    $region49: #{tpu_custom_call.1} parent=1 // pred_fallthru
      _
    // Predicated region
    $region50: #{tpu_custom_call.1} parent=1 // pred_check
      _
    $region51: #{tpu_custom_call.1} parent=1 // pred_check_branch
      %107 = sbr.rel (0) target = $region53
    $region52: #{tpu_custom_call.1} parent=1 // pred_region
      _
    $region53: #{tpu_custom_call.1} parent=1 // pred_fallthru
      _
    // Predicated region
    $region54: #{tpu_custom_call.1} parent=1 // pred_check
      _
    $region55: #{tpu_custom_call.1} parent=1 // pred_check_branch
      %109 = sbr.rel (0) target = $region57
    $region56: #{tpu_custom_call.1} parent=1 // pred_region
      %s111 = ssub.s32 512, 512
      %112 = vsyncadd [#allocation13], %s111
      %s113 = sshll.u32 [#allocation14], 4
      %s114 = int_to_ptr.vmem [resolvable:$true] %s113
      %119 = dma.hbm_to_vmem [thread:$0]  %s13, 512, %s114, [#allocation13], 128, 128, 8
    $region57: #{tpu_custom_call.1} parent=1 // pred_fallthru
      _
    // Predicated region
    $region58: #{tpu_custom_call.1} parent=1 // pred_check
      _
    $region59: #{tpu_custom_call.1} parent=1 // pred_check_branch
      %121 = sbr.rel (0) target = $region61
    $region60: #{tpu_custom_call.1} parent=1 // pred_region
      _
    $region61: #{tpu_custom_call.1} parent=1 // pred_fallthru
      _
    // Predicated region
    $region62: #{tpu_custom_call.1} parent=1 // pred_check
      _
    $region63: #{tpu_custom_call.1} parent=1 // pred_check_branch
      %123 = sbr.rel (0) target = $region65
    $region64: #{tpu_custom_call.1} parent=1 // pred_region
      %s125 = ssub.s32 512, 512
      %126 = vsyncadd [#allocation16], %s125
      %s127 = sshll.u32 [#allocation15], 4
      %s128 = int_to_ptr.vmem [resolvable:$true] %s127
      %133 = dma.hbm_to_vmem [thread:$0]  %s15, 512, %s128, [#allocation16], 128, 128, 8
    $region65: #{tpu_custom_call.1} parent=1 // pred_fallthru
      _
    // Predicated region
    $region66: #{tpu_custom_call.1} parent=1 // pred_check
      _
    $region67: #{tpu_custom_call.1} parent=1 // pred_check_branch
      %135 = sbr.rel (0) target = $region69
    $region68: #{tpu_custom_call.1} parent=1 // pred_region
      _
    $region69: #{tpu_custom_call.1} parent=1 // pred_fallthru
      _
    // Predicated region
    $region70: #{tpu_custom_call.1} parent=1 // pred_check
      _
    $region71: #{tpu_custom_call.1} parent=1 // pred_check_branch
      %137 = sbr.rel (0) target = $region73
    $region72: #{tpu_custom_call.1} parent=1 // pred_region
      _
    $region73: #{tpu_custom_call.1} parent=1 // pred_fallthru
      _
    // Predicated region
    $region74: #{tpu_custom_call.1} parent=1 // pred_check
      _
    $region75: #{tpu_custom_call.1} parent=1 // pred_check_branch
      %139 = sbr.rel (0) target = $region77
    $region76: #{tpu_custom_call.1} parent=1 // pred_region
      _
    $region77: #{tpu_custom_call.1} parent=1 // pred_fallthru
      _
    // Predicated region
    $region78: #{tpu_custom_call.1} parent=1 // pred_check
      _
    $region79: #{tpu_custom_call.1} parent=1 // pred_check_branch
      %141 = sbr.rel (0) target = $region81
    $region80: #{tpu_custom_call.1} parent=1 // pred_region
      %s143 = ssub.s32 512, 512
      %144 = vsyncadd [#allocation16], %s143
      %s145 = sshll.u32 [#allocation17], 4
      %s146 = int_to_ptr.vmem [resolvable:$true] %s145
      %151 = dma.hbm_to_vmem [thread:$0]  %s19, 512, %s146, [#allocation16], 128, 128, 8
    $region81: #{tpu_custom_call.1} parent=1 // pred_fallthru
      _
    // Predicated region
    $region82: #{tpu_custom_call.1} parent=1 // pred_check
      _
    $region83: #{tpu_custom_call.1} parent=1 // pred_check_branch
      %153 = sbr.rel (0) target = $region85
    $region84: #{tpu_custom_call.1} parent=1 // pred_region
      _
    $region85: #{tpu_custom_call.1} parent=1 // pred_fallthru
      _
    // Predicated region
    $region86: #{tpu_custom_call.1} parent=1 // pred_check
      _
    $region87: #{tpu_custom_call.1} parent=1 // pred_check_branch
      %155 = sbr.rel (0) target = $region89
    $region88: #{tpu_custom_call.1} parent=1 // pred_region
      %156 = dma.done [#allocation4], 256
    $region89: #{tpu_custom_call.1} parent=1 // pred_fallthru
      _
    // Predicated region
    $region90: #{tpu_custom_call.1} parent=1 // pred_check
      _
    $region91: #{tpu_custom_call.1} parent=1 // pred_check_branch
      %158 = sbr.rel (0) target = $region93
    $region92: #{tpu_custom_call.1} parent=1 // pred_region
      %159 = dma.done [#allocation7], 16
    $region93: #{tpu_custom_call.1} parent=1 // pred_fallthru
      _
    // Predicated region
    $region94: #{tpu_custom_call.1} parent=1 // pred_check
      _
    $region95: #{tpu_custom_call.1} parent=1 // pred_check_branch
      %161 = sbr.rel (0) target = $region97
    $region96: #{tpu_custom_call.1} parent=1 // pred_region
      %162 = dma.done [#allocation7], 16
    $region97: #{tpu_custom_call.1} parent=1 // pred_fallthru
      _
    // Predicated region
    $region98: #{tpu_custom_call.1} parent=1 // pred_check
      _
    $region99: #{tpu_custom_call.1} parent=1 // pred_check_branch
      %164 = sbr.rel (0) target = $region101
    $region100: #{tpu_custom_call.1} parent=1 // pred_region
      %165 = dma.done [#allocation10], 16
    $region101: #{tpu_custom_call.1} parent=1 // pred_fallthru
      _
    // Predicated region
    $region102: #{tpu_custom_call.1} parent=1 // pred_check
      _
    $region103: #{tpu_custom_call.1} parent=1 // pred_check_branch
      %167 = sbr.rel (0) target = $region105
    $region104: #{tpu_custom_call.1} parent=1 // pred_region
      %168 = dma.done [#allocation10], 16
    $region105: #{tpu_custom_call.1} parent=1 // pred_fallthru
      _
    // Predicated region
    $region106: #{tpu_custom_call.1} parent=1 // pred_check
      _
    $region107: #{tpu_custom_call.1} parent=1 // pred_check_branch
      %170 = sbr.rel (0) target = $region109
    $region108: #{tpu_custom_call.1} parent=1 // pred_region
      %171 = dma.done [#allocation13], 16
    $region109: #{tpu_custom_call.1} parent=1 // pred_fallthru
      _
    // Predicated region
    $region110: #{tpu_custom_call.1} parent=1 // pred_check
      _
    $region111: #{tpu_custom_call.1} parent=1 // pred_check_branch
      %173 = sbr.rel (0) target = $region113
    $region112: #{tpu_custom_call.1} parent=1 // pred_region
      %174 = dma.done [#allocation13], 512
    $region113: #{tpu_custom_call.1} parent=1 // pred_fallthru
      _
    // Predicated region
    $region114: #{tpu_custom_call.1} parent=1 // pred_check
      _
    $region115: #{tpu_custom_call.1} parent=1 // pred_check_branch
      %176 = sbr.rel (0) target = $region117
    $region116: #{tpu_custom_call.1} parent=1 // pred_region
      %177 = dma.done [#allocation16], 512
    $region117: #{tpu_custom_call.1} parent=1 // pred_fallthru
      _
    // Predicated region
    $region118: #{tpu_custom_call.1} parent=1 // pred_check
      _
    $region119: #{tpu_custom_call.1} parent=1 // pred_check_branch
      %179 = sbr.rel (0) target = $region121
    $region120: #{tpu_custom_call.1} parent=1 // pred_region
      %180 = dma.done [#allocation16], 512
    $region121: #{tpu_custom_call.1} parent=1 // pred_fallthru
      _
    %v181 = vld [vmem:[%s0] sm:$0xff]
    %v182 = vld [vmem:[%s0 + $0x8] sm:$0xff]
    %v183 = vld [vmem:[%s0 + $0x10] sm:$0xff]
    %v184 = vld [vmem:[%s0 + $0x18] sm:$0xff]
    %v185 = vld [vmem:[%s0 + $0x20] sm:$0xff]
    %v186 = vld [vmem:[%s0 + $0x28] sm:$0xff]
    %v187 = vld [vmem:[%s0 + $0x30] sm:$0xff]
    %v188 = vld [vmem:[%s0 + $0x38] sm:$0xff]
    %v189 = vld [vmem:[#allocation3] sm:$0xff]
    %v190 = vld [vmem:[#allocation3 + $0x8] sm:$0xff]
    %v191 = vld [vmem:[#allocation6] sm:$0x1]
    %v193 = vlaneseq
    %v194 = vshrl.u32 %v193, 7
    %v195 = vsub.s32 0, %v194
    %v196 = vrot.slane %v191, %v195
    %vm198 = vcmask 130048
    %v200 = vsel %vm198, %v181, 0
    %v203 = vsel %vm198, %v182, 0
    %v206 = vsel %vm198, %v183, 0
    %v209 = vsel %vm198, %v184, 0
    %v212 = vsel %vm198, %v185, 0
    %v215 = vsel %vm198, %v186, 0
    %v218 = vsel %vm198, %v187, 0
    %v221 = vsel %vm198, %v188, 0
    %223 = vmatprep.subr.mxu0 0.0
    %224 = vmatpush1.msra.mxu0 0.0
    %225 = vmatprep.subr.mxu0 0.0
    %226 = vmatpush1.msra.mxu0 0.0
    %227 = vmatprep.subr.mxu0 0.0
    %228 = vmatpush1.msra.mxu0 0.0
    %229 = vmatprep.subr.mxu0 0.0
    %230 = vmatpush1.msra.mxu0 0.0
    %231 = vmatprep.subr.mxu0 0.0
    %232 = vmatpush1.msra.mxu0 0.0
    %233 = vmatprep.subr.mxu0 0.0
    %234 = vmatpush1.msra.mxu0 0.0
    %235 = vmatprep.subr.mxu0 0.0
    %236 = vmatpush1.msra.mxu0 0.0
    %237 = vmatprep.subr.mxu0 0.0
    %238 = vmatpush1.msra.mxu0 0.0
    %239 = vmatprep.subr.mxu0 0.0
    %240 = vmatpush1.msra.mxu0 0.0
    %241 = vmatprep.subr.mxu0 0.0
    %242 = vmatpush1.msra.mxu0 0.0
    %243 = vmatprep.subr.mxu0 0.0
    %244 = vmatpush1.msra.mxu0 0.0
    %245 = vmatprep.subr.mxu0 0.0
    %246 = vmatpush1.msra.mxu0 0.0
    %247 = vmatprep.subr.mxu0 0.0
    %248 = vmatpush1.msra.mxu0 0.0
    %249 = vmatprep.subr.mxu0 0.0
    %250 = vmatpush1.msra.mxu0 0.0
    %251 = vmatprep.subr.mxu0 0.0
    %252 = vmatpush1.msra.mxu0 %v190
    %253 = vmatprep.subr.mxu0 0.0
    %254 = vmatpush1.msra.mxu0 %v189
    %255 = vmatprep.subr.mxu0 0.0
    %256 = vmatpush2.msra.mxu0 0.0
    %257 = vmatprep.subr.mxu0 0.0
    %258 = vmatpush2.msra.mxu0 0.0
    %259 = vmatprep.subr.mxu0 0.0
    %260 = vmatpush2.msra.mxu0 0.0
    %261 = vmatprep.subr.mxu0 0.0
    %262 = vmatpush2.msra.mxu0 0.0
    %263 = vmatprep.subr.mxu0 0.0
    %264 = vmatpush2.msra.mxu0 0.0
    %265 = vmatprep.subr.mxu0 0.0
    %266 = vmatpush2.msra.mxu0 0.0
    %267 = vmatprep.subr.mxu0 0.0
    %268 = vmatpush2.msra.mxu0 0.0
    %269 = vmatprep.subr.mxu0 0.0
    %270 = vmatpush2.msra.mxu0 0.0
    %271 = vmatprep.subr.mxu0 0.0
    %272 = vmatpush2.msra.mxu0 0.0
    %273 = vmatprep.subr.mxu0 0.0
    %274 = vmatpush2.msra.mxu0 0.0
    %275 = vmatprep.subr.mxu0 0.0
    %276 = vmatpush2.msra.mxu0 0.0
    %277 = vmatprep.subr.mxu0 0.0
    %278 = vmatpush2.msra.mxu0 0.0
    %279 = vmatprep.subr.mxu0 0.0
    %280 = vmatpush2.msra.mxu0 0.0
    %281 = vmatprep.subr.mxu0 0.0
    %282 = vmatpush2.msra.mxu0 0.0
    %283 = vmatprep.subr.mxu0 0.0
    %284 = vmatpush2.msra.mxu0 0.0
    %285 = vmatprep.subr.mxu0 0.0
    %286 = vmatpush2.msra.mxu0 0.0
    %287 = vmatprep.mubr.f32.mxu0 0.0
    %288 = vmatmul.mubr.f32.gmra.mxu0 %v200
    %v289 = vpop.f32.mrf.mxu0
    %v290 = vadd.f32 %v196, %v289
    %v291 = vpop.f32.mrf.mxu0
    %292 = vmatprep.mubr.f32.mxu0 0.0
    %293 = vmatmul.mubr.f32.gmra.mxu0 %v203
    %v294 = vpop.f32.mrf.mxu0
    %v295 = vadd.f32 %v196, %v294
    %v296 = vpop.f32.mrf.mxu0
    %297 = vmatprep.mubr.f32.mxu0 0.0
    %298 = vmatmul.mubr.f32.gmra.mxu0 %v206
    %v299 = vpop.f32.mrf.mxu0
    %v300 = vadd.f32 %v196, %v299
    %v301 = vpop.f32.mrf.mxu0
    %302 = vmatprep.mubr.f32.mxu0 0.0
    %303 = vmatmul.mubr.f32.gmra.mxu0 %v209
    %v304 = vpop.f32.mrf.mxu0
    %v305 = vadd.f32 %v196, %v304
    %v306 = vpop.f32.mrf.mxu0
    %307 = vmatprep.mubr.f32.mxu0 0.0
    %308 = vmatmul.mubr.f32.gmra.mxu0 %v212
    %v309 = vpop.f32.mrf.mxu0
    %v310 = vadd.f32 %v196, %v309
    %v311 = vpop.f32.mrf.mxu0
    %312 = vmatprep.mubr.f32.mxu0 0.0
    %313 = vmatmul.mubr.f32.gmra.mxu0 %v215
    %v314 = vpop.f32.mrf.mxu0
    %v315 = vadd.f32 %v196, %v314
    %v316 = vpop.f32.mrf.mxu0
    %317 = vmatprep.mubr.f32.mxu0 0.0
    %318 = vmatmul.mubr.f32.gmra.mxu0 %v218
    %v319 = vpop.f32.mrf.mxu0
    %v320 = vadd.f32 %v196, %v319
    %v321 = vpop.f32.mrf.mxu0
    %322 = vmatprep.mubr.f32.mxu0 0.0
    %323 = vmatmul.mubr.f32.gmra.mxu0 %v221
    %v324 = vpop.f32.mrf.mxu0
    %v325 = vadd.f32 %v196, %v324
    %v326 = vpop.f32.mrf.mxu0
    %327 = vdwg.mxu0
    %v328 = vld [vmem:[%s3] sm:$0xff]
    %v329 = vld [vmem:[%s3 + $0x8] sm:$0xff]
    %v330 = vld [vmem:[%s3 + $0x10] sm:$0xff]
    %v331 = vld [vmem:[%s3 + $0x18] sm:$0xff]
    %v332 = vld [vmem:[#allocation8] sm:$0x1]
    %v334 = vlaneseq
    %v335 = vshrl.u32 %v334, 7
    %v336 = vsub.s32 0, %v335
    %v337 = vrot.slane %v332, %v336
    %vm339 = vcmask 261120
    %v341 = vsel %vm339, %v290, 0
    %v344 = vsel %vm339, %v295, 0
    %v347 = vsel %vm339, %v300, 0
    %v350 = vsel %vm339, %v305, 0
    %v353 = vsel %vm339, %v310, 0
    %v356 = vsel %vm339, %v315, 0
    %v359 = vsel %vm339, %v320, 0
    %v362 = vsel %vm339, %v325, 0
    %364 = vmatprep.subr.mxu0 0.0
    %365 = vmatpush1.msra.mxu0 0.0
    %366 = vmatprep.subr.mxu0 0.0
    %367 = vmatpush1.msra.mxu0 0.0
    %368 = vmatprep.subr.mxu0 0.0
    %369 = vmatpush1.msra.mxu0 0.0
    %370 = vmatprep.subr.mxu0 0.0
    %371 = vmatpush1.msra.mxu0 0.0
    %372 = vmatprep.subr.mxu0 0.0
    %373 = vmatpush1.msra.mxu0 0.0
    %374 = vmatprep.subr.mxu0 0.0
    %375 = vmatpush1.msra.mxu0 0.0
    %376 = vmatprep.subr.mxu0 0.0
    %377 = vmatpush1.msra.mxu0 0.0
    %378 = vmatprep.subr.mxu0 0.0
    %379 = vmatpush1.msra.mxu0 0.0
    %380 = vmatprep.subr.mxu0 0.0
    %381 = vmatpush1.msra.mxu0 0.0
    %382 = vmatprep.subr.mxu0 0.0
    %383 = vmatpush1.msra.mxu0 0.0
    %384 = vmatprep.subr.mxu0 0.0
    %385 = vmatpush1.msra.mxu0 0.0
    %386 = vmatprep.subr.mxu0 0.0
    %387 = vmatpush1.msra.mxu0 0.0
    %388 = vmatprep.subr.mxu0 0.0
    %389 = vmatpush1.msra.mxu0 %v331
    %390 = vmatprep.subr.mxu0 0.0
    %391 = vmatpush1.msra.mxu0 %v330
    %392 = vmatprep.subr.mxu0 0.0
    %393 = vmatpush1.msra.mxu0 %v329
    %394 = vmatprep.subr.mxu0 0.0
    %395 = vmatpush1.msra.mxu0 %v328
    %396 = vmatprep.subr.mxu0 0.0
    %397 = vmatpush2.msra.mxu0 0.0
    %398 = vmatprep.subr.mxu0 0.0
    %399 = vmatpush2.msra.mxu0 0.0
    %400 = vmatprep.subr.mxu0 0.0
    %401 = vmatpush2.msra.mxu0 0.0
    %402 = vmatprep.subr.mxu0 0.0
    %403 = vmatpush2.msra.mxu0 0.0
    %404 = vmatprep.subr.mxu0 0.0
    %405 = vmatpush2.msra.mxu0 0.0
    %406 = vmatprep.subr.mxu0 0.0
    %407 = vmatpush2.msra.mxu0 0.0
    %408 = vmatprep.subr.mxu0 0.0
    %409 = vmatpush2.msra.mxu0 0.0
    %410 = vmatprep.subr.mxu0 0.0
    %411 = vmatpush2.msra.mxu0 0.0
    %412 = vmatprep.subr.mxu0 0.0
    %413 = vmatpush2.msra.mxu0 0.0
    %414 = vmatprep.subr.mxu0 0.0
    %415 = vmatpush2.msra.mxu0 0.0
    %416 = vmatprep.subr.mxu0 0.0
    %417 = vmatpush2.msra.mxu0 0.0
    %418 = vmatprep.subr.mxu0 0.0
    %419 = vmatpush2.msra.mxu0 0.0
    %420 = vmatprep.subr.mxu0 0.0
    %421 = vmatpush2.msra.mxu0 0.0
    %422 = vmatprep.subr.mxu0 0.0
    %423 = vmatpush2.msra.mxu0 0.0
    %424 = vmatprep.subr.mxu0 0.0
    %425 = vmatpush2.msra.mxu0 0.0
    %426 = vmatprep.subr.mxu0 0.0
    %427 = vmatpush2.msra.mxu0 0.0
    %428 = vmatprep.mubr.f32.mxu0 0.0
    %429 = vmatmul.mubr.f32.gmra.mxu0 %v341
    %v430 = vpop.f32.mrf.mxu0
    %v431 = vadd.f32 %v337, %v430
    %v432 = vpop.f32.mrf.mxu0
    %433 = vmatprep.mubr.f32.mxu0 0.0
    %434 = vmatmul.mubr.f32.gmra.mxu0 %v344
    %v435 = vpop.f32.mrf.mxu0
    %v436 = vadd.f32 %v337, %v435
    %v437 = vpop.f32.mrf.mxu0
    %438 = vmatprep.mubr.f32.mxu0 0.0
    %439 = vmatmul.mubr.f32.gmra.mxu0 %v347
    %v440 = vpop.f32.mrf.mxu0
    %v441 = vadd.f32 %v337, %v440
    %v442 = vpop.f32.mrf.mxu0
    %443 = vmatprep.mubr.f32.mxu0 0.0
    %444 = vmatmul.mubr.f32.gmra.mxu0 %v350
    %v445 = vpop.f32.mrf.mxu0
    %v446 = vadd.f32 %v337, %v445
    %v447 = vpop.f32.mrf.mxu0
    %448 = vmatprep.mubr.f32.mxu0 0.0
    %449 = vmatmul.mubr.f32.gmra.mxu0 %v353
    %v450 = vpop.f32.mrf.mxu0
    %v451 = vadd.f32 %v337, %v450
    %v452 = vpop.f32.mrf.mxu0
    %453 = vmatprep.mubr.f32.mxu0 0.0
    %454 = vmatmul.mubr.f32.gmra.mxu0 %v356
    %v455 = vpop.f32.mrf.mxu0
    %v456 = vadd.f32 %v337, %v455
    %v457 = vpop.f32.mrf.mxu0
    %458 = vmatprep.mubr.f32.mxu0 0.0
    %459 = vmatmul.mubr.f32.gmra.mxu0 %v359
    %v460 = vpop.f32.mrf.mxu0
    %v461 = vadd.f32 %v337, %v460
    %v462 = vpop.f32.mrf.mxu0
    %463 = vmatprep.mubr.f32.mxu0 0.0
    %464 = vmatmul.mubr.f32.gmra.mxu0 %v362
    %v465 = vpop.f32.mrf.mxu0
    %v466 = vadd.f32 %v337, %v465
    %v467 = vpop.f32.mrf.mxu0
    %468 = vdwg.mxu0
    %v469 = vld [vmem:[#allocation9] sm:$0x1]
    %v470 = vld [vmem:[#allocation11] sm:$0x1]
    %v471 = vsel %vm339, %v431, 0.0
    %472 = vadd.xlane.f32.xlu0 %v471
    %v473 = vpop.xlane.xlu0 %472
    %v474 = vsel %vm339, %v436, 0.0
    %475 = vadd.xlane.f32.xlu0 %v474
    %v476 = vpop.xlane.xlu0 %475
    %v477 = vsel %vm339, %v441, 0.0
    %478 = vadd.xlane.f32.xlu0 %v477
    %v479 = vpop.xlane.xlu0 %478
    %v480 = vsel %vm339, %v446, 0.0
    %481 = vadd.xlane.f32.xlu0 %v480
    %v482 = vpop.xlane.xlu0 %481
    %v483 = vsel %vm339, %v451, 0.0
    %484 = vadd.xlane.f32.xlu0 %v483
    %v485 = vpop.xlane.xlu0 %484
    %v486 = vsel %vm339, %v456, 0.0
    %487 = vadd.xlane.f32.xlu0 %v486
    %v488 = vpop.xlane.xlu0 %487
    %v489 = vsel %vm339, %v461, 0.0
    %490 = vadd.xlane.f32.xlu0 %v489
    %v491 = vpop.xlane.xlu0 %490
    %v492 = vsel %vm339, %v466, 0.0
    %493 = vadd.xlane.f32.xlu0 %v492
    %v494 = vpop.xlane.xlu0 %493
    %v495 = vrcp.pop 32.0
    %v496 = vmul.f32 %v473, %v495
    %v497 = vmul.f32 %v476, %v495
    %v498 = vmul.f32 %v479, %v495
    %v499 = vmul.f32 %v482, %v495
    %v500 = vmul.f32 %v485, %v495
    %v501 = vmul.f32 %v488, %v495
    %v502 = vmul.f32 %v491, %v495
    %v503 = vmul.f32 %v494, %v495
    %v504 = vsub.f32 %v431, %v496
    %v505 = vsub.f32 %v436, %v497
    %v506 = vsub.f32 %v441, %v498
    %v507 = vsub.f32 %v446, %v499
    %v508 = vsub.f32 %v451, %v500
    %v509 = vsub.f32 %v456, %v501
    %v510 = vsub.f32 %v461, %v502
    %v511 = vsub.f32 %v466, %v503
    %v512 = vmul.f32 %v504, %v504
    %v513 = vmul.f32 %v505, %v505
    %v514 = vmul.f32 %v506, %v506
    %v515 = vmul.f32 %v507, %v507
    %v516 = vmul.f32 %v508, %v508
    %v517 = vmul.f32 %v509, %v509
    %v518 = vmul.f32 %v510, %v510
    %v519 = vmul.f32 %v511, %v511
    %v520 = vsel %vm339, %v512, 0.0
    %521 = vadd.xlane.f32.xlu0 %v520
    %v522 = vpop.xlane.xlu0 %521
    %v523 = vsel %vm339, %v513, 0.0
    %524 = vadd.xlane.f32.xlu0 %v523
    %v525 = vpop.xlane.xlu0 %524
    %v526 = vsel %vm339, %v514, 0.0
    %527 = vadd.xlane.f32.xlu0 %v526
    %v528 = vpop.xlane.xlu0 %527
    %v529 = vsel %vm339, %v515, 0.0
    %530 = vadd.xlane.f32.xlu0 %v529
    %v531 = vpop.xlane.xlu0 %530
    %v532 = vsel %vm339, %v516, 0.0
    %533 = vadd.xlane.f32.xlu0 %v532
    %v534 = vpop.xlane.xlu0 %533
    %v535 = vsel %vm339, %v517, 0.0
    %536 = vadd.xlane.f32.xlu0 %v535
    %v537 = vpop.xlane.xlu0 %536
    %v538 = vsel %vm339, %v518, 0.0
    %539 = vadd.xlane.f32.xlu0 %v538
    %v540 = vpop.xlane.xlu0 %539
    %v541 = vsel %vm339, %v519, 0.0
    %542 = vadd.xlane.f32.xlu0 %v541
    %v543 = vpop.xlane.xlu0 %542
    %v544 = vmul.f32 %v522, %v495
    %v545 = vmul.f32 %v525, %v495
    %v546 = vmul.f32 %v528, %v495
    %v547 = vmul.f32 %v531, %v495
    %v548 = vmul.f32 %v534, %v495
    %v549 = vmul.f32 %v537, %v495
    %v550 = vmul.f32 %v540, %v495
    %v551 = vmul.f32 %v543, %v495
    %v552 = vadd.f32 %v544, 1e-05
    %v553 = vadd.f32 %v545, 1e-05
    %v554 = vadd.f32 %v546, 1e-05
    %v555 = vadd.f32 %v547, 1e-05
    %v556 = vadd.f32 %v548, 1e-05
    %v557 = vadd.f32 %v549, 1e-05
    %v558 = vadd.f32 %v550, 1e-05
    %v559 = vadd.f32 %v551, 1e-05
    %v560 = vrsqrt.pop %v552
    %v561 = vrsqrt.pop %v553
    %v562 = vrsqrt.pop %v554
    %v563 = vrsqrt.pop %v555
    %v564 = vrsqrt.pop %v556
    %v565 = vrsqrt.pop %v557
    %v566 = vrsqrt.pop %v558
    %v567 = vrsqrt.pop %v559
    %v568 = vmul.f32 %v504, %v560
    %v569 = vmul.f32 %v505, %v561
    %v570 = vmul.f32 %v506, %v562
    %v571 = vmul.f32 %v507, %v563
    %v572 = vmul.f32 %v508, %v564
    %v573 = vmul.f32 %v509, %v565
    %v574 = vmul.f32 %v510, %v566
    %v575 = vmul.f32 %v511, %v567
    %v577 = vlaneseq
    %v578 = vshrl.u32 %v577, 7
    %v579 = vsub.s32 0, %v578
    %v580 = vrot.slane %v469, %v579
    %v582 = vmul.f32 %v568, %v580
    %v583 = vmul.f32 %v569, %v580
    %v584 = vmul.f32 %v570, %v580
    %v585 = vmul.f32 %v571, %v580
    %v586 = vmul.f32 %v572, %v580
    %v587 = vmul.f32 %v573, %v580
    %v588 = vmul.f32 %v574, %v580
    %v589 = vmul.f32 %v575, %v580
    %v591 = vlaneseq
    %v592 = vshrl.u32 %v591, 7
    %v593 = vsub.s32 0, %v592
    %v594 = vrot.slane %v470, %v593
    %v596 = vadd.f32 %v582, %v594
    %v597 = vadd.f32 %v583, %v594
    %v598 = vadd.f32 %v584, %v594
    %v599 = vadd.f32 %v585, %v594
    %v600 = vadd.f32 %v586, %v594
    %v601 = vadd.f32 %v587, %v594
    %v602 = vadd.f32 %v588, %v594
    %v603 = vadd.f32 %v589, %v594
    %v604 = vmax.f32 %v596, 0.0
    %v605 = vmax.f32 %v597, 0.0
    %v606 = vmax.f32 %v598, 0.0
    %v607 = vmax.f32 %v599, 0.0
    %v608 = vmax.f32 %v600, 0.0
    %v609 = vmax.f32 %v601, 0.0
    %v610 = vmax.f32 %v602, 0.0
    %v611 = vmax.f32 %v603, 0.0
    %v612 = vld [vmem:[%s7] sm:$0xff]
    %v613 = vld [vmem:[%s7 + $0x8] sm:$0xff]
    %v614 = vld [vmem:[%s7 + $0x10] sm:$0xff]
    %v615 = vld [vmem:[%s7 + $0x18] sm:$0xff]
    %v616 = vld [vmem:[#allocation12] sm:$0x1]
    %v618 = vlaneseq
    %v619 = vshrl.u32 %v618, 7
    %v620 = vsub.s32 0, %v619
    %v621 = vrot.slane %v616, %v620
    %v624 = vsel %vm339, %v604, 0
    %v627 = vsel %vm339, %v605, 0
    %v630 = vsel %vm339, %v606, 0
    %v633 = vsel %vm339, %v607, 0
    %v636 = vsel %vm339, %v608, 0
    %v639 = vsel %vm339, %v609, 0
    %v642 = vsel %vm339, %v610, 0
    %v645 = vsel %vm339, %v611, 0
    %647 = vmatprep.subr.mxu0 0.0
    %648 = vmatpush1.msra.mxu0 0.0
    %649 = vmatprep.subr.mxu0 0.0
    %650 = vmatpush1.msra.mxu0 0.0
    %651 = vmatprep.subr.mxu0 0.0
    %652 = vmatpush1.msra.mxu0 0.0
    %653 = vmatprep.subr.mxu0 0.0
    %654 = vmatpush1.msra.mxu0 0.0
    %655 = vmatprep.subr.mxu0 0.0
    %656 = vmatpush1.msra.mxu0 0.0
    %657 = vmatprep.subr.mxu0 0.0
    %658 = vmatpush1.msra.mxu0 0.0
    %659 = vmatprep.subr.mxu0 0.0
    %660 = vmatpush1.msra.mxu0 0.0
    %661 = vmatprep.subr.mxu0 0.0
    %662 = vmatpush1.msra.mxu0 0.0
    %663 = vmatprep.subr.mxu0 0.0
    %664 = vmatpush1.msra.mxu0 0.0
    %665 = vmatprep.subr.mxu0 0.0
    %666 = vmatpush1.msra.mxu0 0.0
    %667 = vmatprep.subr.mxu0 0.0
    %668 = vmatpush1.msra.mxu0 0.0
    %669 = vmatprep.subr.mxu0 0.0
    %670 = vmatpush1.msra.mxu0 0.0
    %671 = vmatprep.subr.mxu0 0.0
    %672 = vmatpush1.msra.mxu0 %v615
    %673 = vmatprep.subr.mxu0 0.0
    %674 = vmatpush1.msra.mxu0 %v614
    %675 = vmatprep.subr.mxu0 0.0
    %676 = vmatpush1.msra.mxu0 %v613
    %677 = vmatprep.subr.mxu0 0.0
    %678 = vmatpush1.msra.mxu0 %v612
    %679 = vmatprep.subr.mxu0 0.0
    %680 = vmatpush2.msra.mxu0 0.0
    %681 = vmatprep.subr.mxu0 0.0
    %682 = vmatpush2.msra.mxu0 0.0
    %683 = vmatprep.subr.mxu0 0.0
    %684 = vmatpush2.msra.mxu0 0.0
    %685 = vmatprep.subr.mxu0 0.0
    %686 = vmatpush2.msra.mxu0 0.0
    %687 = vmatprep.subr.mxu0 0.0
    %688 = vmatpush2.msra.mxu0 0.0
    %689 = vmatprep.subr.mxu0 0.0
    %690 = vmatpush2.msra.mxu0 0.0
    %691 = vmatprep.subr.mxu0 0.0
    %692 = vmatpush2.msra.mxu0 0.0
    %693 = vmatprep.subr.mxu0 0.0
    %694 = vmatpush2.msra.mxu0 0.0
    %695 = vmatprep.subr.mxu0 0.0
    %696 = vmatpush2.msra.mxu0 0.0
    %697 = vmatprep.subr.mxu0 0.0
    %698 = vmatpush2.msra.mxu0 0.0
    %699 = vmatprep.subr.mxu0 0.0
    %700 = vmatpush2.msra.mxu0 0.0
    %701 = vmatprep.subr.mxu0 0.0
    %702 = vmatpush2.msra.mxu0 0.0
    %703 = vmatprep.subr.mxu0 0.0
    %704 = vmatpush2.msra.mxu0 0.0
    %705 = vmatprep.subr.mxu0 0.0
    %706 = vmatpush2.msra.mxu0 0.0
    %707 = vmatprep.subr.mxu0 0.0
    %708 = vmatpush2.msra.mxu0 0.0
    %709 = vmatprep.subr.mxu0 0.0
    %710 = vmatpush2.msra.mxu0 0.0
    %711 = vmatprep.mubr.f32.mxu0 0.0
    %712 = vmatmul.mubr.f32.gmra.mxu0 %v624
    %v713 = vpop.f32.mrf.mxu0
    %v714 = vadd.f32 %v621, %v713
    %v715 = vpop.f32.mrf.mxu0
    %716 = vmatprep.mubr.f32.mxu0 0.0
    %717 = vmatmul.mubr.f32.gmra.mxu0 %v627
    %v718 = vpop.f32.mrf.mxu0
    %v719 = vadd.f32 %v621, %v718
    %v720 = vpop.f32.mrf.mxu0
    %721 = vmatprep.mubr.f32.mxu0 0.0
    %722 = vmatmul.mubr.f32.gmra.mxu0 %v630
    %v723 = vpop.f32.mrf.mxu0
    %v724 = vadd.f32 %v621, %v723
    %v725 = vpop.f32.mrf.mxu0
    %726 = vmatprep.mubr.f32.mxu0 0.0
    %727 = vmatmul.mubr.f32.gmra.mxu0 %v633
    %v728 = vpop.f32.mrf.mxu0
    %v729 = vadd.f32 %v621, %v728
    %v730 = vpop.f32.mrf.mxu0
    %731 = vmatprep.mubr.f32.mxu0 0.0
    %732 = vmatmul.mubr.f32.gmra.mxu0 %v636
    %v733 = vpop.f32.mrf.mxu0
    %v734 = vadd.f32 %v621, %v733
    %v735 = vpop.f32.mrf.mxu0
    %736 = vmatprep.mubr.f32.mxu0 0.0
    %737 = vmatmul.mubr.f32.gmra.mxu0 %v639
    %v738 = vpop.f32.mrf.mxu0
    %v739 = vadd.f32 %v621, %v738
    %v740 = vpop.f32.mrf.mxu0
    %741 = vmatprep.mubr.f32.mxu0 0.0
    %742 = vmatmul.mubr.f32.gmra.mxu0 %v642
    %v743 = vpop.f32.mrf.mxu0
    %v744 = vadd.f32 %v621, %v743
    %v745 = vpop.f32.mrf.mxu0
    %746 = vmatprep.mubr.f32.mxu0 0.0
    %747 = vmatmul.mubr.f32.gmra.mxu0 %v645
    %v748 = vpop.f32.mrf.mxu0
    %v749 = vadd.f32 %v621, %v748
    %v750 = vpop.f32.mrf.mxu0
    %751 = vdwg.mxu0
    %760 = vrot.lane.b32.xlu0 %v714, 96
    %v761 = vpop.permute.xlu0 %760
    %762 = vrot.lane.b32.xlu0 %v719, 96
    %v763 = vpop.permute.xlu0 %762
    %764 = vrot.lane.b32.xlu0 %v724, 96
    %v765 = vpop.permute.xlu0 %764
    %766 = vrot.lane.b32.xlu0 %v729, 96
    %v767 = vpop.permute.xlu0 %766
    %768 = vrot.lane.b32.xlu0 %v734, 96
    %v769 = vpop.permute.xlu0 %768
    %770 = vrot.lane.b32.xlu0 %v739, 96
    %v771 = vpop.permute.xlu0 %770
    %772 = vrot.lane.b32.xlu0 %v744, 96
    %v773 = vpop.permute.xlu0 %772
    %774 = vrot.lane.b32.xlu0 %v749, 96
    %v775 = vpop.permute.xlu0 %774
    %vm776 = vcmask 64512
    %v777 = vsel %vm776, %v714, 0
    %v779 = vsel %vm776, %v719, 0
    %v781 = vsel %vm776, %v724, 0
    %v783 = vsel %vm776, %v729, 0
    %v785 = vsel %vm776, %v734, 0
    %v787 = vsel %vm776, %v739, 0
    %v789 = vsel %vm776, %v744, 0
    %v791 = vsel %vm776, %v749, 0
    %v793 = vsel %vm776, %v761, 0
    %v795 = vsel %vm776, %v763, 0
    %v797 = vsel %vm776, %v765, 0
    %v799 = vsel %vm776, %v767, 0
    %v801 = vsel %vm776, %v769, 0
    %v803 = vsel %vm776, %v771, 0
    %v805 = vsel %vm776, %v773, 0
    %v807 = vsel %vm776, %v775, 0
    %809 = vmatprep.subr.mxu0 0.0
    %810 = vmatpush1.xpose.msra.mxu0 0.0
    %811 = vmatprep.subr.mxu0 0.0
    %812 = vmatpush1.xpose.msra.mxu0 0.0
    %813 = vmatprep.subr.mxu0 0.0
    %814 = vmatpush1.xpose.msra.mxu0 0.0
    %815 = vmatprep.subr.mxu0 0.0
    %816 = vmatpush1.xpose.msra.mxu0 0.0
    %817 = vmatprep.subr.mxu0 0.0
    %818 = vmatpush1.xpose.msra.mxu0 0.0
    %819 = vmatprep.subr.mxu0 0.0
    %820 = vmatpush1.xpose.msra.mxu0 0.0
    %821 = vmatprep.subr.mxu0 0.0
    %822 = vmatpush1.xpose.msra.mxu0 0.0
    %823 = vmatprep.subr.mxu0 0.0
    %824 = vmatpush1.xpose.msra.mxu0 0.0
    %825 = vmatprep.subr.mxu0 0.0
    %826 = vmatpush1.xpose.msra.mxu0 %v807
    %827 = vmatprep.subr.mxu0 0.0
    %828 = vmatpush1.xpose.msra.mxu0 %v805
    %829 = vmatprep.subr.mxu0 0.0
    %830 = vmatpush1.xpose.msra.mxu0 %v803
    %831 = vmatprep.subr.mxu0 0.0
    %832 = vmatpush1.xpose.msra.mxu0 %v801
    %833 = vmatprep.subr.mxu0 0.0
    %834 = vmatpush1.xpose.msra.mxu0 %v799
    %835 = vmatprep.subr.mxu0 0.0
    %836 = vmatpush1.xpose.msra.mxu0 %v797
    %837 = vmatprep.subr.mxu0 0.0
    %838 = vmatpush1.xpose.msra.mxu0 %v795
    %839 = vmatprep.subr.mxu0 0.0
    %840 = vmatpush1.xpose.msra.mxu0 %v793
    %841 = vmatprep.subr.mxu0 0.0
    %842 = vmatpush2.xpose.msra.mxu0 0.0
    %843 = vmatprep.subr.mxu0 0.0
    %844 = vmatpush2.xpose.msra.mxu0 0.0
    %845 = vmatprep.subr.mxu0 0.0
    %846 = vmatpush2.xpose.msra.mxu0 0.0
    %847 = vmatprep.subr.mxu0 0.0
    %848 = vmatpush2.xpose.msra.mxu0 0.0
    %849 = vmatprep.subr.mxu0 0.0
    %850 = vmatpush2.xpose.msra.mxu0 0.0
    %851 = vmatprep.subr.mxu0 0.0
    %852 = vmatpush2.xpose.msra.mxu0 0.0
    %853 = vmatprep.subr.mxu0 0.0
    %854 = vmatpush2.xpose.msra.mxu0 0.0
    %855 = vmatprep.subr.mxu0 0.0
    %856 = vmatpush2.xpose.msra.mxu0 0.0
    %857 = vmatprep.subr.mxu0 0.0
    %858 = vmatpush2.xpose.msra.mxu0 0.0
    %859 = vmatprep.subr.mxu0 0.0
    %860 = vmatpush2.xpose.msra.mxu0 0.0
    %861 = vmatprep.subr.mxu0 0.0
    %862 = vmatpush2.xpose.msra.mxu0 0.0
    %863 = vmatprep.subr.mxu0 0.0
    %864 = vmatpush2.xpose.msra.mxu0 0.0
    %865 = vmatprep.subr.mxu0 0.0
    %866 = vmatpush2.xpose.msra.mxu0 0.0
    %867 = vmatprep.subr.mxu0 0.0
    %868 = vmatpush2.xpose.msra.mxu0 0.0
    %869 = vmatprep.subr.mxu0 0.0
    %870 = vmatpush2.xpose.msra.mxu0 0.0
    %871 = vmatprep.subr.mxu0 0.0
    %872 = vmatpush2.xpose.msra.mxu0 0.0
    %873 = vmatprep.mubr.f32.mxu0 0.0
    %874 = vmatmul.mubr.f32.gmra.mxu0 %v777
    %v875 = vpop.f32.mrf.mxu0
    %v876 = vadd.f32 0.0, %v875
    %v877 = vpop.f32.mrf.mxu0
    %878 = vmatprep.mubr.f32.mxu0 0.0
    %879 = vmatmul.mubr.f32.gmra.mxu0 %v779
    %v880 = vpop.f32.mrf.mxu0
    %v881 = vadd.f32 0.0, %v880
    %v882 = vpop.f32.mrf.mxu0
    %883 = vmatprep.mubr.f32.mxu0 0.0
    %884 = vmatmul.mubr.f32.gmra.mxu0 %v781
    %v885 = vpop.f32.mrf.mxu0
    %v886 = vadd.f32 0.0, %v885
    %v887 = vpop.f32.mrf.mxu0
    %888 = vmatprep.mubr.f32.mxu0 0.0
    %889 = vmatmul.mubr.f32.gmra.mxu0 %v783
    %v890 = vpop.f32.mrf.mxu0
    %v891 = vadd.f32 0.0, %v890
    %v892 = vpop.f32.mrf.mxu0
    %893 = vmatprep.mubr.f32.mxu0 0.0
    %894 = vmatmul.mubr.f32.gmra.mxu0 %v785
    %v895 = vpop.f32.mrf.mxu0
    %v896 = vadd.f32 0.0, %v895
    %v897 = vpop.f32.mrf.mxu0
    %898 = vmatprep.mubr.f32.mxu0 0.0
    %899 = vmatmul.mubr.f32.gmra.mxu0 %v787
    %v900 = vpop.f32.mrf.mxu0
    %v901 = vadd.f32 0.0, %v900
    %v902 = vpop.f32.mrf.mxu0
    %903 = vmatprep.mubr.f32.mxu0 0.0
    %904 = vmatmul.mubr.f32.gmra.mxu0 %v789
    %v905 = vpop.f32.mrf.mxu0
    %v906 = vadd.f32 0.0, %v905
    %v907 = vpop.f32.mrf.mxu0
    %908 = vmatprep.mubr.f32.mxu0 0.0
    %909 = vmatmul.mubr.f32.gmra.mxu0 %v791
    %v910 = vpop.f32.mrf.mxu0
    %v911 = vadd.f32 0.0, %v910
    %v912 = vpop.f32.mrf.mxu0
    %913 = vdwg.mxu0
    %v914 = vmul.f32 %v876, 0.35355338
    %v915 = vmul.f32 %v881, 0.35355338
    %v916 = vmul.f32 %v886, 0.35355338
    %v917 = vmul.f32 %v891, 0.35355338
    %v918 = vmul.f32 %v896, 0.35355338
    %v919 = vmul.f32 %v901, 0.35355338
    %v920 = vmul.f32 %v906, 0.35355338
    %v921 = vmul.f32 %v911, 0.35355338
    %vm922 = vcmask 523264
    %v923 = vsel %vm922, %v914, -inf
    %924 = vmax.xlane.f32.xlu0 %v923
    %v925 = vpop.xlane.xlu0 %924
    %v926 = vsel %vm922, %v915, -inf
    %927 = vmax.xlane.f32.xlu0 %v926
    %v928 = vpop.xlane.xlu0 %927
    %v929 = vsel %vm922, %v916, -inf
    %930 = vmax.xlane.f32.xlu0 %v929
    %v931 = vpop.xlane.xlu0 %930
    %v932 = vsel %vm922, %v917, -inf
    %933 = vmax.xlane.f32.xlu0 %v932
    %v934 = vpop.xlane.xlu0 %933
    %v935 = vsel %vm922, %v918, -inf
    %936 = vmax.xlane.f32.xlu0 %v935
    %v937 = vpop.xlane.xlu0 %936
    %v938 = vsel %vm922, %v919, -inf
    %939 = vmax.xlane.f32.xlu0 %v938
    %v940 = vpop.xlane.xlu0 %939
    %v941 = vsel %vm922, %v920, -inf
    %942 = vmax.xlane.f32.xlu0 %v941
    %v943 = vpop.xlane.xlu0 %942
    %v944 = vsel %vm922, %v921, -inf
    %945 = vmax.xlane.f32.xlu0 %v944
    %v946 = vpop.xlane.xlu0 %945
    %v947 = vsub.f32 %v914, %v925
    %v948 = vsub.f32 %v915, %v928
    %v949 = vsub.f32 %v916, %v931
    %v950 = vsub.f32 %v917, %v934
    %v951 = vsub.f32 %v918, %v937
    %v952 = vsub.f32 %v919, %v940
    %v953 = vsub.f32 %v920, %v943
    %v954 = vsub.f32 %v921, %v946
    %v955 = vmul.f32 %v947, 1.442695
    %v956 = vpow.pop %v955
    %v957 = vmul.f32 %v948, 1.442695
    %v958 = vpow.pop %v957
    %v959 = vmul.f32 %v949, 1.442695
    %v960 = vpow.pop %v959
    %v961 = vmul.f32 %v950, 1.442695
    %v962 = vpow.pop %v961
    %v963 = vmul.f32 %v951, 1.442695
    %v964 = vpow.pop %v963
    %v965 = vmul.f32 %v952, 1.442695
    %v966 = vpow.pop %v965
    %v967 = vmul.f32 %v953, 1.442695
    %v968 = vpow.pop %v967
    %v969 = vmul.f32 %v954, 1.442695
    %v970 = vpow.pop %v969
    %v971 = vsel %vm922, %v956, 0.0
    %972 = vadd.xlane.f32.xlu0 %v971
    %v973 = vpop.xlane.xlu0 %972
    %v974 = vsel %vm922, %v958, 0.0
    %975 = vadd.xlane.f32.xlu0 %v974
    %v976 = vpop.xlane.xlu0 %975
    %v977 = vsel %vm922, %v960, 0.0
    %978 = vadd.xlane.f32.xlu0 %v977
    %v979 = vpop.xlane.xlu0 %978
    %v980 = vsel %vm922, %v962, 0.0
    %981 = vadd.xlane.f32.xlu0 %v980
    %v982 = vpop.xlane.xlu0 %981
    %v983 = vsel %vm922, %v964, 0.0
    %984 = vadd.xlane.f32.xlu0 %v983
    %v985 = vpop.xlane.xlu0 %984
    %v986 = vsel %vm922, %v966, 0.0
    %987 = vadd.xlane.f32.xlu0 %v986
    %v988 = vpop.xlane.xlu0 %987
    %v989 = vsel %vm922, %v968, 0.0
    %990 = vadd.xlane.f32.xlu0 %v989
    %v991 = vpop.xlane.xlu0 %990
    %v992 = vsel %vm922, %v970, 0.0
    %993 = vadd.xlane.f32.xlu0 %v992
    %v994 = vpop.xlane.xlu0 %993
    %v995 = vrcp.pop %v973
    %v996 = vrcp.pop %v976
    %v997 = vrcp.pop %v979
    %v998 = vrcp.pop %v982
    %v999 = vrcp.pop %v985
    %v1000 = vrcp.pop %v988
    %v1001 = vrcp.pop %v991
    %v1002 = vrcp.pop %v994
    %v1003 = vmul.f32 %v956, %v995
    %v1004 = vmul.f32 %v958, %v996
    %v1005 = vmul.f32 %v960, %v997
    %v1006 = vmul.f32 %v962, %v998
    %v1007 = vmul.f32 %v964, %v999
    %v1008 = vmul.f32 %v966, %v1000
    %v1009 = vmul.f32 %v968, %v1001
    %v1010 = vmul.f32 %v970, %v1002
    %1011 = vrot.lane.b32.xlu0 %v714, 64
    %v1012 = vpop.permute.xlu0 %1011
    %1013 = vrot.lane.b32.xlu0 %v719, 64
    %v1014 = vpop.permute.xlu0 %1013
    %1015 = vrot.lane.b32.xlu0 %v724, 64
    %v1016 = vpop.permute.xlu0 %1015
    %1017 = vrot.lane.b32.xlu0 %v729, 64
    %v1018 = vpop.permute.xlu0 %1017
    %1019 = vrot.lane.b32.xlu0 %v734, 64
    %v1020 = vpop.permute.xlu0 %1019
    %1021 = vrot.lane.b32.xlu0 %v739, 64
    %v1022 = vpop.permute.xlu0 %1021
    %1023 = vrot.lane.b32.xlu0 %v744, 64
    %v1024 = vpop.permute.xlu0 %1023
    %1025 = vrot.lane.b32.xlu0 %v749, 64
    %v1026 = vpop.permute.xlu0 %1025
    %v1036 = vsel %vm922, %v1003, 0
    %v1039 = vsel %vm922, %v1004, 0
    %v1042 = vsel %vm922, %v1005, 0
    %v1045 = vsel %vm922, %v1006, 0
    %v1048 = vsel %vm922, %v1007, 0
    %v1051 = vsel %vm922, %v1008, 0
    %v1054 = vsel %vm922, %v1009, 0
    %v1057 = vsel %vm922, %v1010, 0
    %1059 = vmatprep.subr.mxu0 0.0
    %1060 = vmatpush1.msra.mxu0 0.0
    %1061 = vmatprep.subr.mxu0 0.0
    %1062 = vmatpush1.msra.mxu0 0.0
    %1063 = vmatprep.subr.mxu0 0.0
    %1064 = vmatpush1.msra.mxu0 0.0
    %1065 = vmatprep.subr.mxu0 0.0
    %1066 = vmatpush1.msra.mxu0 0.0
    %1067 = vmatprep.subr.mxu0 0.0
    %1068 = vmatpush1.msra.mxu0 0.0
    %1069 = vmatprep.subr.mxu0 0.0
    %1070 = vmatpush1.msra.mxu0 0.0
    %1071 = vmatprep.subr.mxu0 0.0
    %1072 = vmatpush1.msra.mxu0 0.0
    %1073 = vmatprep.subr.mxu0 0.0
    %1074 = vmatpush1.msra.mxu0 0.0
    %1075 = vmatprep.subr.mxu0 0.0
    %1076 = vmatpush1.msra.mxu0 %v1026
    %1077 = vmatprep.subr.mxu0 0.0
    %1078 = vmatpush1.msra.mxu0 %v1024
    %1079 = vmatprep.subr.mxu0 0.0
    %1080 = vmatpush1.msra.mxu0 %v1022
    %1081 = vmatprep.subr.mxu0 0.0
    %1082 = vmatpush1.msra.mxu0 %v1020
    %1083 = vmatprep.subr.mxu0 0.0
    %1084 = vmatpush1.msra.mxu0 %v1018
    %1085 = vmatprep.subr.mxu0 0.0
    %1086 = vmatpush1.msra.mxu0 %v1016
    %1087 = vmatprep.subr.mxu0 0.0
    %1088 = vmatpush1.msra.mxu0 %v1014
    %1089 = vmatprep.subr.mxu0 0.0
    %1090 = vmatpush1.msra.mxu0 %v1012
    %1091 = vmatprep.subr.mxu0 0.0
    %1092 = vmatpush2.msra.mxu0 0.0
    %1093 = vmatprep.subr.mxu0 0.0
    %1094 = vmatpush2.msra.mxu0 0.0
    %1095 = vmatprep.subr.mxu0 0.0
    %1096 = vmatpush2.msra.mxu0 0.0
    %1097 = vmatprep.subr.mxu0 0.0
    %1098 = vmatpush2.msra.mxu0 0.0
    %1099 = vmatprep.subr.mxu0 0.0
    %1100 = vmatpush2.msra.mxu0 0.0
    %1101 = vmatprep.subr.mxu0 0.0
    %1102 = vmatpush2.msra.mxu0 0.0
    %1103 = vmatprep.subr.mxu0 0.0
    %1104 = vmatpush2.msra.mxu0 0.0
    %1105 = vmatprep.subr.mxu0 0.0
    %1106 = vmatpush2.msra.mxu0 0.0
    %1107 = vmatprep.subr.mxu0 0.0
    %1108 = vmatpush2.msra.mxu0 0.0
    %1109 = vmatprep.subr.mxu0 0.0
    %1110 = vmatpush2.msra.mxu0 0.0
    %1111 = vmatprep.subr.mxu0 0.0
    %1112 = vmatpush2.msra.mxu0 0.0
    %1113 = vmatprep.subr.mxu0 0.0
    %1114 = vmatpush2.msra.mxu0 0.0
    %1115 = vmatprep.subr.mxu0 0.0
    %1116 = vmatpush2.msra.mxu0 0.0
    %1117 = vmatprep.subr.mxu0 0.0
    %1118 = vmatpush2.msra.mxu0 0.0
    %1119 = vmatprep.subr.mxu0 0.0
    %1120 = vmatpush2.msra.mxu0 0.0
    %1121 = vmatprep.subr.mxu0 0.0
    %1122 = vmatpush2.msra.mxu0 0.0
    %1123 = vmatprep.mubr.f32.mxu0 0.0
    %1124 = vmatmul.mubr.f32.gmra.mxu0 %v1036
    %v1125 = vpop.f32.mrf.mxu0
    %v1126 = vadd.f32 0.0, %v1125
    %v1127 = vpop.f32.mrf.mxu0
    %1128 = vmatprep.mubr.f32.mxu0 0.0
    %1129 = vmatmul.mubr.f32.gmra.mxu0 %v1039
    %v1130 = vpop.f32.mrf.mxu0
    %v1131 = vadd.f32 0.0, %v1130
    %v1132 = vpop.f32.mrf.mxu0
    %1133 = vmatprep.mubr.f32.mxu0 0.0
    %1134 = vmatmul.mubr.f32.gmra.mxu0 %v1042
    %v1135 = vpop.f32.mrf.mxu0
    %v1136 = vadd.f32 0.0, %v1135
    %v1137 = vpop.f32.mrf.mxu0
    %1138 = vmatprep.mubr.f32.mxu0 0.0
    %1139 = vmatmul.mubr.f32.gmra.mxu0 %v1045
    %v1140 = vpop.f32.mrf.mxu0
    %v1141 = vadd.f32 0.0, %v1140
    %v1142 = vpop.f32.mrf.mxu0
    %1143 = vmatprep.mubr.f32.mxu0 0.0
    %1144 = vmatmul.mubr.f32.gmra.mxu0 %v1048
    %v1145 = vpop.f32.mrf.mxu0
    %v1146 = vadd.f32 0.0, %v1145
    %v1147 = vpop.f32.mrf.mxu0
    %1148 = vmatprep.mubr.f32.mxu0 0.0
    %1149 = vmatmul.mubr.f32.gmra.mxu0 %v1051
    %v1150 = vpop.f32.mrf.mxu0
    %v1151 = vadd.f32 0.0, %v1150
    %v1152 = vpop.f32.mrf.mxu0
    %1153 = vmatprep.mubr.f32.mxu0 0.0
    %1154 = vmatmul.mubr.f32.gmra.mxu0 %v1054
    %v1155 = vpop.f32.mrf.mxu0
    %v1156 = vadd.f32 0.0, %v1155
    %v1157 = vpop.f32.mrf.mxu0
    %1158 = vmatprep.mubr.f32.mxu0 0.0
    %1159 = vmatmul.mubr.f32.gmra.mxu0 %v1057
    %v1160 = vpop.f32.mrf.mxu0
    %v1161 = vadd.f32 0.0, %v1160
    %v1162 = vpop.f32.mrf.mxu0
    %1163 = vdwg.mxu0
    %1164 = vst.msk [vmem:[#allocation2] sm:$0xff] %vm776, %v1126
    %1165 = vst.msk [vmem:[#allocation2 + $0x8] sm:$0xff] %vm776, %v1131
    %1166 = vst.msk [vmem:[#allocation2 + $0x10] sm:$0xff] %vm776, %v1136
    %1167 = vst.msk [vmem:[#allocation2 + $0x18] sm:$0xff] %vm776, %v1141
    %1168 = vst.msk [vmem:[#allocation2 + $0x20] sm:$0xff] %vm776, %v1146
    %1169 = vst.msk [vmem:[#allocation2 + $0x28] sm:$0xff] %vm776, %v1151
    %1170 = vst.msk [vmem:[#allocation2 + $0x30] sm:$0xff] %vm776, %v1156
    %1171 = vst.msk [vmem:[#allocation2 + $0x38] sm:$0xff] %vm776, %v1161
    %1172 = vrot.lane.b32.xlu0 %v714, 120
    %v1173 = vpop.permute.xlu0 %1172
    %1174 = vrot.lane.b32.xlu0 %v719, 120
    %v1175 = vpop.permute.xlu0 %1174
    %1176 = vrot.lane.b32.xlu0 %v724, 120
    %v1177 = vpop.permute.xlu0 %1176
    %1178 = vrot.lane.b32.xlu0 %v729, 120
    %v1179 = vpop.permute.xlu0 %1178
    %1180 = vrot.lane.b32.xlu0 %v734, 120
    %v1181 = vpop.permute.xlu0 %1180
    %1182 = vrot.lane.b32.xlu0 %v739, 120
    %v1183 = vpop.permute.xlu0 %1182
    %1184 = vrot.lane.b32.xlu0 %v744, 120
    %v1185 = vpop.permute.xlu0 %1184
    %1186 = vrot.lane.b32.xlu0 %v749, 120
    %v1187 = vpop.permute.xlu0 %1186
    %1188 = vrot.lane.b32.xlu0 %v714, 88
    %v1189 = vpop.permute.xlu0 %1188
    %1190 = vrot.lane.b32.xlu0 %v719, 88
    %v1191 = vpop.permute.xlu0 %1190
    %1192 = vrot.lane.b32.xlu0 %v724, 88
    %v1193 = vpop.permute.xlu0 %1192
    %1194 = vrot.lane.b32.xlu0 %v729, 88
    %v1195 = vpop.permute.xlu0 %1194
    %1196 = vrot.lane.b32.xlu0 %v734, 88
    %v1197 = vpop.permute.xlu0 %1196
    %1198 = vrot.lane.b32.xlu0 %v739, 88
    %v1199 = vpop.permute.xlu0 %1198
    %1200 = vrot.lane.b32.xlu0 %v744, 88
    %v1201 = vpop.permute.xlu0 %1200
    %1202 = vrot.lane.b32.xlu0 %v749, 88
    %v1203 = vpop.permute.xlu0 %1202
    %v1204 = vsel %vm776, %v1173, 0
    %v1206 = vsel %vm776, %v1175, 0
    %v1208 = vsel %vm776, %v1177, 0
    %v1210 = vsel %vm776, %v1179, 0
    %v1212 = vsel %vm776, %v1181, 0
    %v1214 = vsel %vm776, %v1183, 0
    %v1216 = vsel %vm776, %v1185, 0
    %v1218 = vsel %vm776, %v1187, 0
    %v1220 = vsel %vm776, %v1189, 0
    %v1222 = vsel %vm776, %v1191, 0
    %v1224 = vsel %vm776, %v1193, 0
    %v1226 = vsel %vm776, %v1195, 0
    %v1228 = vsel %vm776, %v1197, 0
    %v1230 = vsel %vm776, %v1199, 0
    %v1232 = vsel %vm776, %v1201, 0
    %v1234 = vsel %vm776, %v1203, 0
    %1236 = vmatprep.subr.mxu0 0.0
    %1237 = vmatpush1.xpose.msra.mxu0 0.0
    %1238 = vmatprep.subr.mxu0 0.0
    %1239 = vmatpush1.xpose.msra.mxu0 0.0
    %1240 = vmatprep.subr.mxu0 0.0
    %1241 = vmatpush1.xpose.msra.mxu0 0.0
    %1242 = vmatprep.subr.mxu0 0.0
    %1243 = vmatpush1.xpose.msra.mxu0 0.0
    %1244 = vmatprep.subr.mxu0 0.0
    %1245 = vmatpush1.xpose.msra.mxu0 0.0
    %1246 = vmatprep.subr.mxu0 0.0
    %1247 = vmatpush1.xpose.msra.mxu0 0.0
    %1248 = vmatprep.subr.mxu0 0.0
    %1249 = vmatpush1.xpose.msra.mxu0 0.0
    %1250 = vmatprep.subr.mxu0 0.0
    %1251 = vmatpush1.xpose.msra.mxu0 0.0
    %1252 = vmatprep.subr.mxu0 0.0
    %1253 = vmatpush1.xpose.msra.mxu0 %v1234
    %1254 = vmatprep.subr.mxu0 0.0
    %1255 = vmatpush1.xpose.msra.mxu0 %v1232
    %1256 = vmatprep.subr.mxu0 0.0
    %1257 = vmatpush1.xpose.msra.mxu0 %v1230
    %1258 = vmatprep.subr.mxu0 0.0
    %1259 = vmatpush1.xpose.msra.mxu0 %v1228
    %1260 = vmatprep.subr.mxu0 0.0
    %1261 = vmatpush1.xpose.msra.mxu0 %v1226
    %1262 = vmatprep.subr.mxu0 0.0
    %1263 = vmatpush1.xpose.msra.mxu0 %v1224
    %1264 = vmatprep.subr.mxu0 0.0
    %1265 = vmatpush1.xpose.msra.mxu0 %v1222
    %1266 = vmatprep.subr.mxu0 0.0
    %1267 = vmatpush1.xpose.msra.mxu0 %v1220
    %1268 = vmatprep.subr.mxu0 0.0
    %1269 = vmatpush2.xpose.msra.mxu0 0.0
    %1270 = vmatprep.subr.mxu0 0.0
    %1271 = vmatpush2.xpose.msra.mxu0 0.0
    %1272 = vmatprep.subr.mxu0 0.0
    %1273 = vmatpush2.xpose.msra.mxu0 0.0
    %1274 = vmatprep.subr.mxu0 0.0
    %1275 = vmatpush2.xpose.msra.mxu0 0.0
    %1276 = vmatprep.subr.mxu0 0.0
    %1277 = vmatpush2.xpose.msra.mxu0 0.0
    %1278 = vmatprep.subr.mxu0 0.0
    %1279 = vmatpush2.xpose.msra.mxu0 0.0
    %1280 = vmatprep.subr.mxu0 0.0
    %1281 = vmatpush2.xpose.msra.mxu0 0.0
    %1282 = vmatprep.subr.mxu0 0.0
    %1283 = vmatpush2.xpose.msra.mxu0 0.0
    %1284 = vmatprep.subr.mxu0 0.0
    %1285 = vmatpush2.xpose.msra.mxu0 0.0
    %1286 = vmatprep.subr.mxu0 0.0
    %1287 = vmatpush2.xpose.msra.mxu0 0.0
    %1288 = vmatprep.subr.mxu0 0.0
    %1289 = vmatpush2.xpose.msra.mxu0 0.0
    %1290 = vmatprep.subr.mxu0 0.0
    %1291 = vmatpush2.xpose.msra.mxu0 0.0
    %1292 = vmatprep.subr.mxu0 0.0
    %1293 = vmatpush2.xpose.msra.mxu0 0.0
    %1294 = vmatprep.subr.mxu0 0.0
    %1295 = vmatpush2.xpose.msra.mxu0 0.0
    %1296 = vmatprep.subr.mxu0 0.0
    %1297 = vmatpush2.xpose.msra.mxu0 0.0
    %1298 = vmatprep.subr.mxu0 0.0
    %1299 = vmatpush2.xpose.msra.mxu0 0.0
    %1300 = vmatprep.mubr.f32.mxu0 0.0
    %1301 = vmatmul.mubr.f32.gmra.mxu0 %v1204
    %v1302 = vpop.f32.mrf.mxu0
    %v1303 = vadd.f32 0.0, %v1302
    %v1304 = vpop.f32.mrf.mxu0
    %1305 = vmatprep.mubr.f32.mxu0 0.0
    %1306 = vmatmul.mubr.f32.gmra.mxu0 %v1206
    %v1307 = vpop.f32.mrf.mxu0
    %v1308 = vadd.f32 0.0, %v1307
    %v1309 = vpop.f32.mrf.mxu0
    %1310 = vmatprep.mubr.f32.mxu0 0.0
    %1311 = vmatmul.mubr.f32.gmra.mxu0 %v1208
    %v1312 = vpop.f32.mrf.mxu0
    %v1313 = vadd.f32 0.0, %v1312
    %v1314 = vpop.f32.mrf.mxu0
    %1315 = vmatprep.mubr.f32.mxu0 0.0
    %1316 = vmatmul.mubr.f32.gmra.mxu0 %v1210
    %v1317 = vpop.f32.mrf.mxu0
    %v1318 = vadd.f32 0.0, %v1317
    %v1319 = vpop.f32.mrf.mxu0
    %1320 = vmatprep.mubr.f32.mxu0 0.0
    %1321 = vmatmul.mubr.f32.gmra.mxu0 %v1212
    %v1322 = vpop.f32.mrf.mxu0
    %v1323 = vadd.f32 0.0, %v1322
    %v1324 = vpop.f32.mrf.mxu0
    %1325 = vmatprep.mubr.f32.mxu0 0.0
    %1326 = vmatmul.mubr.f32.gmra.mxu0 %v1214
    %v1327 = vpop.f32.mrf.mxu0
    %v1328 = vadd.f32 0.0, %v1327
    %v1329 = vpop.f32.mrf.mxu0
    %1330 = vmatprep.mubr.f32.mxu0 0.0
    %1331 = vmatmul.mubr.f32.gmra.mxu0 %v1216
    %v1332 = vpop.f32.mrf.mxu0
    %v1333 = vadd.f32 0.0, %v1332
    %v1334 = vpop.f32.mrf.mxu0
    %1335 = vmatprep.mubr.f32.mxu0 0.0
    %1336 = vmatmul.mubr.f32.gmra.mxu0 %v1218
    %v1337 = vpop.f32.mrf.mxu0
    %v1338 = vadd.f32 0.0, %v1337
    %v1339 = vpop.f32.mrf.mxu0
    %1340 = vdwg.mxu0
    %v1341 = vmul.f32 %v1303, 0.35355338
    %v1342 = vmul.f32 %v1308, 0.35355338
    %v1343 = vmul.f32 %v1313, 0.35355338
    %v1344 = vmul.f32 %v1318, 0.35355338
    %v1345 = vmul.f32 %v1323, 0.35355338
    %v1346 = vmul.f32 %v1328, 0.35355338
    %v1347 = vmul.f32 %v1333, 0.35355338
    %v1348 = vmul.f32 %v1338, 0.35355338
    %v1349 = vsel %vm922, %v1341, -inf
    %1350 = vmax.xlane.f32.xlu0 %v1349
    %v1351 = vpop.xlane.xlu0 %1350
    %v1352 = vsel %vm922, %v1342, -inf
    %1353 = vmax.xlane.f32.xlu0 %v1352
    %v1354 = vpop.xlane.xlu0 %1353
    %v1355 = vsel %vm922, %v1343, -inf
    %1356 = vmax.xlane.f32.xlu0 %v1355
    %v1357 = vpop.xlane.xlu0 %1356
    %v1358 = vsel %vm922, %v1344, -inf
    %1359 = vmax.xlane.f32.xlu0 %v1358
    %v1360 = vpop.xlane.xlu0 %1359
    %v1361 = vsel %vm922, %v1345, -inf
    %1362 = vmax.xlane.f32.xlu0 %v1361
    %v1363 = vpop.xlane.xlu0 %1362
    %v1364 = vsel %vm922, %v1346, -inf
    %1365 = vmax.xlane.f32.xlu0 %v1364
    %v1366 = vpop.xlane.xlu0 %1365
    %v1367 = vsel %vm922, %v1347, -inf
    %1368 = vmax.xlane.f32.xlu0 %v1367
    %v1369 = vpop.xlane.xlu0 %1368
    %v1370 = vsel %vm922, %v1348, -inf
    %1371 = vmax.xlane.f32.xlu0 %v1370
    %v1372 = vpop.xlane.xlu0 %1371
    %v1373 = vsub.f32 %v1341, %v1351
    %v1374 = vsub.f32 %v1342, %v1354
    %v1375 = vsub.f32 %v1343, %v1357
    %v1376 = vsub.f32 %v1344, %v1360
    %v1377 = vsub.f32 %v1345, %v1363
    %v1378 = vsub.f32 %v1346, %v1366
    %v1379 = vsub.f32 %v1347, %v1369
    %v1380 = vsub.f32 %v1348, %v1372
    %v1381 = vmul.f32 %v1373, 1.442695
    %v1382 = vpow.pop %v1381
    %v1383 = vmul.f32 %v1374, 1.442695
    %v1384 = vpow.pop %v1383
    %v1385 = vmul.f32 %v1375, 1.442695
    %v1386 = vpow.pop %v1385
    %v1387 = vmul.f32 %v1376, 1.442695
    %v1388 = vpow.pop %v1387
    %v1389 = vmul.f32 %v1377, 1.442695
    %v1390 = vpow.pop %v1389
    %v1391 = vmul.f32 %v1378, 1.442695
    %v1392 = vpow.pop %v1391
    %v1393 = vmul.f32 %v1379, 1.442695
    %v1394 = vpow.pop %v1393
    %v1395 = vmul.f32 %v1380, 1.442695
    %v1396 = vpow.pop %v1395
    %v1397 = vsel %vm922, %v1382, 0.0
    %1398 = vadd.xlane.f32.xlu0 %v1397
    %v1399 = vpop.xlane.xlu0 %1398
    %v1400 = vsel %vm922, %v1384, 0.0
    %1401 = vadd.xlane.f32.xlu0 %v1400
    %v1402 = vpop.xlane.xlu0 %1401
    %v1403 = vsel %vm922, %v1386, 0.0
    %1404 = vadd.xlane.f32.xlu0 %v1403
    %v1405 = vpop.xlane.xlu0 %1404
    %v1406 = vsel %vm922, %v1388, 0.0
    %1407 = vadd.xlane.f32.xlu0 %v1406
    %v1408 = vpop.xlane.xlu0 %1407
    %v1409 = vsel %vm922, %v1390, 0.0
    %1410 = vadd.xlane.f32.xlu0 %v1409
    %v1411 = vpop.xlane.xlu0 %1410
    %v1412 = vsel %vm922, %v1392, 0.0
    %1413 = vadd.xlane.f32.xlu0 %v1412
    %v1414 = vpop.xlane.xlu0 %1413
    %v1415 = vsel %vm922, %v1394, 0.0
    %1416 = vadd.xlane.f32.xlu0 %v1415
    %v1417 = vpop.xlane.xlu0 %1416
    %v1418 = vsel %vm922, %v1396, 0.0
    %1419 = vadd.xlane.f32.xlu0 %v1418
    %v1420 = vpop.xlane.xlu0 %1419
    %v1421 = vrcp.pop %v1399
    %v1422 = vrcp.pop %v1402
    %v1423 = vrcp.pop %v1405
    %v1424 = vrcp.pop %v1408
    %v1425 = vrcp.pop %v1411
    %v1426 = vrcp.pop %v1414
    %v1427 = vrcp.pop %v1417
    %v1428 = vrcp.pop %v1420
    %v1429 = vmul.f32 %v1382, %v1421
    %v1430 = vmul.f32 %v1384, %v1422
    %v1431 = vmul.f32 %v1386, %v1423
    %v1432 = vmul.f32 %v1388, %v1424
    %v1433 = vmul.f32 %v1390, %v1425
    %v1434 = vmul.f32 %v1392, %v1426
    %v1435 = vmul.f32 %v1394, %v1427
    %v1436 = vmul.f32 %v1396, %v1428
    %1437 = vrot.lane.b32.xlu0 %v714, 56
    %v1438 = vpop.permute.xlu0 %1437
    %1439 = vrot.lane.b32.xlu0 %v719, 56
    %v1440 = vpop.permute.xlu0 %1439
    %1441 = vrot.lane.b32.xlu0 %v724, 56
    %v1442 = vpop.permute.xlu0 %1441
    %1443 = vrot.lane.b32.xlu0 %v729, 56
    %v1444 = vpop.permute.xlu0 %1443
    %1445 = vrot.lane.b32.xlu0 %v734, 56
    %v1446 = vpop.permute.xlu0 %1445
    %1447 = vrot.lane.b32.xlu0 %v739, 56
    %v1448 = vpop.permute.xlu0 %1447
    %1449 = vrot.lane.b32.xlu0 %v744, 56
    %v1450 = vpop.permute.xlu0 %1449
    %1451 = vrot.lane.b32.xlu0 %v749, 56
    %v1452 = vpop.permute.xlu0 %1451
    %v1462 = vsel %vm922, %v1429, 0
    %v1465 = vsel %vm922, %v1430, 0
    %v1468 = vsel %vm922, %v1431, 0
    %v1471 = vsel %vm922, %v1432, 0
    %v1474 = vsel %vm922, %v1433, 0
    %v1477 = vsel %vm922, %v1434, 0
    %v1480 = vsel %vm922, %v1435, 0
    %v1483 = vsel %vm922, %v1436, 0
    %1485 = vmatprep.subr.mxu0 0.0
    %1486 = vmatpush1.msra.mxu0 0.0
    %1487 = vmatprep.subr.mxu0 0.0
    %1488 = vmatpush1.msra.mxu0 0.0
    %1489 = vmatprep.subr.mxu0 0.0
    %1490 = vmatpush1.msra.mxu0 0.0
    %1491 = vmatprep.subr.mxu0 0.0
    %1492 = vmatpush1.msra.mxu0 0.0
    %1493 = vmatprep.subr.mxu0 0.0
    %1494 = vmatpush1.msra.mxu0 0.0
    %1495 = vmatprep.subr.mxu0 0.0
    %1496 = vmatpush1.msra.mxu0 0.0
    %1497 = vmatprep.subr.mxu0 0.0
    %1498 = vmatpush1.msra.mxu0 0.0
    %1499 = vmatprep.subr.mxu0 0.0
    %1500 = vmatpush1.msra.mxu0 0.0
    %1501 = vmatprep.subr.mxu0 0.0
    %1502 = vmatpush1.msra.mxu0 %v1452
    %1503 = vmatprep.subr.mxu0 0.0
    %1504 = vmatpush1.msra.mxu0 %v1450
    %1505 = vmatprep.subr.mxu0 0.0
    %1506 = vmatpush1.msra.mxu0 %v1448
    %1507 = vmatprep.subr.mxu0 0.0
    %1508 = vmatpush1.msra.mxu0 %v1446
    %1509 = vmatprep.subr.mxu0 0.0
    %1510 = vmatpush1.msra.mxu0 %v1444
    %1511 = vmatprep.subr.mxu0 0.0
    %1512 = vmatpush1.msra.mxu0 %v1442
    %1513 = vmatprep.subr.mxu0 0.0
    %1514 = vmatpush1.msra.mxu0 %v1440
    %1515 = vmatprep.subr.mxu0 0.0
    %1516 = vmatpush1.msra.mxu0 %v1438
    %1517 = vmatprep.subr.mxu0 0.0
    %1518 = vmatpush2.msra.mxu0 0.0
    %1519 = vmatprep.subr.mxu0 0.0
    %1520 = vmatpush2.msra.mxu0 0.0
    %1521 = vmatprep.subr.mxu0 0.0
    %1522 = vmatpush2.msra.mxu0 0.0
    %1523 = vmatprep.subr.mxu0 0.0
    %1524 = vmatpush2.msra.mxu0 0.0
    %1525 = vmatprep.subr.mxu0 0.0
    %1526 = vmatpush2.msra.mxu0 0.0
    %1527 = vmatprep.subr.mxu0 0.0
    %1528 = vmatpush2.msra.mxu0 0.0
    %1529 = vmatprep.subr.mxu0 0.0
    %1530 = vmatpush2.msra.mxu0 0.0
    %1531 = vmatprep.subr.mxu0 0.0
    %1532 = vmatpush2.msra.mxu0 0.0
    %1533 = vmatprep.subr.mxu0 0.0
    %1534 = vmatpush2.msra.mxu0 0.0
    %1535 = vmatprep.subr.mxu0 0.0
    %1536 = vmatpush2.msra.mxu0 0.0
    %1537 = vmatprep.subr.mxu0 0.0
    %1538 = vmatpush2.msra.mxu0 0.0
    %1539 = vmatprep.subr.mxu0 0.0
    %1540 = vmatpush2.msra.mxu0 0.0
    %1541 = vmatprep.subr.mxu0 0.0
    %1542 = vmatpush2.msra.mxu0 0.0
    %1543 = vmatprep.subr.mxu0 0.0
    %1544 = vmatpush2.msra.mxu0 0.0
    %1545 = vmatprep.subr.mxu0 0.0
    %1546 = vmatpush2.msra.mxu0 0.0
    %1547 = vmatprep.subr.mxu0 0.0
    %1548 = vmatpush2.msra.mxu0 0.0
    %1549 = vmatprep.mubr.f32.mxu0 0.0
    %1550 = vmatmul.mubr.f32.gmra.mxu0 %v1462
    %v1551 = vpop.f32.mrf.mxu0
    %v1552 = vadd.f32 0.0, %v1551
    %v1553 = vpop.f32.mrf.mxu0
    %1554 = vmatprep.mubr.f32.mxu0 0.0
    %1555 = vmatmul.mubr.f32.gmra.mxu0 %v1465
    %v1556 = vpop.f32.mrf.mxu0
    %v1557 = vadd.f32 0.0, %v1556
    %v1558 = vpop.f32.mrf.mxu0
    %1559 = vmatprep.mubr.f32.mxu0 0.0
    %1560 = vmatmul.mubr.f32.gmra.mxu0 %v1468
    %v1561 = vpop.f32.mrf.mxu0
    %v1562 = vadd.f32 0.0, %v1561
    %v1563 = vpop.f32.mrf.mxu0
    %1564 = vmatprep.mubr.f32.mxu0 0.0
    %1565 = vmatmul.mubr.f32.gmra.mxu0 %v1471
    %v1566 = vpop.f32.mrf.mxu0
    %v1567 = vadd.f32 0.0, %v1566
    %v1568 = vpop.f32.mrf.mxu0
    %1569 = vmatprep.mubr.f32.mxu0 0.0
    %1570 = vmatmul.mubr.f32.gmra.mxu0 %v1474
    %v1571 = vpop.f32.mrf.mxu0
    %v1572 = vadd.f32 0.0, %v1571
    %v1573 = vpop.f32.mrf.mxu0
    %1574 = vmatprep.mubr.f32.mxu0 0.0
    %1575 = vmatmul.mubr.f32.gmra.mxu0 %v1477
    %v1576 = vpop.f32.mrf.mxu0
    %v1577 = vadd.f32 0.0, %v1576
    %v1578 = vpop.f32.mrf.mxu0
    %1579 = vmatprep.mubr.f32.mxu0 0.0
    %1580 = vmatmul.mubr.f32.gmra.mxu0 %v1480
    %v1581 = vpop.f32.mrf.mxu0
    %v1582 = vadd.f32 0.0, %v1581
    %v1583 = vpop.f32.mrf.mxu0
    %1584 = vmatprep.mubr.f32.mxu0 0.0
    %1585 = vmatmul.mubr.f32.gmra.mxu0 %v1483
    %v1586 = vpop.f32.mrf.mxu0
    %v1587 = vadd.f32 0.0, %v1586
    %v1588 = vpop.f32.mrf.mxu0
    %1589 = vdwg.mxu0
    %1598 = vrot.lane.b32.xlu0 %v1552, 8
    %v1599 = vpop.permute.xlu0 %1598
    %1600 = vrot.lane.b32.xlu0 %v1557, 8
    %v1601 = vpop.permute.xlu0 %1600
    %1602 = vrot.lane.b32.xlu0 %v1562, 8
    %v1603 = vpop.permute.xlu0 %1602
    %1604 = vrot.lane.b32.xlu0 %v1567, 8
    %v1605 = vpop.permute.xlu0 %1604
    %1606 = vrot.lane.b32.xlu0 %v1572, 8
    %v1607 = vpop.permute.xlu0 %1606
    %1608 = vrot.lane.b32.xlu0 %v1577, 8
    %v1609 = vpop.permute.xlu0 %1608
    %1610 = vrot.lane.b32.xlu0 %v1582, 8
    %v1611 = vpop.permute.xlu0 %1610
    %1612 = vrot.lane.b32.xlu0 %v1587, 8
    %v1613 = vpop.permute.xlu0 %1612
    %vm1622 = vcmask 130112
    %1623 = vst.msk [vmem:[#allocation2] sm:$0xff] %vm1622, %v1599
    %1624 = vst.msk [vmem:[#allocation2 + $0x8] sm:$0xff] %vm1622, %v1601
    %1625 = vst.msk [vmem:[#allocation2 + $0x10] sm:$0xff] %vm1622, %v1603
    %1626 = vst.msk [vmem:[#allocation2 + $0x18] sm:$0xff] %vm1622, %v1605
    %1627 = vst.msk [vmem:[#allocation2 + $0x20] sm:$0xff] %vm1622, %v1607
    %1628 = vst.msk [vmem:[#allocation2 + $0x28] sm:$0xff] %vm1622, %v1609
    %1629 = vst.msk [vmem:[#allocation2 + $0x30] sm:$0xff] %vm1622, %v1611
    %1630 = vst.msk [vmem:[#allocation2 + $0x38] sm:$0xff] %vm1622, %v1613
    %1631 = vrot.lane.b32.xlu0 %v714, 112
    %v1632 = vpop.permute.xlu0 %1631
    %1633 = vrot.lane.b32.xlu0 %v719, 112
    %v1634 = vpop.permute.xlu0 %1633
    %1635 = vrot.lane.b32.xlu0 %v724, 112
    %v1636 = vpop.permute.xlu0 %1635
    %1637 = vrot.lane.b32.xlu0 %v729, 112
    %v1638 = vpop.permute.xlu0 %1637
    %1639 = vrot.lane.b32.xlu0 %v734, 112
    %v1640 = vpop.permute.xlu0 %1639
    %1641 = vrot.lane.b32.xlu0 %v739, 112
    %v1642 = vpop.permute.xlu0 %1641
    %1643 = vrot.lane.b32.xlu0 %v744, 112
    %v1644 = vpop.permute.xlu0 %1643
    %1645 = vrot.lane.b32.xlu0 %v749, 112
    %v1646 = vpop.permute.xlu0 %1645
    %1647 = vrot.lane.b32.xlu0 %v714, 80
    %v1648 = vpop.permute.xlu0 %1647
    %1649 = vrot.lane.b32.xlu0 %v719, 80
    %v1650 = vpop.permute.xlu0 %1649
    %1651 = vrot.lane.b32.xlu0 %v724, 80
    %v1652 = vpop.permute.xlu0 %1651
    %1653 = vrot.lane.b32.xlu0 %v729, 80
    %v1654 = vpop.permute.xlu0 %1653
    %1655 = vrot.lane.b32.xlu0 %v734, 80
    %v1656 = vpop.permute.xlu0 %1655
    %1657 = vrot.lane.b32.xlu0 %v739, 80
    %v1658 = vpop.permute.xlu0 %1657
    %1659 = vrot.lane.b32.xlu0 %v744, 80
    %v1660 = vpop.permute.xlu0 %1659
    %1661 = vrot.lane.b32.xlu0 %v749, 80
    %v1662 = vpop.permute.xlu0 %1661
    %v1663 = vsel %vm776, %v1632, 0
    %v1665 = vsel %vm776, %v1634, 0
    %v1667 = vsel %vm776, %v1636, 0
    %v1669 = vsel %vm776, %v1638, 0
    %v1671 = vsel %vm776, %v1640, 0
    %v1673 = vsel %vm776, %v1642, 0
    %v1675 = vsel %vm776, %v1644, 0
    %v1677 = vsel %vm776, %v1646, 0
    %v1679 = vsel %vm776, %v1648, 0
    %v1681 = vsel %vm776, %v1650, 0
    %v1683 = vsel %vm776, %v1652, 0
    %v1685 = vsel %vm776, %v1654, 0
    %v1687 = vsel %vm776, %v1656, 0
    %v1689 = vsel %vm776, %v1658, 0
    %v1691 = vsel %vm776, %v1660, 0
    %v1693 = vsel %vm776, %v1662, 0
    %1695 = vmatprep.subr.mxu0 0.0
    %1696 = vmatpush1.xpose.msra.mxu0 0.0
    %1697 = vmatprep.subr.mxu0 0.0
    %1698 = vmatpush1.xpose.msra.mxu0 0.0
    %1699 = vmatprep.subr.mxu0 0.0
    %1700 = vmatpush1.xpose.msra.mxu0 0.0
    %1701 = vmatprep.subr.mxu0 0.0
    %1702 = vmatpush1.xpose.msra.mxu0 0.0
    %1703 = vmatprep.subr.mxu0 0.0
    %1704 = vmatpush1.xpose.msra.mxu0 0.0
    %1705 = vmatprep.subr.mxu0 0.0
    %1706 = vmatpush1.xpose.msra.mxu0 0.0
    %1707 = vmatprep.subr.mxu0 0.0
    %1708 = vmatpush1.xpose.msra.mxu0 0.0
    %1709 = vmatprep.subr.mxu0 0.0
    %1710 = vmatpush1.xpose.msra.mxu0 0.0
    %1711 = vmatprep.subr.mxu0 0.0
    %1712 = vmatpush1.xpose.msra.mxu0 %v1693
    %1713 = vmatprep.subr.mxu0 0.0
    %1714 = vmatpush1.xpose.msra.mxu0 %v1691
    %1715 = vmatprep.subr.mxu0 0.0
    %1716 = vmatpush1.xpose.msra.mxu0 %v1689
    %1717 = vmatprep.subr.mxu0 0.0
    %1718 = vmatpush1.xpose.msra.mxu0 %v1687
    %1719 = vmatprep.subr.mxu0 0.0
    %1720 = vmatpush1.xpose.msra.mxu0 %v1685
    %1721 = vmatprep.subr.mxu0 0.0
    %1722 = vmatpush1.xpose.msra.mxu0 %v1683
    %1723 = vmatprep.subr.mxu0 0.0
    %1724 = vmatpush1.xpose.msra.mxu0 %v1681
    %1725 = vmatprep.subr.mxu0 0.0
    %1726 = vmatpush1.xpose.msra.mxu0 %v1679
    %1727 = vmatprep.subr.mxu0 0.0
    %1728 = vmatpush2.xpose.msra.mxu0 0.0
    %1729 = vmatprep.subr.mxu0 0.0
    %1730 = vmatpush2.xpose.msra.mxu0 0.0
    %1731 = vmatprep.subr.mxu0 0.0
    %1732 = vmatpush2.xpose.msra.mxu0 0.0
    %1733 = vmatprep.subr.mxu0 0.0
    %1734 = vmatpush2.xpose.msra.mxu0 0.0
    %1735 = vmatprep.subr.mxu0 0.0
    %1736 = vmatpush2.xpose.msra.mxu0 0.0
    %1737 = vmatprep.subr.mxu0 0.0
    %1738 = vmatpush2.xpose.msra.mxu0 0.0
    %1739 = vmatprep.subr.mxu0 0.0
    %1740 = vmatpush2.xpose.msra.mxu0 0.0
    %1741 = vmatprep.subr.mxu0 0.0
    %1742 = vmatpush2.xpose.msra.mxu0 0.0
    %1743 = vmatprep.subr.mxu0 0.0
    %1744 = vmatpush2.xpose.msra.mxu0 0.0
    %1745 = vmatprep.subr.mxu0 0.0
    %1746 = vmatpush2.xpose.msra.mxu0 0.0
    %1747 = vmatprep.subr.mxu0 0.0
    %1748 = vmatpush2.xpose.msra.mxu0 0.0
    %1749 = vmatprep.subr.mxu0 0.0
    %1750 = vmatpush2.xpose.msra.mxu0 0.0
    %1751 = vmatprep.subr.mxu0 0.0
    %1752 = vmatpush2.xpose.msra.mxu0 0.0
    %1753 = vmatprep.subr.mxu0 0.0
    %1754 = vmatpush2.xpose.msra.mxu0 0.0
    %1755 = vmatprep.subr.mxu0 0.0
    %1756 = vmatpush2.xpose.msra.mxu0 0.0
    %1757 = vmatprep.subr.mxu0 0.0
    %1758 = vmatpush2.xpose.msra.mxu0 0.0
    %1759 = vmatprep.mubr.f32.mxu0 0.0
    %1760 = vmatmul.mubr.f32.gmra.mxu0 %v1663
    %v1761 = vpop.f32.mrf.mxu0
    %v1762 = vadd.f32 0.0, %v1761
    %v1763 = vpop.f32.mrf.mxu0
    %1764 = vmatprep.mubr.f32.mxu0 0.0
    %1765 = vmatmul.mubr.f32.gmra.mxu0 %v1665
    %v1766 = vpop.f32.mrf.mxu0
    %v1767 = vadd.f32 0.0, %v1766
    %v1768 = vpop.f32.mrf.mxu0
    %1769 = vmatprep.mubr.f32.mxu0 0.0
    %1770 = vmatmul.mubr.f32.gmra.mxu0 %v1667
    %v1771 = vpop.f32.mrf.mxu0
    %v1772 = vadd.f32 0.0, %v1771
    %v1773 = vpop.f32.mrf.mxu0
    %1774 = vmatprep.mubr.f32.mxu0 0.0
    %1775 = vmatmul.mubr.f32.gmra.mxu0 %v1669
    %v1776 = vpop.f32.mrf.mxu0
    %v1777 = vadd.f32 0.0, %v1776
    %v1778 = vpop.f32.mrf.mxu0
    %1779 = vmatprep.mubr.f32.mxu0 0.0
    %1780 = vmatmul.mubr.f32.gmra.mxu0 %v1671
    %v1781 = vpop.f32.mrf.mxu0
    %v1782 = vadd.f32 0.0, %v1781
    %v1783 = vpop.f32.mrf.mxu0
    %1784 = vmatprep.mubr.f32.mxu0 0.0
    %1785 = vmatmul.mubr.f32.gmra.mxu0 %v1673
    %v1786 = vpop.f32.mrf.mxu0
    %v1787 = vadd.f32 0.0, %v1786
    %v1788 = vpop.f32.mrf.mxu0
    %1789 = vmatprep.mubr.f32.mxu0 0.0
    %1790 = vmatmul.mubr.f32.gmra.mxu0 %v1675
    %v1791 = vpop.f32.mrf.mxu0
    %v1792 = vadd.f32 0.0, %v1791
    %v1793 = vpop.f32.mrf.mxu0
    %1794 = vmatprep.mubr.f32.mxu0 0.0
    %1795 = vmatmul.mubr.f32.gmra.mxu0 %v1677
    %v1796 = vpop.f32.mrf.mxu0
    %v1797 = vadd.f32 0.0, %v1796
    %v1798 = vpop.f32.mrf.mxu0
    %1799 = vdwg.mxu0
    %v1800 = vmul.f32 %v1762, 0.35355338
    %v1801 = vmul.f32 %v1767, 0.35355338
    %v1802 = vmul.f32 %v1772, 0.35355338
    %v1803 = vmul.f32 %v1777, 0.35355338
    %v1804 = vmul.f32 %v1782, 0.35355338
    %v1805 = vmul.f32 %v1787, 0.35355338
    %v1806 = vmul.f32 %v1792, 0.35355338
    %v1807 = vmul.f32 %v1797, 0.35355338
    %v1808 = vsel %vm922, %v1800, -inf
    %1809 = vmax.xlane.f32.xlu0 %v1808
    %v1810 = vpop.xlane.xlu0 %1809
    %v1811 = vsel %vm922, %v1801, -inf
    %1812 = vmax.xlane.f32.xlu0 %v1811
    %v1813 = vpop.xlane.xlu0 %1812
    %v1814 = vsel %vm922, %v1802, -inf
    %1815 = vmax.xlane.f32.xlu0 %v1814
    %v1816 = vpop.xlane.xlu0 %1815
    %v1817 = vsel %vm922, %v1803, -inf
    %1818 = vmax.xlane.f32.xlu0 %v1817
    %v1819 = vpop.xlane.xlu0 %1818
    %v1820 = vsel %vm922, %v1804, -inf
    %1821 = vmax.xlane.f32.xlu0 %v1820
    %v1822 = vpop.xlane.xlu0 %1821
    %v1823 = vsel %vm922, %v1805, -inf
    %1824 = vmax.xlane.f32.xlu0 %v1823
    %v1825 = vpop.xlane.xlu0 %1824
    %v1826 = vsel %vm922, %v1806, -inf
    %1827 = vmax.xlane.f32.xlu0 %v1826
    %v1828 = vpop.xlane.xlu0 %1827
    %v1829 = vsel %vm922, %v1807, -inf
    %1830 = vmax.xlane.f32.xlu0 %v1829
    %v1831 = vpop.xlane.xlu0 %1830
    %v1832 = vsub.f32 %v1800, %v1810
    %v1833 = vsub.f32 %v1801, %v1813
    %v1834 = vsub.f32 %v1802, %v1816
    %v1835 = vsub.f32 %v1803, %v1819
    %v1836 = vsub.f32 %v1804, %v1822
    %v1837 = vsub.f32 %v1805, %v1825
    %v1838 = vsub.f32 %v1806, %v1828
    %v1839 = vsub.f32 %v1807, %v1831
    %v1840 = vmul.f32 %v1832, 1.442695
    %v1841 = vpow.pop %v1840
    %v1842 = vmul.f32 %v1833, 1.442695
    %v1843 = vpow.pop %v1842
    %v1844 = vmul.f32 %v1834, 1.442695
    %v1845 = vpow.pop %v1844
    %v1846 = vmul.f32 %v1835, 1.442695
    %v1847 = vpow.pop %v1846
    %v1848 = vmul.f32 %v1836, 1.442695
    %v1849 = vpow.pop %v1848
    %v1850 = vmul.f32 %v1837, 1.442695
    %v1851 = vpow.pop %v1850
    %v1852 = vmul.f32 %v1838, 1.442695
    %v1853 = vpow.pop %v1852
    %v1854 = vmul.f32 %v1839, 1.442695
    %v1855 = vpow.pop %v1854
    %v1856 = vsel %vm922, %v1841, 0.0
    %1857 = vadd.xlane.f32.xlu0 %v1856
    %v1858 = vpop.xlane.xlu0 %1857
    %v1859 = vsel %vm922, %v1843, 0.0
    %1860 = vadd.xlane.f32.xlu0 %v1859
    %v1861 = vpop.xlane.xlu0 %1860
    %v1862 = vsel %vm922, %v1845, 0.0
    %1863 = vadd.xlane.f32.xlu0 %v1862
    %v1864 = vpop.xlane.xlu0 %1863
    %v1865 = vsel %vm922, %v1847, 0.0
    %1866 = vadd.xlane.f32.xlu0 %v1865
    %v1867 = vpop.xlane.xlu0 %1866
    %v1868 = vsel %vm922, %v1849, 0.0
    %1869 = vadd.xlane.f32.xlu0 %v1868
    %v1870 = vpop.xlane.xlu0 %1869
    %v1871 = vsel %vm922, %v1851, 0.0
    %1872 = vadd.xlane.f32.xlu0 %v1871
    %v1873 = vpop.xlane.xlu0 %1872
    %v1874 = vsel %vm922, %v1853, 0.0
    %1875 = vadd.xlane.f32.xlu0 %v1874
    %v1876 = vpop.xlane.xlu0 %1875
    %v1877 = vsel %vm922, %v1855, 0.0
    %1878 = vadd.xlane.f32.xlu0 %v1877
    %v1879 = vpop.xlane.xlu0 %1878
    %v1880 = vrcp.pop %v1858
    %v1881 = vrcp.pop %v1861
    %v1882 = vrcp.pop %v1864
    %v1883 = vrcp.pop %v1867
    %v1884 = vrcp.pop %v1870
    %v1885 = vrcp.pop %v1873
    %v1886 = vrcp.pop %v1876
    %v1887 = vrcp.pop %v1879
    %v1888 = vmul.f32 %v1841, %v1880
    %v1889 = vmul.f32 %v1843, %v1881
    %v1890 = vmul.f32 %v1845, %v1882
    %v1891 = vmul.f32 %v1847, %v1883
    %v1892 = vmul.f32 %v1849, %v1884
    %v1893 = vmul.f32 %v1851, %v1885
    %v1894 = vmul.f32 %v1853, %v1886
    %v1895 = vmul.f32 %v1855, %v1887
    %1896 = vrot.lane.b32.xlu0 %v714, 48
    %v1897 = vpop.permute.xlu0 %1896
    %1898 = vrot.lane.b32.xlu0 %v719, 48
    %v1899 = vpop.permute.xlu0 %1898
    %1900 = vrot.lane.b32.xlu0 %v724, 48
    %v1901 = vpop.permute.xlu0 %1900
    %1902 = vrot.lane.b32.xlu0 %v729, 48
    %v1903 = vpop.permute.xlu0 %1902
    %1904 = vrot.lane.b32.xlu0 %v734, 48
    %v1905 = vpop.permute.xlu0 %1904
    %1906 = vrot.lane.b32.xlu0 %v739, 48
    %v1907 = vpop.permute.xlu0 %1906
    %1908 = vrot.lane.b32.xlu0 %v744, 48
    %v1909 = vpop.permute.xlu0 %1908
    %1910 = vrot.lane.b32.xlu0 %v749, 48
    %v1911 = vpop.permute.xlu0 %1910
    %v1921 = vsel %vm922, %v1888, 0
    %v1924 = vsel %vm922, %v1889, 0
    %v1927 = vsel %vm922, %v1890, 0
    %v1930 = vsel %vm922, %v1891, 0
    %v1933 = vsel %vm922, %v1892, 0
    %v1936 = vsel %vm922, %v1893, 0
    %v1939 = vsel %vm922, %v1894, 0
    %v1942 = vsel %vm922, %v1895, 0
    %1944 = vmatprep.subr.mxu0 0.0
    %1945 = vmatpush1.msra.mxu0 0.0
    %1946 = vmatprep.subr.mxu0 0.0
    %1947 = vmatpush1.msra.mxu0 0.0
    %1948 = vmatprep.subr.mxu0 0.0
    %1949 = vmatpush1.msra.mxu0 0.0
    %1950 = vmatprep.subr.mxu0 0.0
    %1951 = vmatpush1.msra.mxu0 0.0
    %1952 = vmatprep.subr.mxu0 0.0
    %1953 = vmatpush1.msra.mxu0 0.0
    %1954 = vmatprep.subr.mxu0 0.0
    %1955 = vmatpush1.msra.mxu0 0.0
    %1956 = vmatprep.subr.mxu0 0.0
    %1957 = vmatpush1.msra.mxu0 0.0
    %1958 = vmatprep.subr.mxu0 0.0
    %1959 = vmatpush1.msra.mxu0 0.0
    %1960 = vmatprep.subr.mxu0 0.0
    %1961 = vmatpush1.msra.mxu0 %v1911
    %1962 = vmatprep.subr.mxu0 0.0
    %1963 = vmatpush1.msra.mxu0 %v1909
    %1964 = vmatprep.subr.mxu0 0.0
    %1965 = vmatpush1.msra.mxu0 %v1907
    %1966 = vmatprep.subr.mxu0 0.0
    %1967 = vmatpush1.msra.mxu0 %v1905
    %1968 = vmatprep.subr.mxu0 0.0
    %1969 = vmatpush1.msra.mxu0 %v1903
    %1970 = vmatprep.subr.mxu0 0.0
    %1971 = vmatpush1.msra.mxu0 %v1901
    %1972 = vmatprep.subr.mxu0 0.0
    %1973 = vmatpush1.msra.mxu0 %v1899
    %1974 = vmatprep.subr.mxu0 0.0
    %1975 = vmatpush1.msra.mxu0 %v1897
    %1976 = vmatprep.subr.mxu0 0.0
    %1977 = vmatpush2.msra.mxu0 0.0
    %1978 = vmatprep.subr.mxu0 0.0
    %1979 = vmatpush2.msra.mxu0 0.0
    %1980 = vmatprep.subr.mxu0 0.0
    %1981 = vmatpush2.msra.mxu0 0.0
    %1982 = vmatprep.subr.mxu0 0.0
    %1983 = vmatpush2.msra.mxu0 0.0
    %1984 = vmatprep.subr.mxu0 0.0
    %1985 = vmatpush2.msra.mxu0 0.0
    %1986 = vmatprep.subr.mxu0 0.0
    %1987 = vmatpush2.msra.mxu0 0.0
    %1988 = vmatprep.subr.mxu0 0.0
    %1989 = vmatpush2.msra.mxu0 0.0
    %1990 = vmatprep.subr.mxu0 0.0
    %1991 = vmatpush2.msra.mxu0 0.0
    %1992 = vmatprep.subr.mxu0 0.0
    %1993 = vmatpush2.msra.mxu0 0.0
    %1994 = vmatprep.subr.mxu0 0.0
    %1995 = vmatpush2.msra.mxu0 0.0
    %1996 = vmatprep.subr.mxu0 0.0
    %1997 = vmatpush2.msra.mxu0 0.0
    %1998 = vmatprep.subr.mxu0 0.0
    %1999 = vmatpush2.msra.mxu0 0.0
    %2000 = vmatprep.subr.mxu0 0.0
    %2001 = vmatpush2.msra.mxu0 0.0
    %2002 = vmatprep.subr.mxu0 0.0
    %2003 = vmatpush2.msra.mxu0 0.0
    %2004 = vmatprep.subr.mxu0 0.0
    %2005 = vmatpush2.msra.mxu0 0.0
    %2006 = vmatprep.subr.mxu0 0.0
    %2007 = vmatpush2.msra.mxu0 0.0
    %2008 = vmatprep.mubr.f32.mxu0 0.0
    %2009 = vmatmul.mubr.f32.gmra.mxu0 %v1921
    %v2010 = vpop.f32.mrf.mxu0
    %v2011 = vadd.f32 0.0, %v2010
    %v2012 = vpop.f32.mrf.mxu0
    %2013 = vmatprep.mubr.f32.mxu0 0.0
    %2014 = vmatmul.mubr.f32.gmra.mxu0 %v1924
    %v2015 = vpop.f32.mrf.mxu0
    %v2016 = vadd.f32 0.0, %v2015
    %v2017 = vpop.f32.mrf.mxu0
    %2018 = vmatprep.mubr.f32.mxu0 0.0
    %2019 = vmatmul.mubr.f32.gmra.mxu0 %v1927
    %v2020 = vpop.f32.mrf.mxu0
    %v2021 = vadd.f32 0.0, %v2020
    %v2022 = vpop.f32.mrf.mxu0
    %2023 = vmatprep.mubr.f32.mxu0 0.0
    %2024 = vmatmul.mubr.f32.gmra.mxu0 %v1930
    %v2025 = vpop.f32.mrf.mxu0
    %v2026 = vadd.f32 0.0, %v2025
    %v2027 = vpop.f32.mrf.mxu0
    %2028 = vmatprep.mubr.f32.mxu0 0.0
    %2029 = vmatmul.mubr.f32.gmra.mxu0 %v1933
    %v2030 = vpop.f32.mrf.mxu0
    %v2031 = vadd.f32 0.0, %v2030
    %v2032 = vpop.f32.mrf.mxu0
    %2033 = vmatprep.mubr.f32.mxu0 0.0
    %2034 = vmatmul.mubr.f32.gmra.mxu0 %v1936
    %v2035 = vpop.f32.mrf.mxu0
    %v2036 = vadd.f32 0.0, %v2035
    %v2037 = vpop.f32.mrf.mxu0
    %2038 = vmatprep.mubr.f32.mxu0 0.0
    %2039 = vmatmul.mubr.f32.gmra.mxu0 %v1939
    %v2040 = vpop.f32.mrf.mxu0
    %v2041 = vadd.f32 0.0, %v2040
    %v2042 = vpop.f32.mrf.mxu0
    %2043 = vmatprep.mubr.f32.mxu0 0.0
    %2044 = vmatmul.mubr.f32.gmra.mxu0 %v1942
    %v2045 = vpop.f32.mrf.mxu0
    %v2046 = vadd.f32 0.0, %v2045
    %v2047 = vpop.f32.mrf.mxu0
    %2048 = vdwg.mxu0
    %2057 = vrot.lane.b32.xlu0 %v2011, 16
    %v2058 = vpop.permute.xlu0 %2057
    %2059 = vrot.lane.b32.xlu0 %v2016, 16
    %v2060 = vpop.permute.xlu0 %2059
    %2061 = vrot.lane.b32.xlu0 %v2021, 16
    %v2062 = vpop.permute.xlu0 %2061
    %2063 = vrot.lane.b32.xlu0 %v2026, 16
    %v2064 = vpop.permute.xlu0 %2063
    %2065 = vrot.lane.b32.xlu0 %v2031, 16
    %v2066 = vpop.permute.xlu0 %2065
    %2067 = vrot.lane.b32.xlu0 %v2036, 16
    %v2068 = vpop.permute.xlu0 %2067
    %2069 = vrot.lane.b32.xlu0 %v2041, 16
    %v2070 = vpop.permute.xlu0 %2069
    %2071 = vrot.lane.b32.xlu0 %v2046, 16
    %v2072 = vpop.permute.xlu0 %2071
    %vm2081 = vcmask 195712
    %2082 = vst.msk [vmem:[#allocation2] sm:$0xff] %vm2081, %v2058
    %2083 = vst.msk [vmem:[#allocation2 + $0x8] sm:$0xff] %vm2081, %v2060
    %2084 = vst.msk [vmem:[#allocation2 + $0x10] sm:$0xff] %vm2081, %v2062
    %2085 = vst.msk [vmem:[#allocation2 + $0x18] sm:$0xff] %vm2081, %v2064
    %2086 = vst.msk [vmem:[#allocation2 + $0x20] sm:$0xff] %vm2081, %v2066
    %2087 = vst.msk [vmem:[#allocation2 + $0x28] sm:$0xff] %vm2081, %v2068
    %2088 = vst.msk [vmem:[#allocation2 + $0x30] sm:$0xff] %vm2081, %v2070
    %2089 = vst.msk [vmem:[#allocation2 + $0x38] sm:$0xff] %vm2081, %v2072
    %2090 = vrot.lane.b32.xlu0 %v714, 104
    %v2091 = vpop.permute.xlu0 %2090
    %2092 = vrot.lane.b32.xlu0 %v719, 104
    %v2093 = vpop.permute.xlu0 %2092
    %2094 = vrot.lane.b32.xlu0 %v724, 104
    %v2095 = vpop.permute.xlu0 %2094
    %2096 = vrot.lane.b32.xlu0 %v729, 104
    %v2097 = vpop.permute.xlu0 %2096
    %2098 = vrot.lane.b32.xlu0 %v734, 104
    %v2099 = vpop.permute.xlu0 %2098
    %2100 = vrot.lane.b32.xlu0 %v739, 104
    %v2101 = vpop.permute.xlu0 %2100
    %2102 = vrot.lane.b32.xlu0 %v744, 104
    %v2103 = vpop.permute.xlu0 %2102
    %2104 = vrot.lane.b32.xlu0 %v749, 104
    %v2105 = vpop.permute.xlu0 %2104
    %2106 = vrot.lane.b32.xlu0 %v714, 72
    %v2107 = vpop.permute.xlu0 %2106
    %2108 = vrot.lane.b32.xlu0 %v719, 72
    %v2109 = vpop.permute.xlu0 %2108
    %2110 = vrot.lane.b32.xlu0 %v724, 72
    %v2111 = vpop.permute.xlu0 %2110
    %2112 = vrot.lane.b32.xlu0 %v729, 72
    %v2113 = vpop.permute.xlu0 %2112
    %2114 = vrot.lane.b32.xlu0 %v734, 72
    %v2115 = vpop.permute.xlu0 %2114
    %2116 = vrot.lane.b32.xlu0 %v739, 72
    %v2117 = vpop.permute.xlu0 %2116
    %2118 = vrot.lane.b32.xlu0 %v744, 72
    %v2119 = vpop.permute.xlu0 %2118
    %2120 = vrot.lane.b32.xlu0 %v749, 72
    %v2121 = vpop.permute.xlu0 %2120
    %v2122 = vsel %vm776, %v2091, 0
    %v2124 = vsel %vm776, %v2093, 0
    %v2126 = vsel %vm776, %v2095, 0
    %v2128 = vsel %vm776, %v2097, 0
    %v2130 = vsel %vm776, %v2099, 0
    %v2132 = vsel %vm776, %v2101, 0
    %v2134 = vsel %vm776, %v2103, 0
    %v2136 = vsel %vm776, %v2105, 0
    %v2138 = vsel %vm776, %v2107, 0
    %v2140 = vsel %vm776, %v2109, 0
    %v2142 = vsel %vm776, %v2111, 0
    %v2144 = vsel %vm776, %v2113, 0
    %v2146 = vsel %vm776, %v2115, 0
    %v2148 = vsel %vm776, %v2117, 0
    %v2150 = vsel %vm776, %v2119, 0
    %v2152 = vsel %vm776, %v2121, 0
    %2154 = vmatprep.subr.mxu0 0.0
    %2155 = vmatpush1.xpose.msra.mxu0 0.0
    %2156 = vmatprep.subr.mxu0 0.0
    %2157 = vmatpush1.xpose.msra.mxu0 0.0
    %2158 = vmatprep.subr.mxu0 0.0
    %2159 = vmatpush1.xpose.msra.mxu0 0.0
    %2160 = vmatprep.subr.mxu0 0.0
    %2161 = vmatpush1.xpose.msra.mxu0 0.0
    %2162 = vmatprep.subr.mxu0 0.0
    %2163 = vmatpush1.xpose.msra.mxu0 0.0
    %2164 = vmatprep.subr.mxu0 0.0
    %2165 = vmatpush1.xpose.msra.mxu0 0.0
    %2166 = vmatprep.subr.mxu0 0.0
    %2167 = vmatpush1.xpose.msra.mxu0 0.0
    %2168 = vmatprep.subr.mxu0 0.0
    %2169 = vmatpush1.xpose.msra.mxu0 0.0
    %2170 = vmatprep.subr.mxu0 0.0
    %2171 = vmatpush1.xpose.msra.mxu0 %v2152
    %2172 = vmatprep.subr.mxu0 0.0
    %2173 = vmatpush1.xpose.msra.mxu0 %v2150
    %2174 = vmatprep.subr.mxu0 0.0
    %2175 = vmatpush1.xpose.msra.mxu0 %v2148
    %2176 = vmatprep.subr.mxu0 0.0
    %2177 = vmatpush1.xpose.msra.mxu0 %v2146
    %2178 = vmatprep.subr.mxu0 0.0
    %2179 = vmatpush1.xpose.msra.mxu0 %v2144
    %2180 = vmatprep.subr.mxu0 0.0
    %2181 = vmatpush1.xpose.msra.mxu0 %v2142
    %2182 = vmatprep.subr.mxu0 0.0
    %2183 = vmatpush1.xpose.msra.mxu0 %v2140
    %2184 = vmatprep.subr.mxu0 0.0
    %2185 = vmatpush1.xpose.msra.mxu0 %v2138
    %2186 = vmatprep.subr.mxu0 0.0
    %2187 = vmatpush2.xpose.msra.mxu0 0.0
    %2188 = vmatprep.subr.mxu0 0.0
    %2189 = vmatpush2.xpose.msra.mxu0 0.0
    %2190 = vmatprep.subr.mxu0 0.0
    %2191 = vmatpush2.xpose.msra.mxu0 0.0
    %2192 = vmatprep.subr.mxu0 0.0
    %2193 = vmatpush2.xpose.msra.mxu0 0.0
    %2194 = vmatprep.subr.mxu0 0.0
    %2195 = vmatpush2.xpose.msra.mxu0 0.0
    %2196 = vmatprep.subr.mxu0 0.0
    %2197 = vmatpush2.xpose.msra.mxu0 0.0
    %2198 = vmatprep.subr.mxu0 0.0
    %2199 = vmatpush2.xpose.msra.mxu0 0.0
    %2200 = vmatprep.subr.mxu0 0.0
    %2201 = vmatpush2.xpose.msra.mxu0 0.0
    %2202 = vmatprep.subr.mxu0 0.0
    %2203 = vmatpush2.xpose.msra.mxu0 0.0
    %2204 = vmatprep.subr.mxu0 0.0
    %2205 = vmatpush2.xpose.msra.mxu0 0.0
    %2206 = vmatprep.subr.mxu0 0.0
    %2207 = vmatpush2.xpose.msra.mxu0 0.0
    %2208 = vmatprep.subr.mxu0 0.0
    %2209 = vmatpush2.xpose.msra.mxu0 0.0
    %2210 = vmatprep.subr.mxu0 0.0
    %2211 = vmatpush2.xpose.msra.mxu0 0.0
    %2212 = vmatprep.subr.mxu0 0.0
    %2213 = vmatpush2.xpose.msra.mxu0 0.0
    %2214 = vmatprep.subr.mxu0 0.0
    %2215 = vmatpush2.xpose.msra.mxu0 0.0
    %2216 = vmatprep.subr.mxu0 0.0
    %2217 = vmatpush2.xpose.msra.mxu0 0.0
    %2218 = vmatprep.mubr.f32.mxu0 0.0
    %2219 = vmatmul.mubr.f32.gmra.mxu0 %v2122
    %v2220 = vpop.f32.mrf.mxu0
    %v2221 = vadd.f32 0.0, %v2220
    %v2222 = vpop.f32.mrf.mxu0
    %2223 = vmatprep.mubr.f32.mxu0 0.0
    %2224 = vmatmul.mubr.f32.gmra.mxu0 %v2124
    %v2225 = vpop.f32.mrf.mxu0
    %v2226 = vadd.f32 0.0, %v2225
    %v2227 = vpop.f32.mrf.mxu0
    %2228 = vmatprep.mubr.f32.mxu0 0.0
    %2229 = vmatmul.mubr.f32.gmra.mxu0 %v2126
    %v2230 = vpop.f32.mrf.mxu0
    %v2231 = vadd.f32 0.0, %v2230
    %v2232 = vpop.f32.mrf.mxu0
    %2233 = vmatprep.mubr.f32.mxu0 0.0
    %2234 = vmatmul.mubr.f32.gmra.mxu0 %v2128
    %v2235 = vpop.f32.mrf.mxu0
    %v2236 = vadd.f32 0.0, %v2235
    %v2237 = vpop.f32.mrf.mxu0
    %2238 = vmatprep.mubr.f32.mxu0 0.0
    %2239 = vmatmul.mubr.f32.gmra.mxu0 %v2130
    %v2240 = vpop.f32.mrf.mxu0
    %v2241 = vadd.f32 0.0, %v2240
    %v2242 = vpop.f32.mrf.mxu0
    %2243 = vmatprep.mubr.f32.mxu0 0.0
    %2244 = vmatmul.mubr.f32.gmra.mxu0 %v2132
    %v2245 = vpop.f32.mrf.mxu0
    %v2246 = vadd.f32 0.0, %v2245
    %v2247 = vpop.f32.mrf.mxu0
    %2248 = vmatprep.mubr.f32.mxu0 0.0
    %2249 = vmatmul.mubr.f32.gmra.mxu0 %v2134
    %v2250 = vpop.f32.mrf.mxu0
    %v2251 = vadd.f32 0.0, %v2250
    %v2252 = vpop.f32.mrf.mxu0
    %2253 = vmatprep.mubr.f32.mxu0 0.0
    %2254 = vmatmul.mubr.f32.gmra.mxu0 %v2136
    %v2255 = vpop.f32.mrf.mxu0
    %v2256 = vadd.f32 0.0, %v2255
    %v2257 = vpop.f32.mrf.mxu0
    %2258 = vdwg.mxu0
    %v2259 = vmul.f32 %v2221, 0.35355338
    %v2260 = vmul.f32 %v2226, 0.35355338
    %v2261 = vmul.f32 %v2231, 0.35355338
    %v2262 = vmul.f32 %v2236, 0.35355338
    %v2263 = vmul.f32 %v2241, 0.35355338
    %v2264 = vmul.f32 %v2246, 0.35355338
    %v2265 = vmul.f32 %v2251, 0.35355338
    %v2266 = vmul.f32 %v2256, 0.35355338
    %v2267 = vsel %vm922, %v2259, -inf
    %2268 = vmax.xlane.f32.xlu0 %v2267
    %v2269 = vpop.xlane.xlu0 %2268
    %v2270 = vsel %vm922, %v2260, -inf
    %2271 = vmax.xlane.f32.xlu0 %v2270
    %v2272 = vpop.xlane.xlu0 %2271
    %v2273 = vsel %vm922, %v2261, -inf
    %2274 = vmax.xlane.f32.xlu0 %v2273
    %v2275 = vpop.xlane.xlu0 %2274
    %v2276 = vsel %vm922, %v2262, -inf
    %2277 = vmax.xlane.f32.xlu0 %v2276
    %v2278 = vpop.xlane.xlu0 %2277
    %v2279 = vsel %vm922, %v2263, -inf
    %2280 = vmax.xlane.f32.xlu0 %v2279
    %v2281 = vpop.xlane.xlu0 %2280
    %v2282 = vsel %vm922, %v2264, -inf
    %2283 = vmax.xlane.f32.xlu0 %v2282
    %v2284 = vpop.xlane.xlu0 %2283
    %v2285 = vsel %vm922, %v2265, -inf
    %2286 = vmax.xlane.f32.xlu0 %v2285
    %v2287 = vpop.xlane.xlu0 %2286
    %v2288 = vsel %vm922, %v2266, -inf
    %2289 = vmax.xlane.f32.xlu0 %v2288
    %v2290 = vpop.xlane.xlu0 %2289
    %v2291 = vsub.f32 %v2259, %v2269
    %v2292 = vsub.f32 %v2260, %v2272
    %v2293 = vsub.f32 %v2261, %v2275
    %v2294 = vsub.f32 %v2262, %v2278
    %v2295 = vsub.f32 %v2263, %v2281
    %v2296 = vsub.f32 %v2264, %v2284
    %v2297 = vsub.f32 %v2265, %v2287
    %v2298 = vsub.f32 %v2266, %v2290
    %v2299 = vmul.f32 %v2291, 1.442695
    %v2300 = vpow.pop %v2299
    %v2301 = vmul.f32 %v2292, 1.442695
    %v2302 = vpow.pop %v2301
    %v2303 = vmul.f32 %v2293, 1.442695
    %v2304 = vpow.pop %v2303
    %v2305 = vmul.f32 %v2294, 1.442695
    %v2306 = vpow.pop %v2305
    %v2307 = vmul.f32 %v2295, 1.442695
    %v2308 = vpow.pop %v2307
    %v2309 = vmul.f32 %v2296, 1.442695
    %v2310 = vpow.pop %v2309
    %v2311 = vmul.f32 %v2297, 1.442695
    %v2312 = vpow.pop %v2311
    %v2313 = vmul.f32 %v2298, 1.442695
    %v2314 = vpow.pop %v2313
    %v2315 = vsel %vm922, %v2300, 0.0
    %2316 = vadd.xlane.f32.xlu0 %v2315
    %v2317 = vpop.xlane.xlu0 %2316
    %v2318 = vsel %vm922, %v2302, 0.0
    %2319 = vadd.xlane.f32.xlu0 %v2318
    %v2320 = vpop.xlane.xlu0 %2319
    %v2321 = vsel %vm922, %v2304, 0.0
    %2322 = vadd.xlane.f32.xlu0 %v2321
    %v2323 = vpop.xlane.xlu0 %2322
    %v2324 = vsel %vm922, %v2306, 0.0
    %2325 = vadd.xlane.f32.xlu0 %v2324
    %v2326 = vpop.xlane.xlu0 %2325
    %v2327 = vsel %vm922, %v2308, 0.0
    %2328 = vadd.xlane.f32.xlu0 %v2327
    %v2329 = vpop.xlane.xlu0 %2328
    %v2330 = vsel %vm922, %v2310, 0.0
    %2331 = vadd.xlane.f32.xlu0 %v2330
    %v2332 = vpop.xlane.xlu0 %2331
    %v2333 = vsel %vm922, %v2312, 0.0
    %2334 = vadd.xlane.f32.xlu0 %v2333
    %v2335 = vpop.xlane.xlu0 %2334
    %v2336 = vsel %vm922, %v2314, 0.0
    %2337 = vadd.xlane.f32.xlu0 %v2336
    %v2338 = vpop.xlane.xlu0 %2337
    %v2339 = vrcp.pop %v2317
    %v2340 = vrcp.pop %v2320
    %v2341 = vrcp.pop %v2323
    %v2342 = vrcp.pop %v2326
    %v2343 = vrcp.pop %v2329
    %v2344 = vrcp.pop %v2332
    %v2345 = vrcp.pop %v2335
    %v2346 = vrcp.pop %v2338
    %v2347 = vmul.f32 %v2300, %v2339
    %v2348 = vmul.f32 %v2302, %v2340
    %v2349 = vmul.f32 %v2304, %v2341
    %v2350 = vmul.f32 %v2306, %v2342
    %v2351 = vmul.f32 %v2308, %v2343
    %v2352 = vmul.f32 %v2310, %v2344
    %v2353 = vmul.f32 %v2312, %v2345
    %v2354 = vmul.f32 %v2314, %v2346
    %2355 = vrot.lane.b32.xlu0 %v714, 40
    %v2356 = vpop.permute.xlu0 %2355
    %2357 = vrot.lane.b32.xlu0 %v719, 40
    %v2358 = vpop.permute.xlu0 %2357
    %2359 = vrot.lane.b32.xlu0 %v724, 40
    %v2360 = vpop.permute.xlu0 %2359
    %2361 = vrot.lane.b32.xlu0 %v729, 40
    %v2362 = vpop.permute.xlu0 %2361
    %2363 = vrot.lane.b32.xlu0 %v734, 40
    %v2364 = vpop.permute.xlu0 %2363
    %2365 = vrot.lane.b32.xlu0 %v739, 40
    %v2366 = vpop.permute.xlu0 %2365
    %2367 = vrot.lane.b32.xlu0 %v744, 40
    %v2368 = vpop.permute.xlu0 %2367
    %2369 = vrot.lane.b32.xlu0 %v749, 40
    %v2370 = vpop.permute.xlu0 %2369
    %v2380 = vsel %vm922, %v2347, 0
    %v2383 = vsel %vm922, %v2348, 0
    %v2386 = vsel %vm922, %v2349, 0
    %v2389 = vsel %vm922, %v2350, 0
    %v2392 = vsel %vm922, %v2351, 0
    %v2395 = vsel %vm922, %v2352, 0
    %v2398 = vsel %vm922, %v2353, 0
    %v2401 = vsel %vm922, %v2354, 0
    %2403 = vmatprep.subr.mxu0 0.0
    %2404 = vmatpush1.msra.mxu0 0.0
    %2405 = vmatprep.subr.mxu0 0.0
    %2406 = vmatpush1.msra.mxu0 0.0
    %2407 = vmatprep.subr.mxu0 0.0
    %2408 = vmatpush1.msra.mxu0 0.0
    %2409 = vmatprep.subr.mxu0 0.0
    %2410 = vmatpush1.msra.mxu0 0.0
    %2411 = vmatprep.subr.mxu0 0.0
    %2412 = vmatpush1.msra.mxu0 0.0
    %2413 = vmatprep.subr.mxu0 0.0
    %2414 = vmatpush1.msra.mxu0 0.0
    %2415 = vmatprep.subr.mxu0 0.0
    %2416 = vmatpush1.msra.mxu0 0.0
    %2417 = vmatprep.subr.mxu0 0.0
    %2418 = vmatpush1.msra.mxu0 0.0
    %2419 = vmatprep.subr.mxu0 0.0
    %2420 = vmatpush1.msra.mxu0 %v2370
    %2421 = vmatprep.subr.mxu0 0.0
    %2422 = vmatpush1.msra.mxu0 %v2368
    %2423 = vmatprep.subr.mxu0 0.0
    %2424 = vmatpush1.msra.mxu0 %v2366
    %2425 = vmatprep.subr.mxu0 0.0
    %2426 = vmatpush1.msra.mxu0 %v2364
    %2427 = vmatprep.subr.mxu0 0.0
    %2428 = vmatpush1.msra.mxu0 %v2362
    %2429 = vmatprep.subr.mxu0 0.0
    %2430 = vmatpush1.msra.mxu0 %v2360
    %2431 = vmatprep.subr.mxu0 0.0
    %2432 = vmatpush1.msra.mxu0 %v2358
    %2433 = vmatprep.subr.mxu0 0.0
    %2434 = vmatpush1.msra.mxu0 %v2356
    %2435 = vmatprep.subr.mxu0 0.0
    %2436 = vmatpush2.msra.mxu0 0.0
    %2437 = vmatprep.subr.mxu0 0.0
    %2438 = vmatpush2.msra.mxu0 0.0
    %2439 = vmatprep.subr.mxu0 0.0
    %2440 = vmatpush2.msra.mxu0 0.0
    %2441 = vmatprep.subr.mxu0 0.0
    %2442 = vmatpush2.msra.mxu0 0.0
    %2443 = vmatprep.subr.mxu0 0.0
    %2444 = vmatpush2.msra.mxu0 0.0
    %2445 = vmatprep.subr.mxu0 0.0
    %2446 = vmatpush2.msra.mxu0 0.0
    %2447 = vmatprep.subr.mxu0 0.0
    %2448 = vmatpush2.msra.mxu0 0.0
    %2449 = vmatprep.subr.mxu0 0.0
    %2450 = vmatpush2.msra.mxu0 0.0
    %2451 = vmatprep.subr.mxu0 0.0
    %2452 = vmatpush2.msra.mxu0 0.0
    %2453 = vmatprep.subr.mxu0 0.0
    %2454 = vmatpush2.msra.mxu0 0.0
    %2455 = vmatprep.subr.mxu0 0.0
    %2456 = vmatpush2.msra.mxu0 0.0
    %2457 = vmatprep.subr.mxu0 0.0
    %2458 = vmatpush2.msra.mxu0 0.0
    %2459 = vmatprep.subr.mxu0 0.0
    %2460 = vmatpush2.msra.mxu0 0.0
    %2461 = vmatprep.subr.mxu0 0.0
    %2462 = vmatpush2.msra.mxu0 0.0
    %2463 = vmatprep.subr.mxu0 0.0
    %2464 = vmatpush2.msra.mxu0 0.0
    %2465 = vmatprep.subr.mxu0 0.0
    %2466 = vmatpush2.msra.mxu0 0.0
    %2467 = vmatprep.mubr.f32.mxu0 0.0
    %2468 = vmatmul.mubr.f32.gmra.mxu0 %v2380
    %v2469 = vpop.f32.mrf.mxu0
    %v2470 = vadd.f32 0.0, %v2469
    %v2471 = vpop.f32.mrf.mxu0
    %2472 = vmatprep.mubr.f32.mxu0 0.0
    %2473 = vmatmul.mubr.f32.gmra.mxu0 %v2383
    %v2474 = vpop.f32.mrf.mxu0
    %v2475 = vadd.f32 0.0, %v2474
    %v2476 = vpop.f32.mrf.mxu0
    %2477 = vmatprep.mubr.f32.mxu0 0.0
    %2478 = vmatmul.mubr.f32.gmra.mxu0 %v2386
    %v2479 = vpop.f32.mrf.mxu0
    %v2480 = vadd.f32 0.0, %v2479
    %v2481 = vpop.f32.mrf.mxu0
    %2482 = vmatprep.mubr.f32.mxu0 0.0
    %2483 = vmatmul.mubr.f32.gmra.mxu0 %v2389
    %v2484 = vpop.f32.mrf.mxu0
    %v2485 = vadd.f32 0.0, %v2484
    %v2486 = vpop.f32.mrf.mxu0
    %2487 = vmatprep.mubr.f32.mxu0 0.0
    %2488 = vmatmul.mubr.f32.gmra.mxu0 %v2392
    %v2489 = vpop.f32.mrf.mxu0
    %v2490 = vadd.f32 0.0, %v2489
    %v2491 = vpop.f32.mrf.mxu0
    %2492 = vmatprep.mubr.f32.mxu0 0.0
    %2493 = vmatmul.mubr.f32.gmra.mxu0 %v2395
    %v2494 = vpop.f32.mrf.mxu0
    %v2495 = vadd.f32 0.0, %v2494
    %v2496 = vpop.f32.mrf.mxu0
    %2497 = vmatprep.mubr.f32.mxu0 0.0
    %2498 = vmatmul.mubr.f32.gmra.mxu0 %v2398
    %v2499 = vpop.f32.mrf.mxu0
    %v2500 = vadd.f32 0.0, %v2499
    %v2501 = vpop.f32.mrf.mxu0
    %2502 = vmatprep.mubr.f32.mxu0 0.0
    %2503 = vmatmul.mubr.f32.gmra.mxu0 %v2401
    %v2504 = vpop.f32.mrf.mxu0
    %v2505 = vadd.f32 0.0, %v2504
    %v2506 = vpop.f32.mrf.mxu0
    %2507 = vdwg.mxu0
    %2516 = vrot.lane.b32.xlu0 %v2470, 24
    %v2517 = vpop.permute.xlu0 %2516
    %2518 = vrot.lane.b32.xlu0 %v2475, 24
    %v2519 = vpop.permute.xlu0 %2518
    %2520 = vrot.lane.b32.xlu0 %v2480, 24
    %v2521 = vpop.permute.xlu0 %2520
    %2522 = vrot.lane.b32.xlu0 %v2485, 24
    %v2523 = vpop.permute.xlu0 %2522
    %2524 = vrot.lane.b32.xlu0 %v2490, 24
    %v2525 = vpop.permute.xlu0 %2524
    %2526 = vrot.lane.b32.xlu0 %v2495, 24
    %v2527 = vpop.permute.xlu0 %2526
    %2528 = vrot.lane.b32.xlu0 %v2500, 24
    %v2529 = vpop.permute.xlu0 %2528
    %2530 = vrot.lane.b32.xlu0 %v2505, 24
    %v2531 = vpop.permute.xlu0 %2530
    %vm2540 = vcmask 261312
    %2541 = vst.msk [vmem:[#allocation2] sm:$0xff] %vm2540, %v2517
    %2542 = vst.msk [vmem:[#allocation2 + $0x8] sm:$0xff] %vm2540, %v2519
    %2543 = vst.msk [vmem:[#allocation2 + $0x10] sm:$0xff] %vm2540, %v2521
    %2544 = vst.msk [vmem:[#allocation2 + $0x18] sm:$0xff] %vm2540, %v2523
    %2545 = vst.msk [vmem:[#allocation2 + $0x20] sm:$0xff] %vm2540, %v2525
    %2546 = vst.msk [vmem:[#allocation2 + $0x28] sm:$0xff] %vm2540, %v2527
    %2547 = vst.msk [vmem:[#allocation2 + $0x30] sm:$0xff] %vm2540, %v2529
    %2548 = vst.msk [vmem:[#allocation2 + $0x38] sm:$0xff] %vm2540, %v2531
    %v2549 = vld [vmem:[#allocation2] sm:$0xff]
    %v2550 = vld [vmem:[#allocation2 + $0x8] sm:$0xff]
    %v2551 = vld [vmem:[#allocation2 + $0x10] sm:$0xff]
    %v2552 = vld [vmem:[#allocation2 + $0x18] sm:$0xff]
    %v2553 = vld [vmem:[#allocation2 + $0x20] sm:$0xff]
    %v2554 = vld [vmem:[#allocation2 + $0x28] sm:$0xff]
    %v2555 = vld [vmem:[#allocation2 + $0x30] sm:$0xff]
    %v2556 = vld [vmem:[#allocation2 + $0x38] sm:$0xff]
    %v2557 = vld [vmem:[%s9] sm:$0xff]
    %v2558 = vld [vmem:[%s9 + $0x8] sm:$0xff]
    %v2559 = vld [vmem:[%s9 + $0x10] sm:$0xff]
    %v2560 = vld [vmem:[%s9 + $0x18] sm:$0xff]
    %v2561 = vld [vmem:[%s10] sm:$0x1]
    %v2563 = vlaneseq
    %v2564 = vshrl.u32 %v2563, 7
    %v2565 = vsub.s32 0, %v2564
    %v2566 = vrot.slane %v2561, %v2565
    %v2569 = vsel %vm339, %v2549, 0
    %v2572 = vsel %vm339, %v2550, 0
    %v2575 = vsel %vm339, %v2551, 0
    %v2578 = vsel %vm339, %v2552, 0
    %v2581 = vsel %vm339, %v2553, 0
    %v2584 = vsel %vm339, %v2554, 0
    %v2587 = vsel %vm339, %v2555, 0
    %v2590 = vsel %vm339, %v2556, 0
    %2592 = vmatprep.subr.mxu0 0.0
    %2593 = vmatpush1.msra.mxu0 0.0
    %2594 = vmatprep.subr.mxu0 0.0
    %2595 = vmatpush1.msra.mxu0 0.0
    %2596 = vmatprep.subr.mxu0 0.0
    %2597 = vmatpush1.msra.mxu0 0.0
    %2598 = vmatprep.subr.mxu0 0.0
    %2599 = vmatpush1.msra.mxu0 0.0
    %2600 = vmatprep.subr.mxu0 0.0
    %2601 = vmatpush1.msra.mxu0 0.0
    %2602 = vmatprep.subr.mxu0 0.0
    %2603 = vmatpush1.msra.mxu0 0.0
    %2604 = vmatprep.subr.mxu0 0.0
    %2605 = vmatpush1.msra.mxu0 0.0
    %2606 = vmatprep.subr.mxu0 0.0
    %2607 = vmatpush1.msra.mxu0 0.0
    %2608 = vmatprep.subr.mxu0 0.0
    %2609 = vmatpush1.msra.mxu0 0.0
    %2610 = vmatprep.subr.mxu0 0.0
    %2611 = vmatpush1.msra.mxu0 0.0
    %2612 = vmatprep.subr.mxu0 0.0
    %2613 = vmatpush1.msra.mxu0 0.0
    %2614 = vmatprep.subr.mxu0 0.0
    %2615 = vmatpush1.msra.mxu0 0.0
    %2616 = vmatprep.subr.mxu0 0.0
    %2617 = vmatpush1.msra.mxu0 %v2560
    %2618 = vmatprep.subr.mxu0 0.0
    %2619 = vmatpush1.msra.mxu0 %v2559
    %2620 = vmatprep.subr.mxu0 0.0
    %2621 = vmatpush1.msra.mxu0 %v2558
    %2622 = vmatprep.subr.mxu0 0.0
    %2623 = vmatpush1.msra.mxu0 %v2557
    %2624 = vmatprep.subr.mxu0 0.0
    %2625 = vmatpush2.msra.mxu0 0.0
    %2626 = vmatprep.subr.mxu0 0.0
    %2627 = vmatpush2.msra.mxu0 0.0
    %2628 = vmatprep.subr.mxu0 0.0
    %2629 = vmatpush2.msra.mxu0 0.0
    %2630 = vmatprep.subr.mxu0 0.0
    %2631 = vmatpush2.msra.mxu0 0.0
    %2632 = vmatprep.subr.mxu0 0.0
    %2633 = vmatpush2.msra.mxu0 0.0
    %2634 = vmatprep.subr.mxu0 0.0
    %2635 = vmatpush2.msra.mxu0 0.0
    %2636 = vmatprep.subr.mxu0 0.0
    %2637 = vmatpush2.msra.mxu0 0.0
    %2638 = vmatprep.subr.mxu0 0.0
    %2639 = vmatpush2.msra.mxu0 0.0
    %2640 = vmatprep.subr.mxu0 0.0
    %2641 = vmatpush2.msra.mxu0 0.0
    %2642 = vmatprep.subr.mxu0 0.0
    %2643 = vmatpush2.msra.mxu0 0.0
    %2644 = vmatprep.subr.mxu0 0.0
    %2645 = vmatpush2.msra.mxu0 0.0
    %2646 = vmatprep.subr.mxu0 0.0
    %2647 = vmatpush2.msra.mxu0 0.0
    %2648 = vmatprep.subr.mxu0 0.0
    %2649 = vmatpush2.msra.mxu0 0.0
    %2650 = vmatprep.subr.mxu0 0.0
    %2651 = vmatpush2.msra.mxu0 0.0
    %2652 = vmatprep.subr.mxu0 0.0
    %2653 = vmatpush2.msra.mxu0 0.0
    %2654 = vmatprep.subr.mxu0 0.0
    %2655 = vmatpush2.msra.mxu0 0.0
    %2656 = vmatprep.mubr.f32.mxu0 0.0
    %2657 = vmatmul.mubr.f32.gmra.mxu0 %v2569
    %v2658 = vpop.f32.mrf.mxu0
    %v2659 = vadd.f32 %v2566, %v2658
    %v2660 = vpop.f32.mrf.mxu0
    %2661 = vmatprep.mubr.f32.mxu0 0.0
    %2662 = vmatmul.mubr.f32.gmra.mxu0 %v2572
    %v2663 = vpop.f32.mrf.mxu0
    %v2664 = vadd.f32 %v2566, %v2663
    %v2665 = vpop.f32.mrf.mxu0
    %2666 = vmatprep.mubr.f32.mxu0 0.0
    %2667 = vmatmul.mubr.f32.gmra.mxu0 %v2575
    %v2668 = vpop.f32.mrf.mxu0
    %v2669 = vadd.f32 %v2566, %v2668
    %v2670 = vpop.f32.mrf.mxu0
    %2671 = vmatprep.mubr.f32.mxu0 0.0
    %2672 = vmatmul.mubr.f32.gmra.mxu0 %v2578
    %v2673 = vpop.f32.mrf.mxu0
    %v2674 = vadd.f32 %v2566, %v2673
    %v2675 = vpop.f32.mrf.mxu0
    %2676 = vmatprep.mubr.f32.mxu0 0.0
    %2677 = vmatmul.mubr.f32.gmra.mxu0 %v2581
    %v2678 = vpop.f32.mrf.mxu0
    %v2679 = vadd.f32 %v2566, %v2678
    %v2680 = vpop.f32.mrf.mxu0
    %2681 = vmatprep.mubr.f32.mxu0 0.0
    %2682 = vmatmul.mubr.f32.gmra.mxu0 %v2584
    %v2683 = vpop.f32.mrf.mxu0
    %v2684 = vadd.f32 %v2566, %v2683
    %v2685 = vpop.f32.mrf.mxu0
    %2686 = vmatprep.mubr.f32.mxu0 0.0
    %2687 = vmatmul.mubr.f32.gmra.mxu0 %v2587
    %v2688 = vpop.f32.mrf.mxu0
    %v2689 = vadd.f32 %v2566, %v2688
    %v2690 = vpop.f32.mrf.mxu0
    %2691 = vmatprep.mubr.f32.mxu0 0.0
    %2692 = vmatmul.mubr.f32.gmra.mxu0 %v2590
    %v2693 = vpop.f32.mrf.mxu0
    %v2694 = vadd.f32 %v2566, %v2693
    %v2695 = vpop.f32.mrf.mxu0
    %2696 = vdwg.mxu0
    %v2697 = vadd.f32 %v2659, %v604
    %v2698 = vadd.f32 %v2664, %v605
    %v2699 = vadd.f32 %v2669, %v606
    %v2700 = vadd.f32 %v2674, %v607
    %v2701 = vadd.f32 %v2679, %v608
    %v2702 = vadd.f32 %v2684, %v609
    %v2703 = vadd.f32 %v2689, %v610
    %v2704 = vadd.f32 %v2694, %v611
    %v2705 = vld [vmem:[%s11] sm:$0x1]
    %v2706 = vld [vmem:[%s12] sm:$0x1]
    %v2707 = vsel %vm339, %v2697, 0.0
    %2708 = vadd.xlane.f32.xlu0 %v2707
    %v2709 = vpop.xlane.xlu0 %2708
    %v2710 = vsel %vm339, %v2698, 0.0
    %2711 = vadd.xlane.f32.xlu0 %v2710
    %v2712 = vpop.xlane.xlu0 %2711
    %v2713 = vsel %vm339, %v2699, 0.0
    %2714 = vadd.xlane.f32.xlu0 %v2713
    %v2715 = vpop.xlane.xlu0 %2714
    %v2716 = vsel %vm339, %v2700, 0.0
    %2717 = vadd.xlane.f32.xlu0 %v2716
    %v2718 = vpop.xlane.xlu0 %2717
    %v2719 = vsel %vm339, %v2701, 0.0
    %2720 = vadd.xlane.f32.xlu0 %v2719
    %v2721 = vpop.xlane.xlu0 %2720
    %v2722 = vsel %vm339, %v2702, 0.0
    %2723 = vadd.xlane.f32.xlu0 %v2722
    %v2724 = vpop.xlane.xlu0 %2723
    %v2725 = vsel %vm339, %v2703, 0.0
    %2726 = vadd.xlane.f32.xlu0 %v2725
    %v2727 = vpop.xlane.xlu0 %2726
    %v2728 = vsel %vm339, %v2704, 0.0
    %2729 = vadd.xlane.f32.xlu0 %v2728
    %v2730 = vpop.xlane.xlu0 %2729
    %v2731 = vmul.f32 %v2709, %v495
    %v2732 = vmul.f32 %v2712, %v495
    %v2733 = vmul.f32 %v2715, %v495
    %v2734 = vmul.f32 %v2718, %v495
    %v2735 = vmul.f32 %v2721, %v495
    %v2736 = vmul.f32 %v2724, %v495
    %v2737 = vmul.f32 %v2727, %v495
    %v2738 = vmul.f32 %v2730, %v495
    %v2739 = vsub.f32 %v2697, %v2731
    %v2740 = vsub.f32 %v2698, %v2732
    %v2741 = vsub.f32 %v2699, %v2733
    %v2742 = vsub.f32 %v2700, %v2734
    %v2743 = vsub.f32 %v2701, %v2735
    %v2744 = vsub.f32 %v2702, %v2736
    %v2745 = vsub.f32 %v2703, %v2737
    %v2746 = vsub.f32 %v2704, %v2738
    %v2747 = vmul.f32 %v2739, %v2739
    %v2748 = vmul.f32 %v2740, %v2740
    %v2749 = vmul.f32 %v2741, %v2741
    %v2750 = vmul.f32 %v2742, %v2742
    %v2751 = vmul.f32 %v2743, %v2743
    %v2752 = vmul.f32 %v2744, %v2744
    %v2753 = vmul.f32 %v2745, %v2745
    %v2754 = vmul.f32 %v2746, %v2746
    %v2755 = vsel %vm339, %v2747, 0.0
    %2756 = vadd.xlane.f32.xlu0 %v2755
    %v2757 = vpop.xlane.xlu0 %2756
    %v2758 = vsel %vm339, %v2748, 0.0
    %2759 = vadd.xlane.f32.xlu0 %v2758
    %v2760 = vpop.xlane.xlu0 %2759
    %v2761 = vsel %vm339, %v2749, 0.0
    %2762 = vadd.xlane.f32.xlu0 %v2761
    %v2763 = vpop.xlane.xlu0 %2762
    %v2764 = vsel %vm339, %v2750, 0.0
    %2765 = vadd.xlane.f32.xlu0 %v2764
    %v2766 = vpop.xlane.xlu0 %2765
    %v2767 = vsel %vm339, %v2751, 0.0
    %2768 = vadd.xlane.f32.xlu0 %v2767
    %v2769 = vpop.xlane.xlu0 %2768
    %v2770 = vsel %vm339, %v2752, 0.0
    %2771 = vadd.xlane.f32.xlu0 %v2770
    %v2772 = vpop.xlane.xlu0 %2771
    %v2773 = vsel %vm339, %v2753, 0.0
    %2774 = vadd.xlane.f32.xlu0 %v2773
    %v2775 = vpop.xlane.xlu0 %2774
    %v2776 = vsel %vm339, %v2754, 0.0
    %2777 = vadd.xlane.f32.xlu0 %v2776
    %v2778 = vpop.xlane.xlu0 %2777
    %v2779 = vmul.f32 %v2757, %v495
    %v2780 = vmul.f32 %v2760, %v495
    %v2781 = vmul.f32 %v2763, %v495
    %v2782 = vmul.f32 %v2766, %v495
    %v2783 = vmul.f32 %v2769, %v495
    %v2784 = vmul.f32 %v2772, %v495
    %v2785 = vmul.f32 %v2775, %v495
    %v2786 = vmul.f32 %v2778, %v495
    %v2787 = vadd.f32 %v2779, 1e-05
    %v2788 = vadd.f32 %v2780, 1e-05
    %v2789 = vadd.f32 %v2781, 1e-05
    %v2790 = vadd.f32 %v2782, 1e-05
    %v2791 = vadd.f32 %v2783, 1e-05
    %v2792 = vadd.f32 %v2784, 1e-05
    %v2793 = vadd.f32 %v2785, 1e-05
    %v2794 = vadd.f32 %v2786, 1e-05
    %v2795 = vrsqrt.pop %v2787
    %v2796 = vrsqrt.pop %v2788
    %v2797 = vrsqrt.pop %v2789
    %v2798 = vrsqrt.pop %v2790
    %v2799 = vrsqrt.pop %v2791
    %v2800 = vrsqrt.pop %v2792
    %v2801 = vrsqrt.pop %v2793
    %v2802 = vrsqrt.pop %v2794
    %v2803 = vmul.f32 %v2739, %v2795
    %v2804 = vmul.f32 %v2740, %v2796
    %v2805 = vmul.f32 %v2741, %v2797
    %v2806 = vmul.f32 %v2742, %v2798
    %v2807 = vmul.f32 %v2743, %v2799
    %v2808 = vmul.f32 %v2744, %v2800
    %v2809 = vmul.f32 %v2745, %v2801
    %v2810 = vmul.f32 %v2746, %v2802
    %v2812 = vlaneseq
    %v2813 = vshrl.u32 %v2812, 7
    %v2814 = vsub.s32 0, %v2813
    %v2815 = vrot.slane %v2705, %v2814
    %v2817 = vmul.f32 %v2803, %v2815
    %v2818 = vmul.f32 %v2804, %v2815
    %v2819 = vmul.f32 %v2805, %v2815
    %v2820 = vmul.f32 %v2806, %v2815
    %v2821 = vmul.f32 %v2807, %v2815
    %v2822 = vmul.f32 %v2808, %v2815
    %v2823 = vmul.f32 %v2809, %v2815
    %v2824 = vmul.f32 %v2810, %v2815
    %v2826 = vlaneseq
    %v2827 = vshrl.u32 %v2826, 7
    %v2828 = vsub.s32 0, %v2827
    %v2829 = vrot.slane %v2706, %v2828
    %v2831 = vadd.f32 %v2817, %v2829
    %v2832 = vadd.f32 %v2818, %v2829
    %v2833 = vadd.f32 %v2819, %v2829
    %v2834 = vadd.f32 %v2820, %v2829
    %v2835 = vadd.f32 %v2821, %v2829
    %v2836 = vadd.f32 %v2822, %v2829
    %v2837 = vadd.f32 %v2823, %v2829
    %v2838 = vadd.f32 %v2824, %v2829
    %v2839 = vld [vmem:[#allocation14] sm:$0xff]
    %v2840 = vld [vmem:[#allocation14 + $0x8] sm:$0xff]
    %v2841 = vld [vmem:[#allocation14 + $0x10] sm:$0xff]
    %v2842 = vld [vmem:[#allocation14 + $0x18] sm:$0xff]
    %v2843 = vld [vmem:[%s14] sm:$0x1]
    %v2845 = vlaneseq
    %v2846 = vshrl.u32 %v2845, 7
    %v2847 = vsub.s32 0, %v2846
    %v2848 = vrot.slane %v2843, %v2847
    %v2851 = vsel %vm339, %v2831, 0
    %v2854 = vsel %vm339, %v2832, 0
    %v2857 = vsel %vm339, %v2833, 0
    %v2860 = vsel %vm339, %v2834, 0
    %v2863 = vsel %vm339, %v2835, 0
    %v2866 = vsel %vm339, %v2836, 0
    %v2869 = vsel %vm339, %v2837, 0
    %v2872 = vsel %vm339, %v2838, 0
    %2874 = vmatprep.subr.mxu0 0.0
    %2875 = vmatpush1.msra.mxu0 0.0
    %2876 = vmatprep.subr.mxu0 0.0
    %2877 = vmatpush1.msra.mxu0 0.0
    %2878 = vmatprep.subr.mxu0 0.0
    %2879 = vmatpush1.msra.mxu0 0.0
    %2880 = vmatprep.subr.mxu0 0.0
    %2881 = vmatpush1.msra.mxu0 0.0
    %2882 = vmatprep.subr.mxu0 0.0
    %2883 = vmatpush1.msra.mxu0 0.0
    %2884 = vmatprep.subr.mxu0 0.0
    %2885 = vmatpush1.msra.mxu0 0.0
    %2886 = vmatprep.subr.mxu0 0.0
    %2887 = vmatpush1.msra.mxu0 0.0
    %2888 = vmatprep.subr.mxu0 0.0
    %2889 = vmatpush1.msra.mxu0 0.0
    %2890 = vmatprep.subr.mxu0 0.0
    %2891 = vmatpush1.msra.mxu0 0.0
    %2892 = vmatprep.subr.mxu0 0.0
    %2893 = vmatpush1.msra.mxu0 0.0
    %2894 = vmatprep.subr.mxu0 0.0
    %2895 = vmatpush1.msra.mxu0 0.0
    %2896 = vmatprep.subr.mxu0 0.0
    %2897 = vmatpush1.msra.mxu0 0.0
    %2898 = vmatprep.subr.mxu0 0.0
    %2899 = vmatpush1.msra.mxu0 %v2842
    %2900 = vmatprep.subr.mxu0 0.0
    %2901 = vmatpush1.msra.mxu0 %v2841
    %2902 = vmatprep.subr.mxu0 0.0
    %2903 = vmatpush1.msra.mxu0 %v2840
    %2904 = vmatprep.subr.mxu0 0.0
    %2905 = vmatpush1.msra.mxu0 %v2839
    %2906 = vmatprep.subr.mxu0 0.0
    %2907 = vmatpush2.msra.mxu0 0.0
    %2908 = vmatprep.subr.mxu0 0.0
    %2909 = vmatpush2.msra.mxu0 0.0
    %2910 = vmatprep.subr.mxu0 0.0
    %2911 = vmatpush2.msra.mxu0 0.0
    %2912 = vmatprep.subr.mxu0 0.0
    %2913 = vmatpush2.msra.mxu0 0.0
    %2914 = vmatprep.subr.mxu0 0.0
    %2915 = vmatpush2.msra.mxu0 0.0
    %2916 = vmatprep.subr.mxu0 0.0
    %2917 = vmatpush2.msra.mxu0 0.0
    %2918 = vmatprep.subr.mxu0 0.0
    %2919 = vmatpush2.msra.mxu0 0.0
    %2920 = vmatprep.subr.mxu0 0.0
    %2921 = vmatpush2.msra.mxu0 0.0
    %2922 = vmatprep.subr.mxu0 0.0
    %2923 = vmatpush2.msra.mxu0 0.0
    %2924 = vmatprep.subr.mxu0 0.0
    %2925 = vmatpush2.msra.mxu0 0.0
    %2926 = vmatprep.subr.mxu0 0.0
    %2927 = vmatpush2.msra.mxu0 0.0
    %2928 = vmatprep.subr.mxu0 0.0
    %2929 = vmatpush2.msra.mxu0 0.0
    %2930 = vmatprep.subr.mxu0 0.0
    %2931 = vmatpush2.msra.mxu0 0.0
    %2932 = vmatprep.subr.mxu0 0.0
    %2933 = vmatpush2.msra.mxu0 0.0
    %2934 = vmatprep.subr.mxu0 0.0
    %2935 = vmatpush2.msra.mxu0 0.0
    %2936 = vmatprep.subr.mxu0 0.0
    %2937 = vmatpush2.msra.mxu0 0.0
    %2938 = vmatprep.mubr.f32.mxu0 0.0
    %2939 = vmatmul.mubr.f32.gmra.mxu0 %v2851
    %v2940 = vpop.f32.mrf.mxu0
    %v2941 = vadd.f32 %v2848, %v2940
    %v2942 = vpop.f32.mrf.mxu0
    %2943 = vmatprep.mubr.f32.mxu0 0.0
    %2944 = vmatmul.mubr.f32.gmra.mxu0 %v2854
    %v2945 = vpop.f32.mrf.mxu0
    %v2946 = vadd.f32 %v2848, %v2945
    %v2947 = vpop.f32.mrf.mxu0
    %2948 = vmatprep.mubr.f32.mxu0 0.0
    %2949 = vmatmul.mubr.f32.gmra.mxu0 %v2857
    %v2950 = vpop.f32.mrf.mxu0
    %v2951 = vadd.f32 %v2848, %v2950
    %v2952 = vpop.f32.mrf.mxu0
    %2953 = vmatprep.mubr.f32.mxu0 0.0
    %2954 = vmatmul.mubr.f32.gmra.mxu0 %v2860
    %v2955 = vpop.f32.mrf.mxu0
    %v2956 = vadd.f32 %v2848, %v2955
    %v2957 = vpop.f32.mrf.mxu0
    %2958 = vmatprep.mubr.f32.mxu0 0.0
    %2959 = vmatmul.mubr.f32.gmra.mxu0 %v2863
    %v2960 = vpop.f32.mrf.mxu0
    %v2961 = vadd.f32 %v2848, %v2960
    %v2962 = vpop.f32.mrf.mxu0
    %2963 = vmatprep.mubr.f32.mxu0 0.0
    %2964 = vmatmul.mubr.f32.gmra.mxu0 %v2866
    %v2965 = vpop.f32.mrf.mxu0
    %v2966 = vadd.f32 %v2848, %v2965
    %v2967 = vpop.f32.mrf.mxu0
    %2968 = vmatprep.mubr.f32.mxu0 0.0
    %2969 = vmatmul.mubr.f32.gmra.mxu0 %v2869
    %v2970 = vpop.f32.mrf.mxu0
    %v2971 = vadd.f32 %v2848, %v2970
    %v2972 = vpop.f32.mrf.mxu0
    %2973 = vmatprep.mubr.f32.mxu0 0.0
    %2974 = vmatmul.mubr.f32.gmra.mxu0 %v2872
    %v2975 = vpop.f32.mrf.mxu0
    %v2976 = vadd.f32 %v2848, %v2975
    %v2977 = vpop.f32.mrf.mxu0
    %2978 = vdwg.mxu0
    %2987 = vrot.lane.b32.xlu0 %v2941, 96
    %v2988 = vpop.permute.xlu0 %2987
    %2989 = vrot.lane.b32.xlu0 %v2946, 96
    %v2990 = vpop.permute.xlu0 %2989
    %2991 = vrot.lane.b32.xlu0 %v2951, 96
    %v2992 = vpop.permute.xlu0 %2991
    %2993 = vrot.lane.b32.xlu0 %v2956, 96
    %v2994 = vpop.permute.xlu0 %2993
    %2995 = vrot.lane.b32.xlu0 %v2961, 96
    %v2996 = vpop.permute.xlu0 %2995
    %2997 = vrot.lane.b32.xlu0 %v2966, 96
    %v2998 = vpop.permute.xlu0 %2997
    %2999 = vrot.lane.b32.xlu0 %v2971, 96
    %v3000 = vpop.permute.xlu0 %2999
    %3001 = vrot.lane.b32.xlu0 %v2976, 96
    %v3002 = vpop.permute.xlu0 %3001
    %v3003 = vsel %vm776, %v2941, 0
    %v3005 = vsel %vm776, %v2946, 0
    %v3007 = vsel %vm776, %v2951, 0
    %v3009 = vsel %vm776, %v2956, 0
    %v3011 = vsel %vm776, %v2961, 0
    %v3013 = vsel %vm776, %v2966, 0
    %v3015 = vsel %vm776, %v2971, 0
    %v3017 = vsel %vm776, %v2976, 0
    %v3019 = vsel %vm776, %v2988, 0
    %v3021 = vsel %vm776, %v2990, 0
    %v3023 = vsel %vm776, %v2992, 0
    %v3025 = vsel %vm776, %v2994, 0
    %v3027 = vsel %vm776, %v2996, 0
    %v3029 = vsel %vm776, %v2998, 0
    %v3031 = vsel %vm776, %v3000, 0
    %v3033 = vsel %vm776, %v3002, 0
    %3035 = vmatprep.subr.mxu0 0.0
    %3036 = vmatpush1.xpose.msra.mxu0 0.0
    %3037 = vmatprep.subr.mxu0 0.0
    %3038 = vmatpush1.xpose.msra.mxu0 0.0
    %3039 = vmatprep.subr.mxu0 0.0
    %3040 = vmatpush1.xpose.msra.mxu0 0.0
    %3041 = vmatprep.subr.mxu0 0.0
    %3042 = vmatpush1.xpose.msra.mxu0 0.0
    %3043 = vmatprep.subr.mxu0 0.0
    %3044 = vmatpush1.xpose.msra.mxu0 0.0
    %3045 = vmatprep.subr.mxu0 0.0
    %3046 = vmatpush1.xpose.msra.mxu0 0.0
    %3047 = vmatprep.subr.mxu0 0.0
    %3048 = vmatpush1.xpose.msra.mxu0 0.0
    %3049 = vmatprep.subr.mxu0 0.0
    %3050 = vmatpush1.xpose.msra.mxu0 0.0
    %3051 = vmatprep.subr.mxu0 0.0
    %3052 = vmatpush1.xpose.msra.mxu0 %v3033
    %3053 = vmatprep.subr.mxu0 0.0
    %3054 = vmatpush1.xpose.msra.mxu0 %v3031
    %3055 = vmatprep.subr.mxu0 0.0
    %3056 = vmatpush1.xpose.msra.mxu0 %v3029
    %3057 = vmatprep.subr.mxu0 0.0
    %3058 = vmatpush1.xpose.msra.mxu0 %v3027
    %3059 = vmatprep.subr.mxu0 0.0
    %3060 = vmatpush1.xpose.msra.mxu0 %v3025
    %3061 = vmatprep.subr.mxu0 0.0
    %3062 = vmatpush1.xpose.msra.mxu0 %v3023
    %3063 = vmatprep.subr.mxu0 0.0
    %3064 = vmatpush1.xpose.msra.mxu0 %v3021
    %3065 = vmatprep.subr.mxu0 0.0
    %3066 = vmatpush1.xpose.msra.mxu0 %v3019
    %3067 = vmatprep.subr.mxu0 0.0
    %3068 = vmatpush2.xpose.msra.mxu0 0.0
    %3069 = vmatprep.subr.mxu0 0.0
    %3070 = vmatpush2.xpose.msra.mxu0 0.0
    %3071 = vmatprep.subr.mxu0 0.0
    %3072 = vmatpush2.xpose.msra.mxu0 0.0
    %3073 = vmatprep.subr.mxu0 0.0
    %3074 = vmatpush2.xpose.msra.mxu0 0.0
    %3075 = vmatprep.subr.mxu0 0.0
    %3076 = vmatpush2.xpose.msra.mxu0 0.0
    %3077 = vmatprep.subr.mxu0 0.0
    %3078 = vmatpush2.xpose.msra.mxu0 0.0
    %3079 = vmatprep.subr.mxu0 0.0
    %3080 = vmatpush2.xpose.msra.mxu0 0.0
    %3081 = vmatprep.subr.mxu0 0.0
    %3082 = vmatpush2.xpose.msra.mxu0 0.0
    %3083 = vmatprep.subr.mxu0 0.0
    %3084 = vmatpush2.xpose.msra.mxu0 0.0
    %3085 = vmatprep.subr.mxu0 0.0
    %3086 = vmatpush2.xpose.msra.mxu0 0.0
    %3087 = vmatprep.subr.mxu0 0.0
    %3088 = vmatpush2.xpose.msra.mxu0 0.0
    %3089 = vmatprep.subr.mxu0 0.0
    %3090 = vmatpush2.xpose.msra.mxu0 0.0
    %3091 = vmatprep.subr.mxu0 0.0
    %3092 = vmatpush2.xpose.msra.mxu0 0.0
    %3093 = vmatprep.subr.mxu0 0.0
    %3094 = vmatpush2.xpose.msra.mxu0 0.0
    %3095 = vmatprep.subr.mxu0 0.0
    %3096 = vmatpush2.xpose.msra.mxu0 0.0
    %3097 = vmatprep.subr.mxu0 0.0
    %3098 = vmatpush2.xpose.msra.mxu0 0.0
    %3099 = vmatprep.mubr.f32.mxu0 0.0
    %3100 = vmatmul.mubr.f32.gmra.mxu0 %v3003
    %v3101 = vpop.f32.mrf.mxu0
    %v3102 = vadd.f32 0.0, %v3101
    %v3103 = vpop.f32.mrf.mxu0
    %3104 = vmatprep.mubr.f32.mxu0 0.0
    %3105 = vmatmul.mubr.f32.gmra.mxu0 %v3005
    %v3106 = vpop.f32.mrf.mxu0
    %v3107 = vadd.f32 0.0, %v3106
    %v3108 = vpop.f32.mrf.mxu0
    %3109 = vmatprep.mubr.f32.mxu0 0.0
    %3110 = vmatmul.mubr.f32.gmra.mxu0 %v3007
    %v3111 = vpop.f32.mrf.mxu0
    %v3112 = vadd.f32 0.0, %v3111
    %v3113 = vpop.f32.mrf.mxu0
    %3114 = vmatprep.mubr.f32.mxu0 0.0
    %3115 = vmatmul.mubr.f32.gmra.mxu0 %v3009
    %v3116 = vpop.f32.mrf.mxu0
    %v3117 = vadd.f32 0.0, %v3116
    %v3118 = vpop.f32.mrf.mxu0
    %3119 = vmatprep.mubr.f32.mxu0 0.0
    %3120 = vmatmul.mubr.f32.gmra.mxu0 %v3011
    %v3121 = vpop.f32.mrf.mxu0
    %v3122 = vadd.f32 0.0, %v3121
    %v3123 = vpop.f32.mrf.mxu0
    %3124 = vmatprep.mubr.f32.mxu0 0.0
    %3125 = vmatmul.mubr.f32.gmra.mxu0 %v3013
    %v3126 = vpop.f32.mrf.mxu0
    %v3127 = vadd.f32 0.0, %v3126
    %v3128 = vpop.f32.mrf.mxu0
    %3129 = vmatprep.mubr.f32.mxu0 0.0
    %3130 = vmatmul.mubr.f32.gmra.mxu0 %v3015
    %v3131 = vpop.f32.mrf.mxu0
    %v3132 = vadd.f32 0.0, %v3131
    %v3133 = vpop.f32.mrf.mxu0
    %3134 = vmatprep.mubr.f32.mxu0 0.0
    %3135 = vmatmul.mubr.f32.gmra.mxu0 %v3017
    %v3136 = vpop.f32.mrf.mxu0
    %v3137 = vadd.f32 0.0, %v3136
    %v3138 = vpop.f32.mrf.mxu0
    %3139 = vdwg.mxu0
    %v3140 = vmul.f32 %v3102, 0.35355338
    %v3141 = vmul.f32 %v3107, 0.35355338
    %v3142 = vmul.f32 %v3112, 0.35355338
    %v3143 = vmul.f32 %v3117, 0.35355338
    %v3144 = vmul.f32 %v3122, 0.35355338
    %v3145 = vmul.f32 %v3127, 0.35355338
    %v3146 = vmul.f32 %v3132, 0.35355338
    %v3147 = vmul.f32 %v3137, 0.35355338
    %v3148 = vsel %vm922, %v3140, -inf
    %3149 = vmax.xlane.f32.xlu0 %v3148
    %v3150 = vpop.xlane.xlu0 %3149
    %v3151 = vsel %vm922, %v3141, -inf
    %3152 = vmax.xlane.f32.xlu0 %v3151
    %v3153 = vpop.xlane.xlu0 %3152
    %v3154 = vsel %vm922, %v3142, -inf
    %3155 = vmax.xlane.f32.xlu0 %v3154
    %v3156 = vpop.xlane.xlu0 %3155
    %v3157 = vsel %vm922, %v3143, -inf
    %3158 = vmax.xlane.f32.xlu0 %v3157
    %v3159 = vpop.xlane.xlu0 %3158
    %v3160 = vsel %vm922, %v3144, -inf
    %3161 = vmax.xlane.f32.xlu0 %v3160
    %v3162 = vpop.xlane.xlu0 %3161
    %v3163 = vsel %vm922, %v3145, -inf
    %3164 = vmax.xlane.f32.xlu0 %v3163
    %v3165 = vpop.xlane.xlu0 %3164
    %v3166 = vsel %vm922, %v3146, -inf
    %3167 = vmax.xlane.f32.xlu0 %v3166
    %v3168 = vpop.xlane.xlu0 %3167
    %v3169 = vsel %vm922, %v3147, -inf
    %3170 = vmax.xlane.f32.xlu0 %v3169
    %v3171 = vpop.xlane.xlu0 %3170
    %v3172 = vsub.f32 %v3140, %v3150
    %v3173 = vsub.f32 %v3141, %v3153
    %v3174 = vsub.f32 %v3142, %v3156
    %v3175 = vsub.f32 %v3143, %v3159
    %v3176 = vsub.f32 %v3144, %v3162
    %v3177 = vsub.f32 %v3145, %v3165
    %v3178 = vsub.f32 %v3146, %v3168
    %v3179 = vsub.f32 %v3147, %v3171
    %v3180 = vmul.f32 %v3172, 1.442695
    %v3181 = vpow.pop %v3180
    %v3182 = vmul.f32 %v3173, 1.442695
    %v3183 = vpow.pop %v3182
    %v3184 = vmul.f32 %v3174, 1.442695
    %v3185 = vpow.pop %v3184
    %v3186 = vmul.f32 %v3175, 1.442695
    %v3187 = vpow.pop %v3186
    %v3188 = vmul.f32 %v3176, 1.442695
    %v3189 = vpow.pop %v3188
    %v3190 = vmul.f32 %v3177, 1.442695
    %v3191 = vpow.pop %v3190
    %v3192 = vmul.f32 %v3178, 1.442695
    %v3193 = vpow.pop %v3192
    %v3194 = vmul.f32 %v3179, 1.442695
    %v3195 = vpow.pop %v3194
    %v3196 = vsel %vm922, %v3181, 0.0
    %3197 = vadd.xlane.f32.xlu0 %v3196
    %v3198 = vpop.xlane.xlu0 %3197
    %v3199 = vsel %vm922, %v3183, 0.0
    %3200 = vadd.xlane.f32.xlu0 %v3199
    %v3201 = vpop.xlane.xlu0 %3200
    %v3202 = vsel %vm922, %v3185, 0.0
    %3203 = vadd.xlane.f32.xlu0 %v3202
    %v3204 = vpop.xlane.xlu0 %3203
    %v3205 = vsel %vm922, %v3187, 0.0
    %3206 = vadd.xlane.f32.xlu0 %v3205
    %v3207 = vpop.xlane.xlu0 %3206
    %v3208 = vsel %vm922, %v3189, 0.0
    %3209 = vadd.xlane.f32.xlu0 %v3208
    %v3210 = vpop.xlane.xlu0 %3209
    %v3211 = vsel %vm922, %v3191, 0.0
    %3212 = vadd.xlane.f32.xlu0 %v3211
    %v3213 = vpop.xlane.xlu0 %3212
    %v3214 = vsel %vm922, %v3193, 0.0
    %3215 = vadd.xlane.f32.xlu0 %v3214
    %v3216 = vpop.xlane.xlu0 %3215
    %v3217 = vsel %vm922, %v3195, 0.0
    %3218 = vadd.xlane.f32.xlu0 %v3217
    %v3219 = vpop.xlane.xlu0 %3218
    %v3220 = vrcp.pop %v3198
    %v3221 = vrcp.pop %v3201
    %v3222 = vrcp.pop %v3204
    %v3223 = vrcp.pop %v3207
    %v3224 = vrcp.pop %v3210
    %v3225 = vrcp.pop %v3213
    %v3226 = vrcp.pop %v3216
    %v3227 = vrcp.pop %v3219
    %v3228 = vmul.f32 %v3181, %v3220
    %v3229 = vmul.f32 %v3183, %v3221
    %v3230 = vmul.f32 %v3185, %v3222
    %v3231 = vmul.f32 %v3187, %v3223
    %v3232 = vmul.f32 %v3189, %v3224
    %v3233 = vmul.f32 %v3191, %v3225
    %v3234 = vmul.f32 %v3193, %v3226
    %v3235 = vmul.f32 %v3195, %v3227
    %3236 = vrot.lane.b32.xlu0 %v2941, 64
    %v3237 = vpop.permute.xlu0 %3236
    %3238 = vrot.lane.b32.xlu0 %v2946, 64
    %v3239 = vpop.permute.xlu0 %3238
    %3240 = vrot.lane.b32.xlu0 %v2951, 64
    %v3241 = vpop.permute.xlu0 %3240
    %3242 = vrot.lane.b32.xlu0 %v2956, 64
    %v3243 = vpop.permute.xlu0 %3242
    %3244 = vrot.lane.b32.xlu0 %v2961, 64
    %v3245 = vpop.permute.xlu0 %3244
    %3246 = vrot.lane.b32.xlu0 %v2966, 64
    %v3247 = vpop.permute.xlu0 %3246
    %3248 = vrot.lane.b32.xlu0 %v2971, 64
    %v3249 = vpop.permute.xlu0 %3248
    %3250 = vrot.lane.b32.xlu0 %v2976, 64
    %v3251 = vpop.permute.xlu0 %3250
    %v3261 = vsel %vm922, %v3228, 0
    %v3264 = vsel %vm922, %v3229, 0
    %v3267 = vsel %vm922, %v3230, 0
    %v3270 = vsel %vm922, %v3231, 0
    %v3273 = vsel %vm922, %v3232, 0
    %v3276 = vsel %vm922, %v3233, 0
    %v3279 = vsel %vm922, %v3234, 0
    %v3282 = vsel %vm922, %v3235, 0
    %3284 = vmatprep.subr.mxu0 0.0
    %3285 = vmatpush1.msra.mxu0 0.0
    %3286 = vmatprep.subr.mxu0 0.0
    %3287 = vmatpush1.msra.mxu0 0.0
    %3288 = vmatprep.subr.mxu0 0.0
    %3289 = vmatpush1.msra.mxu0 0.0
    %3290 = vmatprep.subr.mxu0 0.0
    %3291 = vmatpush1.msra.mxu0 0.0
    %3292 = vmatprep.subr.mxu0 0.0
    %3293 = vmatpush1.msra.mxu0 0.0
    %3294 = vmatprep.subr.mxu0 0.0
    %3295 = vmatpush1.msra.mxu0 0.0
    %3296 = vmatprep.subr.mxu0 0.0
    %3297 = vmatpush1.msra.mxu0 0.0
    %3298 = vmatprep.subr.mxu0 0.0
    %3299 = vmatpush1.msra.mxu0 0.0
    %3300 = vmatprep.subr.mxu0 0.0
    %3301 = vmatpush1.msra.mxu0 %v3251
    %3302 = vmatprep.subr.mxu0 0.0
    %3303 = vmatpush1.msra.mxu0 %v3249
    %3304 = vmatprep.subr.mxu0 0.0
    %3305 = vmatpush1.msra.mxu0 %v3247
    %3306 = vmatprep.subr.mxu0 0.0
    %3307 = vmatpush1.msra.mxu0 %v3245
    %3308 = vmatprep.subr.mxu0 0.0
    %3309 = vmatpush1.msra.mxu0 %v3243
    %3310 = vmatprep.subr.mxu0 0.0
    %3311 = vmatpush1.msra.mxu0 %v3241
    %3312 = vmatprep.subr.mxu0 0.0
    %3313 = vmatpush1.msra.mxu0 %v3239
    %3314 = vmatprep.subr.mxu0 0.0
    %3315 = vmatpush1.msra.mxu0 %v3237
    %3316 = vmatprep.subr.mxu0 0.0
    %3317 = vmatpush2.msra.mxu0 0.0
    %3318 = vmatprep.subr.mxu0 0.0
    %3319 = vmatpush2.msra.mxu0 0.0
    %3320 = vmatprep.subr.mxu0 0.0
    %3321 = vmatpush2.msra.mxu0 0.0
    %3322 = vmatprep.subr.mxu0 0.0
    %3323 = vmatpush2.msra.mxu0 0.0
    %3324 = vmatprep.subr.mxu0 0.0
    %3325 = vmatpush2.msra.mxu0 0.0
    %3326 = vmatprep.subr.mxu0 0.0
    %3327 = vmatpush2.msra.mxu0 0.0
    %3328 = vmatprep.subr.mxu0 0.0
    %3329 = vmatpush2.msra.mxu0 0.0
    %3330 = vmatprep.subr.mxu0 0.0
    %3331 = vmatpush2.msra.mxu0 0.0
    %3332 = vmatprep.subr.mxu0 0.0
    %3333 = vmatpush2.msra.mxu0 0.0
    %3334 = vmatprep.subr.mxu0 0.0
    %3335 = vmatpush2.msra.mxu0 0.0
    %3336 = vmatprep.subr.mxu0 0.0
    %3337 = vmatpush2.msra.mxu0 0.0
    %3338 = vmatprep.subr.mxu0 0.0
    %3339 = vmatpush2.msra.mxu0 0.0
    %3340 = vmatprep.subr.mxu0 0.0
    %3341 = vmatpush2.msra.mxu0 0.0
    %3342 = vmatprep.subr.mxu0 0.0
    %3343 = vmatpush2.msra.mxu0 0.0
    %3344 = vmatprep.subr.mxu0 0.0
    %3345 = vmatpush2.msra.mxu0 0.0
    %3346 = vmatprep.subr.mxu0 0.0
    %3347 = vmatpush2.msra.mxu0 0.0
    %3348 = vmatprep.mubr.f32.mxu0 0.0
    %3349 = vmatmul.mubr.f32.gmra.mxu0 %v3261
    %v3350 = vpop.f32.mrf.mxu0
    %v3351 = vadd.f32 0.0, %v3350
    %v3352 = vpop.f32.mrf.mxu0
    %3353 = vmatprep.mubr.f32.mxu0 0.0
    %3354 = vmatmul.mubr.f32.gmra.mxu0 %v3264
    %v3355 = vpop.f32.mrf.mxu0
    %v3356 = vadd.f32 0.0, %v3355
    %v3357 = vpop.f32.mrf.mxu0
    %3358 = vmatprep.mubr.f32.mxu0 0.0
    %3359 = vmatmul.mubr.f32.gmra.mxu0 %v3267
    %v3360 = vpop.f32.mrf.mxu0
    %v3361 = vadd.f32 0.0, %v3360
    %v3362 = vpop.f32.mrf.mxu0
    %3363 = vmatprep.mubr.f32.mxu0 0.0
    %3364 = vmatmul.mubr.f32.gmra.mxu0 %v3270
    %v3365 = vpop.f32.mrf.mxu0
    %v3366 = vadd.f32 0.0, %v3365
    %v3367 = vpop.f32.mrf.mxu0
    %3368 = vmatprep.mubr.f32.mxu0 0.0
    %3369 = vmatmul.mubr.f32.gmra.mxu0 %v3273
    %v3370 = vpop.f32.mrf.mxu0
    %v3371 = vadd.f32 0.0, %v3370
    %v3372 = vpop.f32.mrf.mxu0
    %3373 = vmatprep.mubr.f32.mxu0 0.0
    %3374 = vmatmul.mubr.f32.gmra.mxu0 %v3276
    %v3375 = vpop.f32.mrf.mxu0
    %v3376 = vadd.f32 0.0, %v3375
    %v3377 = vpop.f32.mrf.mxu0
    %3378 = vmatprep.mubr.f32.mxu0 0.0
    %3379 = vmatmul.mubr.f32.gmra.mxu0 %v3279
    %v3380 = vpop.f32.mrf.mxu0
    %v3381 = vadd.f32 0.0, %v3380
    %v3382 = vpop.f32.mrf.mxu0
    %3383 = vmatprep.mubr.f32.mxu0 0.0
    %3384 = vmatmul.mubr.f32.gmra.mxu0 %v3282
    %v3385 = vpop.f32.mrf.mxu0
    %v3386 = vadd.f32 0.0, %v3385
    %v3387 = vpop.f32.mrf.mxu0
    %3388 = vdwg.mxu0
    %3389 = vst.msk [vmem:[#allocation2] sm:$0xff] %vm776, %v3351
    %3390 = vst.msk [vmem:[#allocation2 + $0x8] sm:$0xff] %vm776, %v3356
    %3391 = vst.msk [vmem:[#allocation2 + $0x10] sm:$0xff] %vm776, %v3361
    %3392 = vst.msk [vmem:[#allocation2 + $0x18] sm:$0xff] %vm776, %v3366
    %3393 = vst.msk [vmem:[#allocation2 + $0x20] sm:$0xff] %vm776, %v3371
    %3394 = vst.msk [vmem:[#allocation2 + $0x28] sm:$0xff] %vm776, %v3376
    %3395 = vst.msk [vmem:[#allocation2 + $0x30] sm:$0xff] %vm776, %v3381
    %3396 = vst.msk [vmem:[#allocation2 + $0x38] sm:$0xff] %vm776, %v3386
    %3397 = vrot.lane.b32.xlu0 %v2941, 120
    %v3398 = vpop.permute.xlu0 %3397
    %3399 = vrot.lane.b32.xlu0 %v2946, 120
    %v3400 = vpop.permute.xlu0 %3399
    %3401 = vrot.lane.b32.xlu0 %v2951, 120
    %v3402 = vpop.permute.xlu0 %3401
    %3403 = vrot.lane.b32.xlu0 %v2956, 120
    %v3404 = vpop.permute.xlu0 %3403
    %3405 = vrot.lane.b32.xlu0 %v2961, 120
    %v3406 = vpop.permute.xlu0 %3405
    %3407 = vrot.lane.b32.xlu0 %v2966, 120
    %v3408 = vpop.permute.xlu0 %3407
    %3409 = vrot.lane.b32.xlu0 %v2971, 120
    %v3410 = vpop.permute.xlu0 %3409
    %3411 = vrot.lane.b32.xlu0 %v2976, 120
    %v3412 = vpop.permute.xlu0 %3411
    %3413 = vrot.lane.b32.xlu0 %v2941, 88
    %v3414 = vpop.permute.xlu0 %3413
    %3415 = vrot.lane.b32.xlu0 %v2946, 88
    %v3416 = vpop.permute.xlu0 %3415
    %3417 = vrot.lane.b32.xlu0 %v2951, 88
    %v3418 = vpop.permute.xlu0 %3417
    %3419 = vrot.lane.b32.xlu0 %v2956, 88
    %v3420 = vpop.permute.xlu0 %3419
    %3421 = vrot.lane.b32.xlu0 %v2961, 88
    %v3422 = vpop.permute.xlu0 %3421
    %3423 = vrot.lane.b32.xlu0 %v2966, 88
    %v3424 = vpop.permute.xlu0 %3423
    %3425 = vrot.lane.b32.xlu0 %v2971, 88
    %v3426 = vpop.permute.xlu0 %3425
    %3427 = vrot.lane.b32.xlu0 %v2976, 88
    %v3428 = vpop.permute.xlu0 %3427
    %v3429 = vsel %vm776, %v3398, 0
    %v3431 = vsel %vm776, %v3400, 0
    %v3433 = vsel %vm776, %v3402, 0
    %v3435 = vsel %vm776, %v3404, 0
    %v3437 = vsel %vm776, %v3406, 0
    %v3439 = vsel %vm776, %v3408, 0
    %v3441 = vsel %vm776, %v3410, 0
    %v3443 = vsel %vm776, %v3412, 0
    %v3445 = vsel %vm776, %v3414, 0
    %v3447 = vsel %vm776, %v3416, 0
    %v3449 = vsel %vm776, %v3418, 0
    %v3451 = vsel %vm776, %v3420, 0
    %v3453 = vsel %vm776, %v3422, 0
    %v3455 = vsel %vm776, %v3424, 0
    %v3457 = vsel %vm776, %v3426, 0
    %v3459 = vsel %vm776, %v3428, 0
    %3461 = vmatprep.subr.mxu0 0.0
    %3462 = vmatpush1.xpose.msra.mxu0 0.0
    %3463 = vmatprep.subr.mxu0 0.0
    %3464 = vmatpush1.xpose.msra.mxu0 0.0
    %3465 = vmatprep.subr.mxu0 0.0
    %3466 = vmatpush1.xpose.msra.mxu0 0.0
    %3467 = vmatprep.subr.mxu0 0.0
    %3468 = vmatpush1.xpose.msra.mxu0 0.0
    %3469 = vmatprep.subr.mxu0 0.0
    %3470 = vmatpush1.xpose.msra.mxu0 0.0
    %3471 = vmatprep.subr.mxu0 0.0
    %3472 = vmatpush1.xpose.msra.mxu0 0.0
    %3473 = vmatprep.subr.mxu0 0.0
    %3474 = vmatpush1.xpose.msra.mxu0 0.0
    %3475 = vmatprep.subr.mxu0 0.0
    %3476 = vmatpush1.xpose.msra.mxu0 0.0
    %3477 = vmatprep.subr.mxu0 0.0
    %3478 = vmatpush1.xpose.msra.mxu0 %v3459
    %3479 = vmatprep.subr.mxu0 0.0
    %3480 = vmatpush1.xpose.msra.mxu0 %v3457
    %3481 = vmatprep.subr.mxu0 0.0
    %3482 = vmatpush1.xpose.msra.mxu0 %v3455
    %3483 = vmatprep.subr.mxu0 0.0
    %3484 = vmatpush1.xpose.msra.mxu0 %v3453
    %3485 = vmatprep.subr.mxu0 0.0
    %3486 = vmatpush1.xpose.msra.mxu0 %v3451
    %3487 = vmatprep.subr.mxu0 0.0
    %3488 = vmatpush1.xpose.msra.mxu0 %v3449
    %3489 = vmatprep.subr.mxu0 0.0
    %3490 = vmatpush1.xpose.msra.mxu0 %v3447
    %3491 = vmatprep.subr.mxu0 0.0
    %3492 = vmatpush1.xpose.msra.mxu0 %v3445
    %3493 = vmatprep.subr.mxu0 0.0
    %3494 = vmatpush2.xpose.msra.mxu0 0.0
    %3495 = vmatprep.subr.mxu0 0.0
    %3496 = vmatpush2.xpose.msra.mxu0 0.0
    %3497 = vmatprep.subr.mxu0 0.0
    %3498 = vmatpush2.xpose.msra.mxu0 0.0
    %3499 = vmatprep.subr.mxu0 0.0
    %3500 = vmatpush2.xpose.msra.mxu0 0.0
    %3501 = vmatprep.subr.mxu0 0.0
    %3502 = vmatpush2.xpose.msra.mxu0 0.0
    %3503 = vmatprep.subr.mxu0 0.0
    %3504 = vmatpush2.xpose.msra.mxu0 0.0
    %3505 = vmatprep.subr.mxu0 0.0
    %3506 = vmatpush2.xpose.msra.mxu0 0.0
    %3507 = vmatprep.subr.mxu0 0.0
    %3508 = vmatpush2.xpose.msra.mxu0 0.0
    %3509 = vmatprep.subr.mxu0 0.0
    %3510 = vmatpush2.xpose.msra.mxu0 0.0
    %3511 = vmatprep.subr.mxu0 0.0
    %3512 = vmatpush2.xpose.msra.mxu0 0.0
    %3513 = vmatprep.subr.mxu0 0.0
    %3514 = vmatpush2.xpose.msra.mxu0 0.0
    %3515 = vmatprep.subr.mxu0 0.0
    %3516 = vmatpush2.xpose.msra.mxu0 0.0
    %3517 = vmatprep.subr.mxu0 0.0
    %3518 = vmatpush2.xpose.msra.mxu0 0.0
    %3519 = vmatprep.subr.mxu0 0.0
    %3520 = vmatpush2.xpose.msra.mxu0 0.0
    %3521 = vmatprep.subr.mxu0 0.0
    %3522 = vmatpush2.xpose.msra.mxu0 0.0
    %3523 = vmatprep.subr.mxu0 0.0
    %3524 = vmatpush2.xpose.msra.mxu0 0.0
    %3525 = vmatprep.mubr.f32.mxu0 0.0
    %3526 = vmatmul.mubr.f32.gmra.mxu0 %v3429
    %v3527 = vpop.f32.mrf.mxu0
    %v3528 = vadd.f32 0.0, %v3527
    %v3529 = vpop.f32.mrf.mxu0
    %3530 = vmatprep.mubr.f32.mxu0 0.0
    %3531 = vmatmul.mubr.f32.gmra.mxu0 %v3431
    %v3532 = vpop.f32.mrf.mxu0
    %v3533 = vadd.f32 0.0, %v3532
    %v3534 = vpop.f32.mrf.mxu0
    %3535 = vmatprep.mubr.f32.mxu0 0.0
    %3536 = vmatmul.mubr.f32.gmra.mxu0 %v3433
    %v3537 = vpop.f32.mrf.mxu0
    %v3538 = vadd.f32 0.0, %v3537
    %v3539 = vpop.f32.mrf.mxu0
    %3540 = vmatprep.mubr.f32.mxu0 0.0
    %3541 = vmatmul.mubr.f32.gmra.mxu0 %v3435
    %v3542 = vpop.f32.mrf.mxu0
    %v3543 = vadd.f32 0.0, %v3542
    %v3544 = vpop.f32.mrf.mxu0
    %3545 = vmatprep.mubr.f32.mxu0 0.0
    %3546 = vmatmul.mubr.f32.gmra.mxu0 %v3437
    %v3547 = vpop.f32.mrf.mxu0
    %v3548 = vadd.f32 0.0, %v3547
    %v3549 = vpop.f32.mrf.mxu0
    %3550 = vmatprep.mubr.f32.mxu0 0.0
    %3551 = vmatmul.mubr.f32.gmra.mxu0 %v3439
    %v3552 = vpop.f32.mrf.mxu0
    %v3553 = vadd.f32 0.0, %v3552
    %v3554 = vpop.f32.mrf.mxu0
    %3555 = vmatprep.mubr.f32.mxu0 0.0
    %3556 = vmatmul.mubr.f32.gmra.mxu0 %v3441
    %v3557 = vpop.f32.mrf.mxu0
    %v3558 = vadd.f32 0.0, %v3557
    %v3559 = vpop.f32.mrf.mxu0
    %3560 = vmatprep.mubr.f32.mxu0 0.0
    %3561 = vmatmul.mubr.f32.gmra.mxu0 %v3443
    %v3562 = vpop.f32.mrf.mxu0
    %v3563 = vadd.f32 0.0, %v3562
    %v3564 = vpop.f32.mrf.mxu0
    %3565 = vdwg.mxu0
    %v3566 = vmul.f32 %v3528, 0.35355338
    %v3567 = vmul.f32 %v3533, 0.35355338
    %v3568 = vmul.f32 %v3538, 0.35355338
    %v3569 = vmul.f32 %v3543, 0.35355338
    %v3570 = vmul.f32 %v3548, 0.35355338
    %v3571 = vmul.f32 %v3553, 0.35355338
    %v3572 = vmul.f32 %v3558, 0.35355338
    %v3573 = vmul.f32 %v3563, 0.35355338
    %v3574 = vsel %vm922, %v3566, -inf
    %3575 = vmax.xlane.f32.xlu0 %v3574
    %v3576 = vpop.xlane.xlu0 %3575
    %v3577 = vsel %vm922, %v3567, -inf
    %3578 = vmax.xlane.f32.xlu0 %v3577
    %v3579 = vpop.xlane.xlu0 %3578
    %v3580 = vsel %vm922, %v3568, -inf
    %3581 = vmax.xlane.f32.xlu0 %v3580
    %v3582 = vpop.xlane.xlu0 %3581
    %v3583 = vsel %vm922, %v3569, -inf
    %3584 = vmax.xlane.f32.xlu0 %v3583
    %v3585 = vpop.xlane.xlu0 %3584
    %v3586 = vsel %vm922, %v3570, -inf
    %3587 = vmax.xlane.f32.xlu0 %v3586
    %v3588 = vpop.xlane.xlu0 %3587
    %v3589 = vsel %vm922, %v3571, -inf
    %3590 = vmax.xlane.f32.xlu0 %v3589
    %v3591 = vpop.xlane.xlu0 %3590
    %v3592 = vsel %vm922, %v3572, -inf
    %3593 = vmax.xlane.f32.xlu0 %v3592
    %v3594 = vpop.xlane.xlu0 %3593
    %v3595 = vsel %vm922, %v3573, -inf
    %3596 = vmax.xlane.f32.xlu0 %v3595
    %v3597 = vpop.xlane.xlu0 %3596
    %v3598 = vsub.f32 %v3566, %v3576
    %v3599 = vsub.f32 %v3567, %v3579
    %v3600 = vsub.f32 %v3568, %v3582
    %v3601 = vsub.f32 %v3569, %v3585
    %v3602 = vsub.f32 %v3570, %v3588
    %v3603 = vsub.f32 %v3571, %v3591
    %v3604 = vsub.f32 %v3572, %v3594
    %v3605 = vsub.f32 %v3573, %v3597
    %v3606 = vmul.f32 %v3598, 1.442695
    %v3607 = vpow.pop %v3606
    %v3608 = vmul.f32 %v3599, 1.442695
    %v3609 = vpow.pop %v3608
    %v3610 = vmul.f32 %v3600, 1.442695
    %v3611 = vpow.pop %v3610
    %v3612 = vmul.f32 %v3601, 1.442695
    %v3613 = vpow.pop %v3612
    %v3614 = vmul.f32 %v3602, 1.442695
    %v3615 = vpow.pop %v3614
    %v3616 = vmul.f32 %v3603, 1.442695
    %v3617 = vpow.pop %v3616
    %v3618 = vmul.f32 %v3604, 1.442695
    %v3619 = vpow.pop %v3618
    %v3620 = vmul.f32 %v3605, 1.442695
    %v3621 = vpow.pop %v3620
    %v3622 = vsel %vm922, %v3607, 0.0
    %3623 = vadd.xlane.f32.xlu0 %v3622
    %v3624 = vpop.xlane.xlu0 %3623
    %v3625 = vsel %vm922, %v3609, 0.0
    %3626 = vadd.xlane.f32.xlu0 %v3625
    %v3627 = vpop.xlane.xlu0 %3626
    %v3628 = vsel %vm922, %v3611, 0.0
    %3629 = vadd.xlane.f32.xlu0 %v3628
    %v3630 = vpop.xlane.xlu0 %3629
    %v3631 = vsel %vm922, %v3613, 0.0
    %3632 = vadd.xlane.f32.xlu0 %v3631
    %v3633 = vpop.xlane.xlu0 %3632
    %v3634 = vsel %vm922, %v3615, 0.0
    %3635 = vadd.xlane.f32.xlu0 %v3634
    %v3636 = vpop.xlane.xlu0 %3635
    %v3637 = vsel %vm922, %v3617, 0.0
    %3638 = vadd.xlane.f32.xlu0 %v3637
    %v3639 = vpop.xlane.xlu0 %3638
    %v3640 = vsel %vm922, %v3619, 0.0
    %3641 = vadd.xlane.f32.xlu0 %v3640
    %v3642 = vpop.xlane.xlu0 %3641
    %v3643 = vsel %vm922, %v3621, 0.0
    %3644 = vadd.xlane.f32.xlu0 %v3643
    %v3645 = vpop.xlane.xlu0 %3644
    %v3646 = vrcp.pop %v3624
    %v3647 = vrcp.pop %v3627
    %v3648 = vrcp.pop %v3630
    %v3649 = vrcp.pop %v3633
    %v3650 = vrcp.pop %v3636
    %v3651 = vrcp.pop %v3639
    %v3652 = vrcp.pop %v3642
    %v3653 = vrcp.pop %v3645
    %v3654 = vmul.f32 %v3607, %v3646
    %v3655 = vmul.f32 %v3609, %v3647
    %v3656 = vmul.f32 %v3611, %v3648
    %v3657 = vmul.f32 %v3613, %v3649
    %v3658 = vmul.f32 %v3615, %v3650
    %v3659 = vmul.f32 %v3617, %v3651
    %v3660 = vmul.f32 %v3619, %v3652
    %v3661 = vmul.f32 %v3621, %v3653
    %3662 = vrot.lane.b32.xlu0 %v2941, 56
    %v3663 = vpop.permute.xlu0 %3662
    %3664 = vrot.lane.b32.xlu0 %v2946, 56
    %v3665 = vpop.permute.xlu0 %3664
    %3666 = vrot.lane.b32.xlu0 %v2951, 56
    %v3667 = vpop.permute.xlu0 %3666
    %3668 = vrot.lane.b32.xlu0 %v2956, 56
    %v3669 = vpop.permute.xlu0 %3668
    %3670 = vrot.lane.b32.xlu0 %v2961, 56
    %v3671 = vpop.permute.xlu0 %3670
    %3672 = vrot.lane.b32.xlu0 %v2966, 56
    %v3673 = vpop.permute.xlu0 %3672
    %3674 = vrot.lane.b32.xlu0 %v2971, 56
    %v3675 = vpop.permute.xlu0 %3674
    %3676 = vrot.lane.b32.xlu0 %v2976, 56
    %v3677 = vpop.permute.xlu0 %3676
    %v3687 = vsel %vm922, %v3654, 0
    %v3690 = vsel %vm922, %v3655, 0
    %v3693 = vsel %vm922, %v3656, 0
    %v3696 = vsel %vm922, %v3657, 0
    %v3699 = vsel %vm922, %v3658, 0
    %v3702 = vsel %vm922, %v3659, 0
    %v3705 = vsel %vm922, %v3660, 0
    %v3708 = vsel %vm922, %v3661, 0
    %3710 = vmatprep.subr.mxu0 0.0
    %3711 = vmatpush1.msra.mxu0 0.0
    %3712 = vmatprep.subr.mxu0 0.0
    %3713 = vmatpush1.msra.mxu0 0.0
    %3714 = vmatprep.subr.mxu0 0.0
    %3715 = vmatpush1.msra.mxu0 0.0
    %3716 = vmatprep.subr.mxu0 0.0
    %3717 = vmatpush1.msra.mxu0 0.0
    %3718 = vmatprep.subr.mxu0 0.0
    %3719 = vmatpush1.msra.mxu0 0.0
    %3720 = vmatprep.subr.mxu0 0.0
    %3721 = vmatpush1.msra.mxu0 0.0
    %3722 = vmatprep.subr.mxu0 0.0
    %3723 = vmatpush1.msra.mxu0 0.0
    %3724 = vmatprep.subr.mxu0 0.0
    %3725 = vmatpush1.msra.mxu0 0.0
    %3726 = vmatprep.subr.mxu0 0.0
    %3727 = vmatpush1.msra.mxu0 %v3677
    %3728 = vmatprep.subr.mxu0 0.0
    %3729 = vmatpush1.msra.mxu0 %v3675
    %3730 = vmatprep.subr.mxu0 0.0
    %3731 = vmatpush1.msra.mxu0 %v3673
    %3732 = vmatprep.subr.mxu0 0.0
    %3733 = vmatpush1.msra.mxu0 %v3671
    %3734 = vmatprep.subr.mxu0 0.0
    %3735 = vmatpush1.msra.mxu0 %v3669
    %3736 = vmatprep.subr.mxu0 0.0
    %3737 = vmatpush1.msra.mxu0 %v3667
    %3738 = vmatprep.subr.mxu0 0.0
    %3739 = vmatpush1.msra.mxu0 %v3665
    %3740 = vmatprep.subr.mxu0 0.0
    %3741 = vmatpush1.msra.mxu0 %v3663
    %3742 = vmatprep.subr.mxu0 0.0
    %3743 = vmatpush2.msra.mxu0 0.0
    %3744 = vmatprep.subr.mxu0 0.0
    %3745 = vmatpush2.msra.mxu0 0.0
    %3746 = vmatprep.subr.mxu0 0.0
    %3747 = vmatpush2.msra.mxu0 0.0
    %3748 = vmatprep.subr.mxu0 0.0
    %3749 = vmatpush2.msra.mxu0 0.0
    %3750 = vmatprep.subr.mxu0 0.0
    %3751 = vmatpush2.msra.mxu0 0.0
    %3752 = vmatprep.subr.mxu0 0.0
    %3753 = vmatpush2.msra.mxu0 0.0
    %3754 = vmatprep.subr.mxu0 0.0
    %3755 = vmatpush2.msra.mxu0 0.0
    %3756 = vmatprep.subr.mxu0 0.0
    %3757 = vmatpush2.msra.mxu0 0.0
    %3758 = vmatprep.subr.mxu0 0.0
    %3759 = vmatpush2.msra.mxu0 0.0
    %3760 = vmatprep.subr.mxu0 0.0
    %3761 = vmatpush2.msra.mxu0 0.0
    %3762 = vmatprep.subr.mxu0 0.0
    %3763 = vmatpush2.msra.mxu0 0.0
    %3764 = vmatprep.subr.mxu0 0.0
    %3765 = vmatpush2.msra.mxu0 0.0
    %3766 = vmatprep.subr.mxu0 0.0
    %3767 = vmatpush2.msra.mxu0 0.0
    %3768 = vmatprep.subr.mxu0 0.0
    %3769 = vmatpush2.msra.mxu0 0.0
    %3770 = vmatprep.subr.mxu0 0.0
    %3771 = vmatpush2.msra.mxu0 0.0
    %3772 = vmatprep.subr.mxu0 0.0
    %3773 = vmatpush2.msra.mxu0 0.0
    %3774 = vmatprep.mubr.f32.mxu0 0.0
    %3775 = vmatmul.mubr.f32.gmra.mxu0 %v3687
    %v3776 = vpop.f32.mrf.mxu0
    %v3777 = vadd.f32 0.0, %v3776
    %v3778 = vpop.f32.mrf.mxu0
    %3779 = vmatprep.mubr.f32.mxu0 0.0
    %3780 = vmatmul.mubr.f32.gmra.mxu0 %v3690
    %v3781 = vpop.f32.mrf.mxu0
    %v3782 = vadd.f32 0.0, %v3781
    %v3783 = vpop.f32.mrf.mxu0
    %3784 = vmatprep.mubr.f32.mxu0 0.0
    %3785 = vmatmul.mubr.f32.gmra.mxu0 %v3693
    %v3786 = vpop.f32.mrf.mxu0
    %v3787 = vadd.f32 0.0, %v3786
    %v3788 = vpop.f32.mrf.mxu0
    %3789 = vmatprep.mubr.f32.mxu0 0.0
    %3790 = vmatmul.mubr.f32.gmra.mxu0 %v3696
    %v3791 = vpop.f32.mrf.mxu0
    %v3792 = vadd.f32 0.0, %v3791
    %v3793 = vpop.f32.mrf.mxu0
    %3794 = vmatprep.mubr.f32.mxu0 0.0
    %3795 = vmatmul.mubr.f32.gmra.mxu0 %v3699
    %v3796 = vpop.f32.mrf.mxu0
    %v3797 = vadd.f32 0.0, %v3796
    %v3798 = vpop.f32.mrf.mxu0
    %3799 = vmatprep.mubr.f32.mxu0 0.0
    %3800 = vmatmul.mubr.f32.gmra.mxu0 %v3702
    %v3801 = vpop.f32.mrf.mxu0
    %v3802 = vadd.f32 0.0, %v3801
    %v3803 = vpop.f32.mrf.mxu0
    %3804 = vmatprep.mubr.f32.mxu0 0.0
    %3805 = vmatmul.mubr.f32.gmra.mxu0 %v3705
    %v3806 = vpop.f32.mrf.mxu0
    %v3807 = vadd.f32 0.0, %v3806
    %v3808 = vpop.f32.mrf.mxu0
    %3809 = vmatprep.mubr.f32.mxu0 0.0
    %3810 = vmatmul.mubr.f32.gmra.mxu0 %v3708
    %v3811 = vpop.f32.mrf.mxu0
    %v3812 = vadd.f32 0.0, %v3811
    %v3813 = vpop.f32.mrf.mxu0
    %3814 = vdwg.mxu0
    %3823 = vrot.lane.b32.xlu0 %v3777, 8
    %v3824 = vpop.permute.xlu0 %3823
    %3825 = vrot.lane.b32.xlu0 %v3782, 8
    %v3826 = vpop.permute.xlu0 %3825
    %3827 = vrot.lane.b32.xlu0 %v3787, 8
    %v3828 = vpop.permute.xlu0 %3827
    %3829 = vrot.lane.b32.xlu0 %v3792, 8
    %v3830 = vpop.permute.xlu0 %3829
    %3831 = vrot.lane.b32.xlu0 %v3797, 8
    %v3832 = vpop.permute.xlu0 %3831
    %3833 = vrot.lane.b32.xlu0 %v3802, 8
    %v3834 = vpop.permute.xlu0 %3833
    %3835 = vrot.lane.b32.xlu0 %v3807, 8
    %v3836 = vpop.permute.xlu0 %3835
    %3837 = vrot.lane.b32.xlu0 %v3812, 8
    %v3838 = vpop.permute.xlu0 %3837
    %3847 = vst.msk [vmem:[#allocation2] sm:$0xff] %vm1622, %v3824
    %3848 = vst.msk [vmem:[#allocation2 + $0x8] sm:$0xff] %vm1622, %v3826
    %3849 = vst.msk [vmem:[#allocation2 + $0x10] sm:$0xff] %vm1622, %v3828
    %3850 = vst.msk [vmem:[#allocation2 + $0x18] sm:$0xff] %vm1622, %v3830
    %3851 = vst.msk [vmem:[#allocation2 + $0x20] sm:$0xff] %vm1622, %v3832
    %3852 = vst.msk [vmem:[#allocation2 + $0x28] sm:$0xff] %vm1622, %v3834
    %3853 = vst.msk [vmem:[#allocation2 + $0x30] sm:$0xff] %vm1622, %v3836
    %3854 = vst.msk [vmem:[#allocation2 + $0x38] sm:$0xff] %vm1622, %v3838
    %3855 = vrot.lane.b32.xlu0 %v2941, 112
    %v3856 = vpop.permute.xlu0 %3855
    %3857 = vrot.lane.b32.xlu0 %v2946, 112
    %v3858 = vpop.permute.xlu0 %3857
    %3859 = vrot.lane.b32.xlu0 %v2951, 112
    %v3860 = vpop.permute.xlu0 %3859
    %3861 = vrot.lane.b32.xlu0 %v2956, 112
    %v3862 = vpop.permute.xlu0 %3861
    %3863 = vrot.lane.b32.xlu0 %v2961, 112
    %v3864 = vpop.permute.xlu0 %3863
    %3865 = vrot.lane.b32.xlu0 %v2966, 112
    %v3866 = vpop.permute.xlu0 %3865
    %3867 = vrot.lane.b32.xlu0 %v2971, 112
    %v3868 = vpop.permute.xlu0 %3867
    %3869 = vrot.lane.b32.xlu0 %v2976, 112
    %v3870 = vpop.permute.xlu0 %3869
    %3871 = vrot.lane.b32.xlu0 %v2941, 80
    %v3872 = vpop.permute.xlu0 %3871
    %3873 = vrot.lane.b32.xlu0 %v2946, 80
    %v3874 = vpop.permute.xlu0 %3873
    %3875 = vrot.lane.b32.xlu0 %v2951, 80
    %v3876 = vpop.permute.xlu0 %3875
    %3877 = vrot.lane.b32.xlu0 %v2956, 80
    %v3878 = vpop.permute.xlu0 %3877
    %3879 = vrot.lane.b32.xlu0 %v2961, 80
    %v3880 = vpop.permute.xlu0 %3879
    %3881 = vrot.lane.b32.xlu0 %v2966, 80
    %v3882 = vpop.permute.xlu0 %3881
    %3883 = vrot.lane.b32.xlu0 %v2971, 80
    %v3884 = vpop.permute.xlu0 %3883
    %3885 = vrot.lane.b32.xlu0 %v2976, 80
    %v3886 = vpop.permute.xlu0 %3885
    %v3887 = vsel %vm776, %v3856, 0
    %v3889 = vsel %vm776, %v3858, 0
    %v3891 = vsel %vm776, %v3860, 0
    %v3893 = vsel %vm776, %v3862, 0
    %v3895 = vsel %vm776, %v3864, 0
    %v3897 = vsel %vm776, %v3866, 0
    %v3899 = vsel %vm776, %v3868, 0
    %v3901 = vsel %vm776, %v3870, 0
    %v3903 = vsel %vm776, %v3872, 0
    %v3905 = vsel %vm776, %v3874, 0
    %v3907 = vsel %vm776, %v3876, 0
    %v3909 = vsel %vm776, %v3878, 0
    %v3911 = vsel %vm776, %v3880, 0
    %v3913 = vsel %vm776, %v3882, 0
    %v3915 = vsel %vm776, %v3884, 0
    %v3917 = vsel %vm776, %v3886, 0
    %3919 = vmatprep.subr.mxu0 0.0
    %3920 = vmatpush1.xpose.msra.mxu0 0.0
    %3921 = vmatprep.subr.mxu0 0.0
    %3922 = vmatpush1.xpose.msra.mxu0 0.0
    %3923 = vmatprep.subr.mxu0 0.0
    %3924 = vmatpush1.xpose.msra.mxu0 0.0
    %3925 = vmatprep.subr.mxu0 0.0
    %3926 = vmatpush1.xpose.msra.mxu0 0.0
    %3927 = vmatprep.subr.mxu0 0.0
    %3928 = vmatpush1.xpose.msra.mxu0 0.0
    %3929 = vmatprep.subr.mxu0 0.0
    %3930 = vmatpush1.xpose.msra.mxu0 0.0
    %3931 = vmatprep.subr.mxu0 0.0
    %3932 = vmatpush1.xpose.msra.mxu0 0.0
    %3933 = vmatprep.subr.mxu0 0.0
    %3934 = vmatpush1.xpose.msra.mxu0 0.0
    %3935 = vmatprep.subr.mxu0 0.0
    %3936 = vmatpush1.xpose.msra.mxu0 %v3917
    %3937 = vmatprep.subr.mxu0 0.0
    %3938 = vmatpush1.xpose.msra.mxu0 %v3915
    %3939 = vmatprep.subr.mxu0 0.0
    %3940 = vmatpush1.xpose.msra.mxu0 %v3913
    %3941 = vmatprep.subr.mxu0 0.0
    %3942 = vmatpush1.xpose.msra.mxu0 %v3911
    %3943 = vmatprep.subr.mxu0 0.0
    %3944 = vmatpush1.xpose.msra.mxu0 %v3909
    %3945 = vmatprep.subr.mxu0 0.0
    %3946 = vmatpush1.xpose.msra.mxu0 %v3907
    %3947 = vmatprep.subr.mxu0 0.0
    %3948 = vmatpush1.xpose.msra.mxu0 %v3905
    %3949 = vmatprep.subr.mxu0 0.0
    %3950 = vmatpush1.xpose.msra.mxu0 %v3903
    %3951 = vmatprep.subr.mxu0 0.0
    %3952 = vmatpush2.xpose.msra.mxu0 0.0
    %3953 = vmatprep.subr.mxu0 0.0
    %3954 = vmatpush2.xpose.msra.mxu0 0.0
    %3955 = vmatprep.subr.mxu0 0.0
    %3956 = vmatpush2.xpose.msra.mxu0 0.0
    %3957 = vmatprep.subr.mxu0 0.0
    %3958 = vmatpush2.xpose.msra.mxu0 0.0
    %3959 = vmatprep.subr.mxu0 0.0
    %3960 = vmatpush2.xpose.msra.mxu0 0.0
    %3961 = vmatprep.subr.mxu0 0.0
    %3962 = vmatpush2.xpose.msra.mxu0 0.0
    %3963 = vmatprep.subr.mxu0 0.0
    %3964 = vmatpush2.xpose.msra.mxu0 0.0
    %3965 = vmatprep.subr.mxu0 0.0
    %3966 = vmatpush2.xpose.msra.mxu0 0.0
    %3967 = vmatprep.subr.mxu0 0.0
    %3968 = vmatpush2.xpose.msra.mxu0 0.0
    %3969 = vmatprep.subr.mxu0 0.0
    %3970 = vmatpush2.xpose.msra.mxu0 0.0
    %3971 = vmatprep.subr.mxu0 0.0
    %3972 = vmatpush2.xpose.msra.mxu0 0.0
    %3973 = vmatprep.subr.mxu0 0.0
    %3974 = vmatpush2.xpose.msra.mxu0 0.0
    %3975 = vmatprep.subr.mxu0 0.0
    %3976 = vmatpush2.xpose.msra.mxu0 0.0
    %3977 = vmatprep.subr.mxu0 0.0
    %3978 = vmatpush2.xpose.msra.mxu0 0.0
    %3979 = vmatprep.subr.mxu0 0.0
    %3980 = vmatpush2.xpose.msra.mxu0 0.0
    %3981 = vmatprep.subr.mxu0 0.0
    %3982 = vmatpush2.xpose.msra.mxu0 0.0
    %3983 = vmatprep.mubr.f32.mxu0 0.0
    %3984 = vmatmul.mubr.f32.gmra.mxu0 %v3887
    %v3985 = vpop.f32.mrf.mxu0
    %v3986 = vadd.f32 0.0, %v3985
    %v3987 = vpop.f32.mrf.mxu0
    %3988 = vmatprep.mubr.f32.mxu0 0.0
    %3989 = vmatmul.mubr.f32.gmra.mxu0 %v3889
    %v3990 = vpop.f32.mrf.mxu0
    %v3991 = vadd.f32 0.0, %v3990
    %v3992 = vpop.f32.mrf.mxu0
    %3993 = vmatprep.mubr.f32.mxu0 0.0
    %3994 = vmatmul.mubr.f32.gmra.mxu0 %v3891
    %v3995 = vpop.f32.mrf.mxu0
    %v3996 = vadd.f32 0.0, %v3995
    %v3997 = vpop.f32.mrf.mxu0
    %3998 = vmatprep.mubr.f32.mxu0 0.0
    %3999 = vmatmul.mubr.f32.gmra.mxu0 %v3893
    %v4000 = vpop.f32.mrf.mxu0
    %v4001 = vadd.f32 0.0, %v4000
    %v4002 = vpop.f32.mrf.mxu0
    %4003 = vmatprep.mubr.f32.mxu0 0.0
    %4004 = vmatmul.mubr.f32.gmra.mxu0 %v3895
    %v4005 = vpop.f32.mrf.mxu0
    %v4006 = vadd.f32 0.0, %v4005
    %v4007 = vpop.f32.mrf.mxu0
    %4008 = vmatprep.mubr.f32.mxu0 0.0
    %4009 = vmatmul.mubr.f32.gmra.mxu0 %v3897
    %v4010 = vpop.f32.mrf.mxu0
    %v4011 = vadd.f32 0.0, %v4010
    %v4012 = vpop.f32.mrf.mxu0
    %4013 = vmatprep.mubr.f32.mxu0 0.0
    %4014 = vmatmul.mubr.f32.gmra.mxu0 %v3899
    %v4015 = vpop.f32.mrf.mxu0
    %v4016 = vadd.f32 0.0, %v4015
    %v4017 = vpop.f32.mrf.mxu0
    %4018 = vmatprep.mubr.f32.mxu0 0.0
    %4019 = vmatmul.mubr.f32.gmra.mxu0 %v3901
    %v4020 = vpop.f32.mrf.mxu0
    %v4021 = vadd.f32 0.0, %v4020
    %v4022 = vpop.f32.mrf.mxu0
    %4023 = vdwg.mxu0
    %v4024 = vmul.f32 %v3986, 0.35355338
    %v4025 = vmul.f32 %v3991, 0.35355338
    %v4026 = vmul.f32 %v3996, 0.35355338
    %v4027 = vmul.f32 %v4001, 0.35355338
    %v4028 = vmul.f32 %v4006, 0.35355338
    %v4029 = vmul.f32 %v4011, 0.35355338
    %v4030 = vmul.f32 %v4016, 0.35355338
    %v4031 = vmul.f32 %v4021, 0.35355338
    %v4032 = vsel %vm922, %v4024, -inf
    %4033 = vmax.xlane.f32.xlu0 %v4032
    %v4034 = vpop.xlane.xlu0 %4033
    %v4035 = vsel %vm922, %v4025, -inf
    %4036 = vmax.xlane.f32.xlu0 %v4035
    %v4037 = vpop.xlane.xlu0 %4036
    %v4038 = vsel %vm922, %v4026, -inf
    %4039 = vmax.xlane.f32.xlu0 %v4038
    %v4040 = vpop.xlane.xlu0 %4039
    %v4041 = vsel %vm922, %v4027, -inf
    %4042 = vmax.xlane.f32.xlu0 %v4041
    %v4043 = vpop.xlane.xlu0 %4042
    %v4044 = vsel %vm922, %v4028, -inf
    %4045 = vmax.xlane.f32.xlu0 %v4044
    %v4046 = vpop.xlane.xlu0 %4045
    %v4047 = vsel %vm922, %v4029, -inf
    %4048 = vmax.xlane.f32.xlu0 %v4047
    %v4049 = vpop.xlane.xlu0 %4048
    %v4050 = vsel %vm922, %v4030, -inf
    %4051 = vmax.xlane.f32.xlu0 %v4050
    %v4052 = vpop.xlane.xlu0 %4051
    %v4053 = vsel %vm922, %v4031, -inf
    %4054 = vmax.xlane.f32.xlu0 %v4053
    %v4055 = vpop.xlane.xlu0 %4054
    %v4056 = vsub.f32 %v4024, %v4034
    %v4057 = vsub.f32 %v4025, %v4037
    %v4058 = vsub.f32 %v4026, %v4040
    %v4059 = vsub.f32 %v4027, %v4043
    %v4060 = vsub.f32 %v4028, %v4046
    %v4061 = vsub.f32 %v4029, %v4049
    %v4062 = vsub.f32 %v4030, %v4052
    %v4063 = vsub.f32 %v4031, %v4055
    %v4064 = vmul.f32 %v4056, 1.442695
    %v4065 = vpow.pop %v4064
    %v4066 = vmul.f32 %v4057, 1.442695
    %v4067 = vpow.pop %v4066
    %v4068 = vmul.f32 %v4058, 1.442695
    %v4069 = vpow.pop %v4068
    %v4070 = vmul.f32 %v4059, 1.442695
    %v4071 = vpow.pop %v4070
    %v4072 = vmul.f32 %v4060, 1.442695
    %v4073 = vpow.pop %v4072
    %v4074 = vmul.f32 %v4061, 1.442695
    %v4075 = vpow.pop %v4074
    %v4076 = vmul.f32 %v4062, 1.442695
    %v4077 = vpow.pop %v4076
    %v4078 = vmul.f32 %v4063, 1.442695
    %v4079 = vpow.pop %v4078
    %v4080 = vsel %vm922, %v4065, 0.0
    %4081 = vadd.xlane.f32.xlu0 %v4080
    %v4082 = vpop.xlane.xlu0 %4081
    %v4083 = vsel %vm922, %v4067, 0.0
    %4084 = vadd.xlane.f32.xlu0 %v4083
    %v4085 = vpop.xlane.xlu0 %4084
    %v4086 = vsel %vm922, %v4069, 0.0
    %4087 = vadd.xlane.f32.xlu0 %v4086
    %v4088 = vpop.xlane.xlu0 %4087
    %v4089 = vsel %vm922, %v4071, 0.0
    %4090 = vadd.xlane.f32.xlu0 %v4089
    %v4091 = vpop.xlane.xlu0 %4090
    %v4092 = vsel %vm922, %v4073, 0.0
    %4093 = vadd.xlane.f32.xlu0 %v4092
    %v4094 = vpop.xlane.xlu0 %4093
    %v4095 = vsel %vm922, %v4075, 0.0
    %4096 = vadd.xlane.f32.xlu0 %v4095
    %v4097 = vpop.xlane.xlu0 %4096
    %v4098 = vsel %vm922, %v4077, 0.0
    %4099 = vadd.xlane.f32.xlu0 %v4098
    %v4100 = vpop.xlane.xlu0 %4099
    %v4101 = vsel %vm922, %v4079, 0.0
    %4102 = vadd.xlane.f32.xlu0 %v4101
    %v4103 = vpop.xlane.xlu0 %4102
    %v4104 = vrcp.pop %v4082
    %v4105 = vrcp.pop %v4085
    %v4106 = vrcp.pop %v4088
    %v4107 = vrcp.pop %v4091
    %v4108 = vrcp.pop %v4094
    %v4109 = vrcp.pop %v4097
    %v4110 = vrcp.pop %v4100
    %v4111 = vrcp.pop %v4103
    %v4112 = vmul.f32 %v4065, %v4104
    %v4113 = vmul.f32 %v4067, %v4105
    %v4114 = vmul.f32 %v4069, %v4106
    %v4115 = vmul.f32 %v4071, %v4107
    %v4116 = vmul.f32 %v4073, %v4108
    %v4117 = vmul.f32 %v4075, %v4109
    %v4118 = vmul.f32 %v4077, %v4110
    %v4119 = vmul.f32 %v4079, %v4111
    %4120 = vrot.lane.b32.xlu0 %v2941, 48
    %v4121 = vpop.permute.xlu0 %4120
    %4122 = vrot.lane.b32.xlu0 %v2946, 48
    %v4123 = vpop.permute.xlu0 %4122
    %4124 = vrot.lane.b32.xlu0 %v2951, 48
    %v4125 = vpop.permute.xlu0 %4124
    %4126 = vrot.lane.b32.xlu0 %v2956, 48
    %v4127 = vpop.permute.xlu0 %4126
    %4128 = vrot.lane.b32.xlu0 %v2961, 48
    %v4129 = vpop.permute.xlu0 %4128
    %4130 = vrot.lane.b32.xlu0 %v2966, 48
    %v4131 = vpop.permute.xlu0 %4130
    %4132 = vrot.lane.b32.xlu0 %v2971, 48
    %v4133 = vpop.permute.xlu0 %4132
    %4134 = vrot.lane.b32.xlu0 %v2976, 48
    %v4135 = vpop.permute.xlu0 %4134
    %v4145 = vsel %vm922, %v4112, 0
    %v4148 = vsel %vm922, %v4113, 0
    %v4151 = vsel %vm922, %v4114, 0
    %v4154 = vsel %vm922, %v4115, 0
    %v4157 = vsel %vm922, %v4116, 0
    %v4160 = vsel %vm922, %v4117, 0
    %v4163 = vsel %vm922, %v4118, 0
    %v4166 = vsel %vm922, %v4119, 0
    %4168 = vmatprep.subr.mxu0 0.0
    %4169 = vmatpush1.msra.mxu0 0.0
    %4170 = vmatprep.subr.mxu0 0.0
    %4171 = vmatpush1.msra.mxu0 0.0
    %4172 = vmatprep.subr.mxu0 0.0
    %4173 = vmatpush1.msra.mxu0 0.0
    %4174 = vmatprep.subr.mxu0 0.0
    %4175 = vmatpush1.msra.mxu0 0.0
    %4176 = vmatprep.subr.mxu0 0.0
    %4177 = vmatpush1.msra.mxu0 0.0
    %4178 = vmatprep.subr.mxu0 0.0
    %4179 = vmatpush1.msra.mxu0 0.0
    %4180 = vmatprep.subr.mxu0 0.0
    %4181 = vmatpush1.msra.mxu0 0.0
    %4182 = vmatprep.subr.mxu0 0.0
    %4183 = vmatpush1.msra.mxu0 0.0
    %4184 = vmatprep.subr.mxu0 0.0
    %4185 = vmatpush1.msra.mxu0 %v4135
    %4186 = vmatprep.subr.mxu0 0.0
    %4187 = vmatpush1.msra.mxu0 %v4133
    %4188 = vmatprep.subr.mxu0 0.0
    %4189 = vmatpush1.msra.mxu0 %v4131
    %4190 = vmatprep.subr.mxu0 0.0
    %4191 = vmatpush1.msra.mxu0 %v4129
    %4192 = vmatprep.subr.mxu0 0.0
    %4193 = vmatpush1.msra.mxu0 %v4127
    %4194 = vmatprep.subr.mxu0 0.0
    %4195 = vmatpush1.msra.mxu0 %v4125
    %4196 = vmatprep.subr.mxu0 0.0
    %4197 = vmatpush1.msra.mxu0 %v4123
    %4198 = vmatprep.subr.mxu0 0.0
    %4199 = vmatpush1.msra.mxu0 %v4121
    %4200 = vmatprep.subr.mxu0 0.0
    %4201 = vmatpush2.msra.mxu0 0.0
    %4202 = vmatprep.subr.mxu0 0.0
    %4203 = vmatpush2.msra.mxu0 0.0
    %4204 = vmatprep.subr.mxu0 0.0
    %4205 = vmatpush2.msra.mxu0 0.0
    %4206 = vmatprep.subr.mxu0 0.0
    %4207 = vmatpush2.msra.mxu0 0.0
    %4208 = vmatprep.subr.mxu0 0.0
    %4209 = vmatpush2.msra.mxu0 0.0
    %4210 = vmatprep.subr.mxu0 0.0
    %4211 = vmatpush2.msra.mxu0 0.0
    %4212 = vmatprep.subr.mxu0 0.0
    %4213 = vmatpush2.msra.mxu0 0.0
    %4214 = vmatprep.subr.mxu0 0.0
    %4215 = vmatpush2.msra.mxu0 0.0
    %4216 = vmatprep.subr.mxu0 0.0
    %4217 = vmatpush2.msra.mxu0 0.0
    %4218 = vmatprep.subr.mxu0 0.0
    %4219 = vmatpush2.msra.mxu0 0.0
    %4220 = vmatprep.subr.mxu0 0.0
    %4221 = vmatpush2.msra.mxu0 0.0
    %4222 = vmatprep.subr.mxu0 0.0
    %4223 = vmatpush2.msra.mxu0 0.0
    %4224 = vmatprep.subr.mxu0 0.0
    %4225 = vmatpush2.msra.mxu0 0.0
    %4226 = vmatprep.subr.mxu0 0.0
    %4227 = vmatpush2.msra.mxu0 0.0
    %4228 = vmatprep.subr.mxu0 0.0
    %4229 = vmatpush2.msra.mxu0 0.0
    %4230 = vmatprep.subr.mxu0 0.0
    %4231 = vmatpush2.msra.mxu0 0.0
    %4232 = vmatprep.mubr.f32.mxu0 0.0
    %4233 = vmatmul.mubr.f32.gmra.mxu0 %v4145
    %v4234 = vpop.f32.mrf.mxu0
    %v4235 = vadd.f32 0.0, %v4234
    %v4236 = vpop.f32.mrf.mxu0
    %4237 = vmatprep.mubr.f32.mxu0 0.0
    %4238 = vmatmul.mubr.f32.gmra.mxu0 %v4148
    %v4239 = vpop.f32.mrf.mxu0
    %v4240 = vadd.f32 0.0, %v4239
    %v4241 = vpop.f32.mrf.mxu0
    %4242 = vmatprep.mubr.f32.mxu0 0.0
    %4243 = vmatmul.mubr.f32.gmra.mxu0 %v4151
    %v4244 = vpop.f32.mrf.mxu0
    %v4245 = vadd.f32 0.0, %v4244
    %v4246 = vpop.f32.mrf.mxu0
    %4247 = vmatprep.mubr.f32.mxu0 0.0
    %4248 = vmatmul.mubr.f32.gmra.mxu0 %v4154
    %v4249 = vpop.f32.mrf.mxu0
    %v4250 = vadd.f32 0.0, %v4249
    %v4251 = vpop.f32.mrf.mxu0
    %4252 = vmatprep.mubr.f32.mxu0 0.0
    %4253 = vmatmul.mubr.f32.gmra.mxu0 %v4157
    %v4254 = vpop.f32.mrf.mxu0
    %v4255 = vadd.f32 0.0, %v4254
    %v4256 = vpop.f32.mrf.mxu0
    %4257 = vmatprep.mubr.f32.mxu0 0.0
    %4258 = vmatmul.mubr.f32.gmra.mxu0 %v4160
    %v4259 = vpop.f32.mrf.mxu0
    %v4260 = vadd.f32 0.0, %v4259
    %v4261 = vpop.f32.mrf.mxu0
    %4262 = vmatprep.mubr.f32.mxu0 0.0
    %4263 = vmatmul.mubr.f32.gmra.mxu0 %v4163
    %v4264 = vpop.f32.mrf.mxu0
    %v4265 = vadd.f32 0.0, %v4264
    %v4266 = vpop.f32.mrf.mxu0
    %4267 = vmatprep.mubr.f32.mxu0 0.0
    %4268 = vmatmul.mubr.f32.gmra.mxu0 %v4166
    %v4269 = vpop.f32.mrf.mxu0
    %v4270 = vadd.f32 0.0, %v4269
    %v4271 = vpop.f32.mrf.mxu0
    %4272 = vdwg.mxu0
    %4281 = vrot.lane.b32.xlu0 %v4235, 16
    %v4282 = vpop.permute.xlu0 %4281
    %4283 = vrot.lane.b32.xlu0 %v4240, 16
    %v4284 = vpop.permute.xlu0 %4283
    %4285 = vrot.lane.b32.xlu0 %v4245, 16
    %v4286 = vpop.permute.xlu0 %4285
    %4287 = vrot.lane.b32.xlu0 %v4250, 16
    %v4288 = vpop.permute.xlu0 %4287
    %4289 = vrot.lane.b32.xlu0 %v4255, 16
    %v4290 = vpop.permute.xlu0 %4289
    %4291 = vrot.lane.b32.xlu0 %v4260, 16
    %v4292 = vpop.permute.xlu0 %4291
    %4293 = vrot.lane.b32.xlu0 %v4265, 16
    %v4294 = vpop.permute.xlu0 %4293
    %4295 = vrot.lane.b32.xlu0 %v4270, 16
    %v4296 = vpop.permute.xlu0 %4295
    %4305 = vst.msk [vmem:[#allocation2] sm:$0xff] %vm2081, %v4282
    %4306 = vst.msk [vmem:[#allocation2 + $0x8] sm:$0xff] %vm2081, %v4284
    %4307 = vst.msk [vmem:[#allocation2 + $0x10] sm:$0xff] %vm2081, %v4286
    %4308 = vst.msk [vmem:[#allocation2 + $0x18] sm:$0xff] %vm2081, %v4288
    %4309 = vst.msk [vmem:[#allocation2 + $0x20] sm:$0xff] %vm2081, %v4290
    %4310 = vst.msk [vmem:[#allocation2 + $0x28] sm:$0xff] %vm2081, %v4292
    %4311 = vst.msk [vmem:[#allocation2 + $0x30] sm:$0xff] %vm2081, %v4294
    %4312 = vst.msk [vmem:[#allocation2 + $0x38] sm:$0xff] %vm2081, %v4296
    %4313 = vrot.lane.b32.xlu0 %v2941, 104
    %v4314 = vpop.permute.xlu0 %4313
    %4315 = vrot.lane.b32.xlu0 %v2946, 104
    %v4316 = vpop.permute.xlu0 %4315
    %4317 = vrot.lane.b32.xlu0 %v2951, 104
    %v4318 = vpop.permute.xlu0 %4317
    %4319 = vrot.lane.b32.xlu0 %v2956, 104
    %v4320 = vpop.permute.xlu0 %4319
    %4321 = vrot.lane.b32.xlu0 %v2961, 104
    %v4322 = vpop.permute.xlu0 %4321
    %4323 = vrot.lane.b32.xlu0 %v2966, 104
    %v4324 = vpop.permute.xlu0 %4323
    %4325 = vrot.lane.b32.xlu0 %v2971, 104
    %v4326 = vpop.permute.xlu0 %4325
    %4327 = vrot.lane.b32.xlu0 %v2976, 104
    %v4328 = vpop.permute.xlu0 %4327
    %4329 = vrot.lane.b32.xlu0 %v2941, 72
    %v4330 = vpop.permute.xlu0 %4329
    %4331 = vrot.lane.b32.xlu0 %v2946, 72
    %v4332 = vpop.permute.xlu0 %4331
    %4333 = vrot.lane.b32.xlu0 %v2951, 72
    %v4334 = vpop.permute.xlu0 %4333
    %4335 = vrot.lane.b32.xlu0 %v2956, 72
    %v4336 = vpop.permute.xlu0 %4335
    %4337 = vrot.lane.b32.xlu0 %v2961, 72
    %v4338 = vpop.permute.xlu0 %4337
    %4339 = vrot.lane.b32.xlu0 %v2966, 72
    %v4340 = vpop.permute.xlu0 %4339
    %4341 = vrot.lane.b32.xlu0 %v2971, 72
    %v4342 = vpop.permute.xlu0 %4341
    %4343 = vrot.lane.b32.xlu0 %v2976, 72
    %v4344 = vpop.permute.xlu0 %4343
    %v4345 = vsel %vm776, %v4314, 0
    %v4347 = vsel %vm776, %v4316, 0
    %v4349 = vsel %vm776, %v4318, 0
    %v4351 = vsel %vm776, %v4320, 0
    %v4353 = vsel %vm776, %v4322, 0
    %v4355 = vsel %vm776, %v4324, 0
    %v4357 = vsel %vm776, %v4326, 0
    %v4359 = vsel %vm776, %v4328, 0
    %v4361 = vsel %vm776, %v4330, 0
    %v4363 = vsel %vm776, %v4332, 0
    %v4365 = vsel %vm776, %v4334, 0
    %v4367 = vsel %vm776, %v4336, 0
    %v4369 = vsel %vm776, %v4338, 0
    %v4371 = vsel %vm776, %v4340, 0
    %v4373 = vsel %vm776, %v4342, 0
    %v4375 = vsel %vm776, %v4344, 0
    %4377 = vmatprep.subr.mxu0 0.0
    %4378 = vmatpush1.xpose.msra.mxu0 0.0
    %4379 = vmatprep.subr.mxu0 0.0
    %4380 = vmatpush1.xpose.msra.mxu0 0.0
    %4381 = vmatprep.subr.mxu0 0.0
    %4382 = vmatpush1.xpose.msra.mxu0 0.0
    %4383 = vmatprep.subr.mxu0 0.0
    %4384 = vmatpush1.xpose.msra.mxu0 0.0
    %4385 = vmatprep.subr.mxu0 0.0
    %4386 = vmatpush1.xpose.msra.mxu0 0.0
    %4387 = vmatprep.subr.mxu0 0.0
    %4388 = vmatpush1.xpose.msra.mxu0 0.0
    %4389 = vmatprep.subr.mxu0 0.0
    %4390 = vmatpush1.xpose.msra.mxu0 0.0
    %4391 = vmatprep.subr.mxu0 0.0
    %4392 = vmatpush1.xpose.msra.mxu0 0.0
    %4393 = vmatprep.subr.mxu0 0.0
    %4394 = vmatpush1.xpose.msra.mxu0 %v4375
    %4395 = vmatprep.subr.mxu0 0.0
    %4396 = vmatpush1.xpose.msra.mxu0 %v4373
    %4397 = vmatprep.subr.mxu0 0.0
    %4398 = vmatpush1.xpose.msra.mxu0 %v4371
    %4399 = vmatprep.subr.mxu0 0.0
    %4400 = vmatpush1.xpose.msra.mxu0 %v4369
    %4401 = vmatprep.subr.mxu0 0.0
    %4402 = vmatpush1.xpose.msra.mxu0 %v4367
    %4403 = vmatprep.subr.mxu0 0.0
    %4404 = vmatpush1.xpose.msra.mxu0 %v4365
    %4405 = vmatprep.subr.mxu0 0.0
    %4406 = vmatpush1.xpose.msra.mxu0 %v4363
    %4407 = vmatprep.subr.mxu0 0.0
    %4408 = vmatpush1.xpose.msra.mxu0 %v4361
    %4409 = vmatprep.subr.mxu0 0.0
    %4410 = vmatpush2.xpose.msra.mxu0 0.0
    %4411 = vmatprep.subr.mxu0 0.0
    %4412 = vmatpush2.xpose.msra.mxu0 0.0
    %4413 = vmatprep.subr.mxu0 0.0
    %4414 = vmatpush2.xpose.msra.mxu0 0.0
    %4415 = vmatprep.subr.mxu0 0.0
    %4416 = vmatpush2.xpose.msra.mxu0 0.0
    %4417 = vmatprep.subr.mxu0 0.0
    %4418 = vmatpush2.xpose.msra.mxu0 0.0
    %4419 = vmatprep.subr.mxu0 0.0
    %4420 = vmatpush2.xpose.msra.mxu0 0.0
    %4421 = vmatprep.subr.mxu0 0.0
    %4422 = vmatpush2.xpose.msra.mxu0 0.0
    %4423 = vmatprep.subr.mxu0 0.0
    %4424 = vmatpush2.xpose.msra.mxu0 0.0
    %4425 = vmatprep.subr.mxu0 0.0
    %4426 = vmatpush2.xpose.msra.mxu0 0.0
    %4427 = vmatprep.subr.mxu0 0.0
    %4428 = vmatpush2.xpose.msra.mxu0 0.0
    %4429 = vmatprep.subr.mxu0 0.0
    %4430 = vmatpush2.xpose.msra.mxu0 0.0
    %4431 = vmatprep.subr.mxu0 0.0
    %4432 = vmatpush2.xpose.msra.mxu0 0.0
    %4433 = vmatprep.subr.mxu0 0.0
    %4434 = vmatpush2.xpose.msra.mxu0 0.0
    %4435 = vmatprep.subr.mxu0 0.0
    %4436 = vmatpush2.xpose.msra.mxu0 0.0
    %4437 = vmatprep.subr.mxu0 0.0
    %4438 = vmatpush2.xpose.msra.mxu0 0.0
    %4439 = vmatprep.subr.mxu0 0.0
    %4440 = vmatpush2.xpose.msra.mxu0 0.0
    %4441 = vmatprep.mubr.f32.mxu0 0.0
    %4442 = vmatmul.mubr.f32.gmra.mxu0 %v4345
    %v4443 = vpop.f32.mrf.mxu0
    %v4444 = vadd.f32 0.0, %v4443
    %v4445 = vpop.f32.mrf.mxu0
    %4446 = vmatprep.mubr.f32.mxu0 0.0
    %4447 = vmatmul.mubr.f32.gmra.mxu0 %v4347
    %v4448 = vpop.f32.mrf.mxu0
    %v4449 = vadd.f32 0.0, %v4448
    %v4450 = vpop.f32.mrf.mxu0
    %4451 = vmatprep.mubr.f32.mxu0 0.0
    %4452 = vmatmul.mubr.f32.gmra.mxu0 %v4349
    %v4453 = vpop.f32.mrf.mxu0
    %v4454 = vadd.f32 0.0, %v4453
    %v4455 = vpop.f32.mrf.mxu0
    %4456 = vmatprep.mubr.f32.mxu0 0.0
    %4457 = vmatmul.mubr.f32.gmra.mxu0 %v4351
    %v4458 = vpop.f32.mrf.mxu0
    %v4459 = vadd.f32 0.0, %v4458
    %v4460 = vpop.f32.mrf.mxu0
    %4461 = vmatprep.mubr.f32.mxu0 0.0
    %4462 = vmatmul.mubr.f32.gmra.mxu0 %v4353
    %v4463 = vpop.f32.mrf.mxu0
    %v4464 = vadd.f32 0.0, %v4463
    %v4465 = vpop.f32.mrf.mxu0
    %4466 = vmatprep.mubr.f32.mxu0 0.0
    %4467 = vmatmul.mubr.f32.gmra.mxu0 %v4355
    %v4468 = vpop.f32.mrf.mxu0
    %v4469 = vadd.f32 0.0, %v4468
    %v4470 = vpop.f32.mrf.mxu0
    %4471 = vmatprep.mubr.f32.mxu0 0.0
    %4472 = vmatmul.mubr.f32.gmra.mxu0 %v4357
    %v4473 = vpop.f32.mrf.mxu0
    %v4474 = vadd.f32 0.0, %v4473
    %v4475 = vpop.f32.mrf.mxu0
    %4476 = vmatprep.mubr.f32.mxu0 0.0
    %4477 = vmatmul.mubr.f32.gmra.mxu0 %v4359
    %v4478 = vpop.f32.mrf.mxu0
    %v4479 = vadd.f32 0.0, %v4478
    %v4480 = vpop.f32.mrf.mxu0
    %4481 = vdwg.mxu0
    %v4482 = vmul.f32 %v4444, 0.35355338
    %v4483 = vmul.f32 %v4449, 0.35355338
    %v4484 = vmul.f32 %v4454, 0.35355338
    %v4485 = vmul.f32 %v4459, 0.35355338
    %v4486 = vmul.f32 %v4464, 0.35355338
    %v4487 = vmul.f32 %v4469, 0.35355338
    %v4488 = vmul.f32 %v4474, 0.35355338
    %v4489 = vmul.f32 %v4479, 0.35355338
    %v4490 = vsel %vm922, %v4482, -inf
    %4491 = vmax.xlane.f32.xlu0 %v4490
    %v4492 = vpop.xlane.xlu0 %4491
    %v4493 = vsel %vm922, %v4483, -inf
    %4494 = vmax.xlane.f32.xlu0 %v4493
    %v4495 = vpop.xlane.xlu0 %4494
    %v4496 = vsel %vm922, %v4484, -inf
    %4497 = vmax.xlane.f32.xlu0 %v4496
    %v4498 = vpop.xlane.xlu0 %4497
    %v4499 = vsel %vm922, %v4485, -inf
    %4500 = vmax.xlane.f32.xlu0 %v4499
    %v4501 = vpop.xlane.xlu0 %4500
    %v4502 = vsel %vm922, %v4486, -inf
    %4503 = vmax.xlane.f32.xlu0 %v4502
    %v4504 = vpop.xlane.xlu0 %4503
    %v4505 = vsel %vm922, %v4487, -inf
    %4506 = vmax.xlane.f32.xlu0 %v4505
    %v4507 = vpop.xlane.xlu0 %4506
    %v4508 = vsel %vm922, %v4488, -inf
    %4509 = vmax.xlane.f32.xlu0 %v4508
    %v4510 = vpop.xlane.xlu0 %4509
    %v4511 = vsel %vm922, %v4489, -inf
    %4512 = vmax.xlane.f32.xlu0 %v4511
    %v4513 = vpop.xlane.xlu0 %4512
    %v4514 = vsub.f32 %v4482, %v4492
    %v4515 = vsub.f32 %v4483, %v4495
    %v4516 = vsub.f32 %v4484, %v4498
    %v4517 = vsub.f32 %v4485, %v4501
    %v4518 = vsub.f32 %v4486, %v4504
    %v4519 = vsub.f32 %v4487, %v4507
    %v4520 = vsub.f32 %v4488, %v4510
    %v4521 = vsub.f32 %v4489, %v4513
    %v4522 = vmul.f32 %v4514, 1.442695
    %v4523 = vpow.pop %v4522
    %v4524 = vmul.f32 %v4515, 1.442695
    %v4525 = vpow.pop %v4524
    %v4526 = vmul.f32 %v4516, 1.442695
    %v4527 = vpow.pop %v4526
    %v4528 = vmul.f32 %v4517, 1.442695
    %v4529 = vpow.pop %v4528
    %v4530 = vmul.f32 %v4518, 1.442695
    %v4531 = vpow.pop %v4530
    %v4532 = vmul.f32 %v4519, 1.442695
    %v4533 = vpow.pop %v4532
    %v4534 = vmul.f32 %v4520, 1.442695
    %v4535 = vpow.pop %v4534
    %v4536 = vmul.f32 %v4521, 1.442695
    %v4537 = vpow.pop %v4536
    %v4538 = vsel %vm922, %v4523, 0.0
    %4539 = vadd.xlane.f32.xlu0 %v4538
    %v4540 = vpop.xlane.xlu0 %4539
    %v4541 = vsel %vm922, %v4525, 0.0
    %4542 = vadd.xlane.f32.xlu0 %v4541
    %v4543 = vpop.xlane.xlu0 %4542
    %v4544 = vsel %vm922, %v4527, 0.0
    %4545 = vadd.xlane.f32.xlu0 %v4544
    %v4546 = vpop.xlane.xlu0 %4545
    %v4547 = vsel %vm922, %v4529, 0.0
    %4548 = vadd.xlane.f32.xlu0 %v4547
    %v4549 = vpop.xlane.xlu0 %4548
    %v4550 = vsel %vm922, %v4531, 0.0
    %4551 = vadd.xlane.f32.xlu0 %v4550
    %v4552 = vpop.xlane.xlu0 %4551
    %v4553 = vsel %vm922, %v4533, 0.0
    %4554 = vadd.xlane.f32.xlu0 %v4553
    %v4555 = vpop.xlane.xlu0 %4554
    %v4556 = vsel %vm922, %v4535, 0.0
    %4557 = vadd.xlane.f32.xlu0 %v4556
    %v4558 = vpop.xlane.xlu0 %4557
    %v4559 = vsel %vm922, %v4537, 0.0
    %4560 = vadd.xlane.f32.xlu0 %v4559
    %v4561 = vpop.xlane.xlu0 %4560
    %v4562 = vrcp.pop %v4540
    %v4563 = vrcp.pop %v4543
    %v4564 = vrcp.pop %v4546
    %v4565 = vrcp.pop %v4549
    %v4566 = vrcp.pop %v4552
    %v4567 = vrcp.pop %v4555
    %v4568 = vrcp.pop %v4558
    %v4569 = vrcp.pop %v4561
    %v4570 = vmul.f32 %v4523, %v4562
    %v4571 = vmul.f32 %v4525, %v4563
    %v4572 = vmul.f32 %v4527, %v4564
    %v4573 = vmul.f32 %v4529, %v4565
    %v4574 = vmul.f32 %v4531, %v4566
    %v4575 = vmul.f32 %v4533, %v4567
    %v4576 = vmul.f32 %v4535, %v4568
    %v4577 = vmul.f32 %v4537, %v4569
    %4578 = vrot.lane.b32.xlu0 %v2941, 40
    %v4579 = vpop.permute.xlu0 %4578
    %4580 = vrot.lane.b32.xlu0 %v2946, 40
    %v4581 = vpop.permute.xlu0 %4580
    %4582 = vrot.lane.b32.xlu0 %v2951, 40
    %v4583 = vpop.permute.xlu0 %4582
    %4584 = vrot.lane.b32.xlu0 %v2956, 40
    %v4585 = vpop.permute.xlu0 %4584
    %4586 = vrot.lane.b32.xlu0 %v2961, 40
    %v4587 = vpop.permute.xlu0 %4586
    %4588 = vrot.lane.b32.xlu0 %v2966, 40
    %v4589 = vpop.permute.xlu0 %4588
    %4590 = vrot.lane.b32.xlu0 %v2971, 40
    %v4591 = vpop.permute.xlu0 %4590
    %4592 = vrot.lane.b32.xlu0 %v2976, 40
    %v4593 = vpop.permute.xlu0 %4592
    %v4603 = vsel %vm922, %v4570, 0
    %v4606 = vsel %vm922, %v4571, 0
    %v4609 = vsel %vm922, %v4572, 0
    %v4612 = vsel %vm922, %v4573, 0
    %v4615 = vsel %vm922, %v4574, 0
    %v4618 = vsel %vm922, %v4575, 0
    %v4621 = vsel %vm922, %v4576, 0
    %v4624 = vsel %vm922, %v4577, 0
    %4626 = vmatprep.subr.mxu0 0.0
    %4627 = vmatpush1.msra.mxu0 0.0
    %4628 = vmatprep.subr.mxu0 0.0
    %4629 = vmatpush1.msra.mxu0 0.0
    %4630 = vmatprep.subr.mxu0 0.0
    %4631 = vmatpush1.msra.mxu0 0.0
    %4632 = vmatprep.subr.mxu0 0.0
    %4633 = vmatpush1.msra.mxu0 0.0
    %4634 = vmatprep.subr.mxu0 0.0
    %4635 = vmatpush1.msra.mxu0 0.0
    %4636 = vmatprep.subr.mxu0 0.0
    %4637 = vmatpush1.msra.mxu0 0.0
    %4638 = vmatprep.subr.mxu0 0.0
    %4639 = vmatpush1.msra.mxu0 0.0
    %4640 = vmatprep.subr.mxu0 0.0
    %4641 = vmatpush1.msra.mxu0 0.0
    %4642 = vmatprep.subr.mxu0 0.0
    %4643 = vmatpush1.msra.mxu0 %v4593
    %4644 = vmatprep.subr.mxu0 0.0
    %4645 = vmatpush1.msra.mxu0 %v4591
    %4646 = vmatprep.subr.mxu0 0.0
    %4647 = vmatpush1.msra.mxu0 %v4589
    %4648 = vmatprep.subr.mxu0 0.0
    %4649 = vmatpush1.msra.mxu0 %v4587
    %4650 = vmatprep.subr.mxu0 0.0
    %4651 = vmatpush1.msra.mxu0 %v4585
    %4652 = vmatprep.subr.mxu0 0.0
    %4653 = vmatpush1.msra.mxu0 %v4583
    %4654 = vmatprep.subr.mxu0 0.0
    %4655 = vmatpush1.msra.mxu0 %v4581
    %4656 = vmatprep.subr.mxu0 0.0
    %4657 = vmatpush1.msra.mxu0 %v4579
    %4658 = vmatprep.subr.mxu0 0.0
    %4659 = vmatpush2.msra.mxu0 0.0
    %4660 = vmatprep.subr.mxu0 0.0
    %4661 = vmatpush2.msra.mxu0 0.0
    %4662 = vmatprep.subr.mxu0 0.0
    %4663 = vmatpush2.msra.mxu0 0.0
    %4664 = vmatprep.subr.mxu0 0.0
    %4665 = vmatpush2.msra.mxu0 0.0
    %4666 = vmatprep.subr.mxu0 0.0
    %4667 = vmatpush2.msra.mxu0 0.0
    %4668 = vmatprep.subr.mxu0 0.0
    %4669 = vmatpush2.msra.mxu0 0.0
    %4670 = vmatprep.subr.mxu0 0.0
    %4671 = vmatpush2.msra.mxu0 0.0
    %4672 = vmatprep.subr.mxu0 0.0
    %4673 = vmatpush2.msra.mxu0 0.0
    %4674 = vmatprep.subr.mxu0 0.0
    %4675 = vmatpush2.msra.mxu0 0.0
    %4676 = vmatprep.subr.mxu0 0.0
    %4677 = vmatpush2.msra.mxu0 0.0
    %4678 = vmatprep.subr.mxu0 0.0
    %4679 = vmatpush2.msra.mxu0 0.0
    %4680 = vmatprep.subr.mxu0 0.0
    %4681 = vmatpush2.msra.mxu0 0.0
    %4682 = vmatprep.subr.mxu0 0.0
    %4683 = vmatpush2.msra.mxu0 0.0
    %4684 = vmatprep.subr.mxu0 0.0
    %4685 = vmatpush2.msra.mxu0 0.0
    %4686 = vmatprep.subr.mxu0 0.0
    %4687 = vmatpush2.msra.mxu0 0.0
    %4688 = vmatprep.subr.mxu0 0.0
    %4689 = vmatpush2.msra.mxu0 0.0
    %4690 = vmatprep.mubr.f32.mxu0 0.0
    %4691 = vmatmul.mubr.f32.gmra.mxu0 %v4603
    %v4692 = vpop.f32.mrf.mxu0
    %v4693 = vadd.f32 0.0, %v4692
    %v4694 = vpop.f32.mrf.mxu0
    %4695 = vmatprep.mubr.f32.mxu0 0.0
    %4696 = vmatmul.mubr.f32.gmra.mxu0 %v4606
    %v4697 = vpop.f32.mrf.mxu0
    %v4698 = vadd.f32 0.0, %v4697
    %v4699 = vpop.f32.mrf.mxu0
    %4700 = vmatprep.mubr.f32.mxu0 0.0
    %4701 = vmatmul.mubr.f32.gmra.mxu0 %v4609
    %v4702 = vpop.f32.mrf.mxu0
    %v4703 = vadd.f32 0.0, %v4702
    %v4704 = vpop.f32.mrf.mxu0
    %4705 = vmatprep.mubr.f32.mxu0 0.0
    %4706 = vmatmul.mubr.f32.gmra.mxu0 %v4612
    %v4707 = vpop.f32.mrf.mxu0
    %v4708 = vadd.f32 0.0, %v4707
    %v4709 = vpop.f32.mrf.mxu0
    %4710 = vmatprep.mubr.f32.mxu0 0.0
    %4711 = vmatmul.mubr.f32.gmra.mxu0 %v4615
    %v4712 = vpop.f32.mrf.mxu0
    %v4713 = vadd.f32 0.0, %v4712
    %v4714 = vpop.f32.mrf.mxu0
    %4715 = vmatprep.mubr.f32.mxu0 0.0
    %4716 = vmatmul.mubr.f32.gmra.mxu0 %v4618
    %v4717 = vpop.f32.mrf.mxu0
    %v4718 = vadd.f32 0.0, %v4717
    %v4719 = vpop.f32.mrf.mxu0
    %4720 = vmatprep.mubr.f32.mxu0 0.0
    %4721 = vmatmul.mubr.f32.gmra.mxu0 %v4621
    %v4722 = vpop.f32.mrf.mxu0
    %v4723 = vadd.f32 0.0, %v4722
    %v4724 = vpop.f32.mrf.mxu0
    %4725 = vmatprep.mubr.f32.mxu0 0.0
    %4726 = vmatmul.mubr.f32.gmra.mxu0 %v4624
    %v4727 = vpop.f32.mrf.mxu0
    %v4728 = vadd.f32 0.0, %v4727
    %v4729 = vpop.f32.mrf.mxu0
    %4730 = vdwg.mxu0
    %4739 = vrot.lane.b32.xlu0 %v4693, 24
    %v4740 = vpop.permute.xlu0 %4739
    %4741 = vrot.lane.b32.xlu0 %v4698, 24
    %v4742 = vpop.permute.xlu0 %4741
    %4743 = vrot.lane.b32.xlu0 %v4703, 24
    %v4744 = vpop.permute.xlu0 %4743
    %4745 = vrot.lane.b32.xlu0 %v4708, 24
    %v4746 = vpop.permute.xlu0 %4745
    %4747 = vrot.lane.b32.xlu0 %v4713, 24
    %v4748 = vpop.permute.xlu0 %4747
    %4749 = vrot.lane.b32.xlu0 %v4718, 24
    %v4750 = vpop.permute.xlu0 %4749
    %4751 = vrot.lane.b32.xlu0 %v4723, 24
    %v4752 = vpop.permute.xlu0 %4751
    %4753 = vrot.lane.b32.xlu0 %v4728, 24
    %v4754 = vpop.permute.xlu0 %4753
    %4763 = vst.msk [vmem:[#allocation2] sm:$0xff] %vm2540, %v4740
    %4764 = vst.msk [vmem:[#allocation2 + $0x8] sm:$0xff] %vm2540, %v4742
    %4765 = vst.msk [vmem:[#allocation2 + $0x10] sm:$0xff] %vm2540, %v4744
    %4766 = vst.msk [vmem:[#allocation2 + $0x18] sm:$0xff] %vm2540, %v4746
    %4767 = vst.msk [vmem:[#allocation2 + $0x20] sm:$0xff] %vm2540, %v4748
    %4768 = vst.msk [vmem:[#allocation2 + $0x28] sm:$0xff] %vm2540, %v4750
    %4769 = vst.msk [vmem:[#allocation2 + $0x30] sm:$0xff] %vm2540, %v4752
    %4770 = vst.msk [vmem:[#allocation2 + $0x38] sm:$0xff] %vm2540, %v4754
    %v4771 = vld [vmem:[#allocation2] sm:$0xff]
    %v4772 = vld [vmem:[#allocation2 + $0x8] sm:$0xff]
    %v4773 = vld [vmem:[#allocation2 + $0x10] sm:$0xff]
    %v4774 = vld [vmem:[#allocation2 + $0x18] sm:$0xff]
    %v4775 = vld [vmem:[#allocation2 + $0x20] sm:$0xff]
    %v4776 = vld [vmem:[#allocation2 + $0x28] sm:$0xff]
    %v4777 = vld [vmem:[#allocation2 + $0x30] sm:$0xff]
    %v4778 = vld [vmem:[#allocation2 + $0x38] sm:$0xff]
    %v4779 = vld [vmem:[#allocation15] sm:$0xff]
    %v4780 = vld [vmem:[#allocation15 + $0x8] sm:$0xff]
    %v4781 = vld [vmem:[#allocation15 + $0x10] sm:$0xff]
    %v4782 = vld [vmem:[#allocation15 + $0x18] sm:$0xff]
    %v4783 = vld [vmem:[%s16] sm:$0x1]
    %v4785 = vlaneseq
    %v4786 = vshrl.u32 %v4785, 7
    %v4787 = vsub.s32 0, %v4786
    %v4788 = vrot.slane %v4783, %v4787
    %v4791 = vsel %vm339, %v4771, 0
    %v4794 = vsel %vm339, %v4772, 0
    %v4797 = vsel %vm339, %v4773, 0
    %v4800 = vsel %vm339, %v4774, 0
    %v4803 = vsel %vm339, %v4775, 0
    %v4806 = vsel %vm339, %v4776, 0
    %v4809 = vsel %vm339, %v4777, 0
    %v4812 = vsel %vm339, %v4778, 0
    %4814 = vmatprep.subr.mxu0 0.0
    %4815 = vmatpush1.msra.mxu0 0.0
    %4816 = vmatprep.subr.mxu0 0.0
    %4817 = vmatpush1.msra.mxu0 0.0
    %4818 = vmatprep.subr.mxu0 0.0
    %4819 = vmatpush1.msra.mxu0 0.0
    %4820 = vmatprep.subr.mxu0 0.0
    %4821 = vmatpush1.msra.mxu0 0.0
    %4822 = vmatprep.subr.mxu0 0.0
    %4823 = vmatpush1.msra.mxu0 0.0
    %4824 = vmatprep.subr.mxu0 0.0
    %4825 = vmatpush1.msra.mxu0 0.0
    %4826 = vmatprep.subr.mxu0 0.0
    %4827 = vmatpush1.msra.mxu0 0.0
    %4828 = vmatprep.subr.mxu0 0.0
    %4829 = vmatpush1.msra.mxu0 0.0
    %4830 = vmatprep.subr.mxu0 0.0
    %4831 = vmatpush1.msra.mxu0 0.0
    %4832 = vmatprep.subr.mxu0 0.0
    %4833 = vmatpush1.msra.mxu0 0.0
    %4834 = vmatprep.subr.mxu0 0.0
    %4835 = vmatpush1.msra.mxu0 0.0
    %4836 = vmatprep.subr.mxu0 0.0
    %4837 = vmatpush1.msra.mxu0 0.0
    %4838 = vmatprep.subr.mxu0 0.0
    %4839 = vmatpush1.msra.mxu0 %v4782
    %4840 = vmatprep.subr.mxu0 0.0
    %4841 = vmatpush1.msra.mxu0 %v4781
    %4842 = vmatprep.subr.mxu0 0.0
    %4843 = vmatpush1.msra.mxu0 %v4780
    %4844 = vmatprep.subr.mxu0 0.0
    %4845 = vmatpush1.msra.mxu0 %v4779
    %4846 = vmatprep.subr.mxu0 0.0
    %4847 = vmatpush2.msra.mxu0 0.0
    %4848 = vmatprep.subr.mxu0 0.0
    %4849 = vmatpush2.msra.mxu0 0.0
    %4850 = vmatprep.subr.mxu0 0.0
    %4851 = vmatpush2.msra.mxu0 0.0
    %4852 = vmatprep.subr.mxu0 0.0
    %4853 = vmatpush2.msra.mxu0 0.0
    %4854 = vmatprep.subr.mxu0 0.0
    %4855 = vmatpush2.msra.mxu0 0.0
    %4856 = vmatprep.subr.mxu0 0.0
    %4857 = vmatpush2.msra.mxu0 0.0
    %4858 = vmatprep.subr.mxu0 0.0
    %4859 = vmatpush2.msra.mxu0 0.0
    %4860 = vmatprep.subr.mxu0 0.0
    %4861 = vmatpush2.msra.mxu0 0.0
    %4862 = vmatprep.subr.mxu0 0.0
    %4863 = vmatpush2.msra.mxu0 0.0
    %4864 = vmatprep.subr.mxu0 0.0
    %4865 = vmatpush2.msra.mxu0 0.0
    %4866 = vmatprep.subr.mxu0 0.0
    %4867 = vmatpush2.msra.mxu0 0.0
    %4868 = vmatprep.subr.mxu0 0.0
    %4869 = vmatpush2.msra.mxu0 0.0
    %4870 = vmatprep.subr.mxu0 0.0
    %4871 = vmatpush2.msra.mxu0 0.0
    %4872 = vmatprep.subr.mxu0 0.0
    %4873 = vmatpush2.msra.mxu0 0.0
    %4874 = vmatprep.subr.mxu0 0.0
    %4875 = vmatpush2.msra.mxu0 0.0
    %4876 = vmatprep.subr.mxu0 0.0
    %4877 = vmatpush2.msra.mxu0 0.0
    %4878 = vmatprep.mubr.f32.mxu0 0.0
    %4879 = vmatmul.mubr.f32.gmra.mxu0 %v4791
    %v4880 = vpop.f32.mrf.mxu0
    %v4881 = vadd.f32 %v4788, %v4880
    %v4882 = vpop.f32.mrf.mxu0
    %4883 = vmatprep.mubr.f32.mxu0 0.0
    %4884 = vmatmul.mubr.f32.gmra.mxu0 %v4794
    %v4885 = vpop.f32.mrf.mxu0
    %v4886 = vadd.f32 %v4788, %v4885
    %v4887 = vpop.f32.mrf.mxu0
    %4888 = vmatprep.mubr.f32.mxu0 0.0
    %4889 = vmatmul.mubr.f32.gmra.mxu0 %v4797
    %v4890 = vpop.f32.mrf.mxu0
    %v4891 = vadd.f32 %v4788, %v4890
    %v4892 = vpop.f32.mrf.mxu0
    %4893 = vmatprep.mubr.f32.mxu0 0.0
    %4894 = vmatmul.mubr.f32.gmra.mxu0 %v4800
    %v4895 = vpop.f32.mrf.mxu0
    %v4896 = vadd.f32 %v4788, %v4895
    %v4897 = vpop.f32.mrf.mxu0
    %4898 = vmatprep.mubr.f32.mxu0 0.0
    %4899 = vmatmul.mubr.f32.gmra.mxu0 %v4803
    %v4900 = vpop.f32.mrf.mxu0
    %v4901 = vadd.f32 %v4788, %v4900
    %v4902 = vpop.f32.mrf.mxu0
    %4903 = vmatprep.mubr.f32.mxu0 0.0
    %4904 = vmatmul.mubr.f32.gmra.mxu0 %v4806
    %v4905 = vpop.f32.mrf.mxu0
    %v4906 = vadd.f32 %v4788, %v4905
    %v4907 = vpop.f32.mrf.mxu0
    %4908 = vmatprep.mubr.f32.mxu0 0.0
    %4909 = vmatmul.mubr.f32.gmra.mxu0 %v4809
    %v4910 = vpop.f32.mrf.mxu0
    %v4911 = vadd.f32 %v4788, %v4910
    %v4912 = vpop.f32.mrf.mxu0
    %4913 = vmatprep.mubr.f32.mxu0 0.0
    %4914 = vmatmul.mubr.f32.gmra.mxu0 %v4812
    %v4915 = vpop.f32.mrf.mxu0
    %v4916 = vadd.f32 %v4788, %v4915
    %v4917 = vpop.f32.mrf.mxu0
    %4918 = vdwg.mxu0
    %v4919 = vadd.f32 %v4881, %v2831
    %v4920 = vadd.f32 %v4886, %v2832
    %v4921 = vadd.f32 %v4891, %v2833
    %v4922 = vadd.f32 %v4896, %v2834
    %v4923 = vadd.f32 %v4901, %v2835
    %v4924 = vadd.f32 %v4906, %v2836
    %v4925 = vadd.f32 %v4911, %v2837
    %v4926 = vadd.f32 %v4916, %v2838
    %v4927 = vld [vmem:[%s17] sm:$0x1]
    %v4928 = vld [vmem:[%s18] sm:$0x1]
    %v4929 = vsel %vm339, %v4919, 0.0
    %4930 = vadd.xlane.f32.xlu0 %v4929
    %v4931 = vpop.xlane.xlu0 %4930
    %v4932 = vsel %vm339, %v4920, 0.0
    %4933 = vadd.xlane.f32.xlu0 %v4932
    %v4934 = vpop.xlane.xlu0 %4933
    %v4935 = vsel %vm339, %v4921, 0.0
    %4936 = vadd.xlane.f32.xlu0 %v4935
    %v4937 = vpop.xlane.xlu0 %4936
    %v4938 = vsel %vm339, %v4922, 0.0
    %4939 = vadd.xlane.f32.xlu0 %v4938
    %v4940 = vpop.xlane.xlu0 %4939
    %v4941 = vsel %vm339, %v4923, 0.0
    %4942 = vadd.xlane.f32.xlu0 %v4941
    %v4943 = vpop.xlane.xlu0 %4942
    %v4944 = vsel %vm339, %v4924, 0.0
    %4945 = vadd.xlane.f32.xlu0 %v4944
    %v4946 = vpop.xlane.xlu0 %4945
    %v4947 = vsel %vm339, %v4925, 0.0
    %4948 = vadd.xlane.f32.xlu0 %v4947
    %v4949 = vpop.xlane.xlu0 %4948
    %v4950 = vsel %vm339, %v4926, 0.0
    %4951 = vadd.xlane.f32.xlu0 %v4950
    %v4952 = vpop.xlane.xlu0 %4951
    %v4953 = vmul.f32 %v4931, %v495
    %v4954 = vmul.f32 %v4934, %v495
    %v4955 = vmul.f32 %v4937, %v495
    %v4956 = vmul.f32 %v4940, %v495
    %v4957 = vmul.f32 %v4943, %v495
    %v4958 = vmul.f32 %v4946, %v495
    %v4959 = vmul.f32 %v4949, %v495
    %v4960 = vmul.f32 %v4952, %v495
    %v4961 = vsub.f32 %v4919, %v4953
    %v4962 = vsub.f32 %v4920, %v4954
    %v4963 = vsub.f32 %v4921, %v4955
    %v4964 = vsub.f32 %v4922, %v4956
    %v4965 = vsub.f32 %v4923, %v4957
    %v4966 = vsub.f32 %v4924, %v4958
    %v4967 = vsub.f32 %v4925, %v4959
    %v4968 = vsub.f32 %v4926, %v4960
    %v4969 = vmul.f32 %v4961, %v4961
    %v4970 = vmul.f32 %v4962, %v4962
    %v4971 = vmul.f32 %v4963, %v4963
    %v4972 = vmul.f32 %v4964, %v4964
    %v4973 = vmul.f32 %v4965, %v4965
    %v4974 = vmul.f32 %v4966, %v4966
    %v4975 = vmul.f32 %v4967, %v4967
    %v4976 = vmul.f32 %v4968, %v4968
    %v4977 = vsel %vm339, %v4969, 0.0
    %4978 = vadd.xlane.f32.xlu0 %v4977
    %v4979 = vpop.xlane.xlu0 %4978
    %v4980 = vsel %vm339, %v4970, 0.0
    %4981 = vadd.xlane.f32.xlu0 %v4980
    %v4982 = vpop.xlane.xlu0 %4981
    %v4983 = vsel %vm339, %v4971, 0.0
    %4984 = vadd.xlane.f32.xlu0 %v4983
    %v4985 = vpop.xlane.xlu0 %4984
    %v4986 = vsel %vm339, %v4972, 0.0
    %4987 = vadd.xlane.f32.xlu0 %v4986
    %v4988 = vpop.xlane.xlu0 %4987
    %v4989 = vsel %vm339, %v4973, 0.0
    %4990 = vadd.xlane.f32.xlu0 %v4989
    %v4991 = vpop.xlane.xlu0 %4990
    %v4992 = vsel %vm339, %v4974, 0.0
    %4993 = vadd.xlane.f32.xlu0 %v4992
    %v4994 = vpop.xlane.xlu0 %4993
    %v4995 = vsel %vm339, %v4975, 0.0
    %4996 = vadd.xlane.f32.xlu0 %v4995
    %v4997 = vpop.xlane.xlu0 %4996
    %v4998 = vsel %vm339, %v4976, 0.0
    %4999 = vadd.xlane.f32.xlu0 %v4998
    %v5000 = vpop.xlane.xlu0 %4999
    %v5001 = vmul.f32 %v4979, %v495
    %v5002 = vmul.f32 %v4982, %v495
    %v5003 = vmul.f32 %v4985, %v495
    %v5004 = vmul.f32 %v4988, %v495
    %v5005 = vmul.f32 %v4991, %v495
    %v5006 = vmul.f32 %v4994, %v495
    %v5007 = vmul.f32 %v4997, %v495
    %v5008 = vmul.f32 %v5000, %v495
    %v5009 = vadd.f32 %v5001, 1e-05
    %v5010 = vadd.f32 %v5002, 1e-05
    %v5011 = vadd.f32 %v5003, 1e-05
    %v5012 = vadd.f32 %v5004, 1e-05
    %v5013 = vadd.f32 %v5005, 1e-05
    %v5014 = vadd.f32 %v5006, 1e-05
    %v5015 = vadd.f32 %v5007, 1e-05
    %v5016 = vadd.f32 %v5008, 1e-05
    %v5017 = vrsqrt.pop %v5009
    %v5018 = vrsqrt.pop %v5010
    %v5019 = vrsqrt.pop %v5011
    %v5020 = vrsqrt.pop %v5012
    %v5021 = vrsqrt.pop %v5013
    %v5022 = vrsqrt.pop %v5014
    %v5023 = vrsqrt.pop %v5015
    %v5024 = vrsqrt.pop %v5016
    %v5025 = vmul.f32 %v4961, %v5017
    %v5026 = vmul.f32 %v4962, %v5018
    %v5027 = vmul.f32 %v4963, %v5019
    %v5028 = vmul.f32 %v4964, %v5020
    %v5029 = vmul.f32 %v4965, %v5021
    %v5030 = vmul.f32 %v4966, %v5022
    %v5031 = vmul.f32 %v4967, %v5023
    %v5032 = vmul.f32 %v4968, %v5024
    %v5034 = vlaneseq
    %v5035 = vshrl.u32 %v5034, 7
    %v5036 = vsub.s32 0, %v5035
    %v5037 = vrot.slane %v4927, %v5036
    %v5039 = vmul.f32 %v5025, %v5037
    %v5040 = vmul.f32 %v5026, %v5037
    %v5041 = vmul.f32 %v5027, %v5037
    %v5042 = vmul.f32 %v5028, %v5037
    %v5043 = vmul.f32 %v5029, %v5037
    %v5044 = vmul.f32 %v5030, %v5037
    %v5045 = vmul.f32 %v5031, %v5037
    %v5046 = vmul.f32 %v5032, %v5037
    %v5048 = vlaneseq
    %v5049 = vshrl.u32 %v5048, 7
    %v5050 = vsub.s32 0, %v5049
    %v5051 = vrot.slane %v4928, %v5050
    %v5053 = vadd.f32 %v5039, %v5051
    %v5054 = vadd.f32 %v5040, %v5051
    %v5055 = vadd.f32 %v5041, %v5051
    %v5056 = vadd.f32 %v5042, %v5051
    %v5057 = vadd.f32 %v5043, %v5051
    %v5058 = vadd.f32 %v5044, %v5051
    %v5059 = vadd.f32 %v5045, %v5051
    %v5060 = vadd.f32 %v5046, %v5051
    %v5061 = vmul.f32 %v5053, %v5053
    %v5062 = vmul.f32 %v5054, %v5054
    %v5063 = vmul.f32 %v5055, %v5055
    %v5064 = vmul.f32 %v5056, %v5056
    %v5065 = vmul.f32 %v5057, %v5057
    %v5066 = vmul.f32 %v5058, %v5058
    %v5067 = vmul.f32 %v5059, %v5059
    %v5068 = vmul.f32 %v5060, %v5060
    %v5069 = vsel %vm339, %v5061, 0.0
    %5070 = vadd.xlane.f32.xlu0 %v5069
    %v5071 = vpop.xlane.xlu0 %5070
    %v5072 = vsel %vm339, %v5062, 0.0
    %5073 = vadd.xlane.f32.xlu0 %v5072
    %v5074 = vpop.xlane.xlu0 %5073
    %v5075 = vsel %vm339, %v5063, 0.0
    %5076 = vadd.xlane.f32.xlu0 %v5075
    %v5077 = vpop.xlane.xlu0 %5076
    %v5078 = vsel %vm339, %v5064, 0.0
    %5079 = vadd.xlane.f32.xlu0 %v5078
    %v5080 = vpop.xlane.xlu0 %5079
    %v5081 = vsel %vm339, %v5065, 0.0
    %5082 = vadd.xlane.f32.xlu0 %v5081
    %v5083 = vpop.xlane.xlu0 %5082
    %v5084 = vsel %vm339, %v5066, 0.0
    %5085 = vadd.xlane.f32.xlu0 %v5084
    %v5086 = vpop.xlane.xlu0 %5085
    %v5087 = vsel %vm339, %v5067, 0.0
    %5088 = vadd.xlane.f32.xlu0 %v5087
    %v5089 = vpop.xlane.xlu0 %5088
    %v5090 = vsel %vm339, %v5068, 0.0
    %5091 = vadd.xlane.f32.xlu0 %v5090
    %v5092 = vpop.xlane.xlu0 %5091
    %v5093 = vmax.f32 %v5071, 1e-24
    %v5094 = vmax.f32 %v5074, 1e-24
    %v5095 = vmax.f32 %v5077, 1e-24
    %v5096 = vmax.f32 %v5080, 1e-24
    %v5097 = vmax.f32 %v5083, 1e-24
    %v5098 = vmax.f32 %v5086, 1e-24
    %v5099 = vmax.f32 %v5089, 1e-24
    %v5100 = vmax.f32 %v5092, 1e-24
    %v5101 = vrsqrt.pop %v5093
    %v5102 = vrsqrt.pop %v5094
    %v5103 = vrsqrt.pop %v5095
    %v5104 = vrsqrt.pop %v5096
    %v5105 = vrsqrt.pop %v5097
    %v5106 = vrsqrt.pop %v5098
    %v5107 = vrsqrt.pop %v5099
    %v5108 = vrsqrt.pop %v5100
    %v5109 = vmul.f32 %v5053, %v5101
    %v5110 = vmul.f32 %v5054, %v5102
    %v5111 = vmul.f32 %v5055, %v5103
    %v5112 = vmul.f32 %v5056, %v5104
    %v5113 = vmul.f32 %v5057, %v5105
    %v5114 = vmul.f32 %v5058, %v5106
    %v5115 = vmul.f32 %v5059, %v5107
    %v5116 = vmul.f32 %v5060, %v5108
    %v5117 = vld [vmem:[#allocation17] sm:$0xff]
    %v5118 = vld [vmem:[#allocation17 + $0x8] sm:$0xff]
    %v5119 = vld [vmem:[#allocation17 + $0x10] sm:$0xff]
    %v5120 = vld [vmem:[#allocation17 + $0x18] sm:$0xff]
    %v5121 = vld [vmem:[%s20] sm:$0x1]
    %v5123 = vlaneseq
    %v5124 = vshrl.u32 %v5123, 7
    %v5125 = vsub.s32 0, %v5124
    %v5126 = vrot.slane %v5121, %v5125
    %v5129 = vsel %vm339, %v5109, 0
    %v5132 = vsel %vm339, %v5110, 0
    %v5135 = vsel %vm339, %v5111, 0
    %v5138 = vsel %vm339, %v5112, 0
    %v5141 = vsel %vm339, %v5113, 0
    %v5144 = vsel %vm339, %v5114, 0
    %v5147 = vsel %vm339, %v5115, 0
    %v5150 = vsel %vm339, %v5116, 0
    %5152 = vmatprep.subr.mxu0 0.0
    %5153 = vmatpush1.msra.mxu0 0.0
    %5154 = vmatprep.subr.mxu0 0.0
    %5155 = vmatpush1.msra.mxu0 0.0
    %5156 = vmatprep.subr.mxu0 0.0
    %5157 = vmatpush1.msra.mxu0 0.0
    %5158 = vmatprep.subr.mxu0 0.0
    %5159 = vmatpush1.msra.mxu0 0.0
    %5160 = vmatprep.subr.mxu0 0.0
    %5161 = vmatpush1.msra.mxu0 0.0
    %5162 = vmatprep.subr.mxu0 0.0
    %5163 = vmatpush1.msra.mxu0 0.0
    %5164 = vmatprep.subr.mxu0 0.0
    %5165 = vmatpush1.msra.mxu0 0.0
    %5166 = vmatprep.subr.mxu0 0.0
    %5167 = vmatpush1.msra.mxu0 0.0
    %5168 = vmatprep.subr.mxu0 0.0
    %5169 = vmatpush1.msra.mxu0 0.0
    %5170 = vmatprep.subr.mxu0 0.0
    %5171 = vmatpush1.msra.mxu0 0.0
    %5172 = vmatprep.subr.mxu0 0.0
    %5173 = vmatpush1.msra.mxu0 0.0
    %5174 = vmatprep.subr.mxu0 0.0
    %5175 = vmatpush1.msra.mxu0 0.0
    %5176 = vmatprep.subr.mxu0 0.0
    %5177 = vmatpush1.msra.mxu0 %v5120
    %5178 = vmatprep.subr.mxu0 0.0
    %5179 = vmatpush1.msra.mxu0 %v5119
    %5180 = vmatprep.subr.mxu0 0.0
    %5181 = vmatpush1.msra.mxu0 %v5118
    %5182 = vmatprep.subr.mxu0 0.0
    %5183 = vmatpush1.msra.mxu0 %v5117
    %5184 = vmatprep.subr.mxu0 0.0
    %5185 = vmatpush2.msra.mxu0 0.0
    %5186 = vmatprep.subr.mxu0 0.0
    %5187 = vmatpush2.msra.mxu0 0.0
    %5188 = vmatprep.subr.mxu0 0.0
    %5189 = vmatpush2.msra.mxu0 0.0
    %5190 = vmatprep.subr.mxu0 0.0
    %5191 = vmatpush2.msra.mxu0 0.0
    %5192 = vmatprep.subr.mxu0 0.0
    %5193 = vmatpush2.msra.mxu0 0.0
    %5194 = vmatprep.subr.mxu0 0.0
    %5195 = vmatpush2.msra.mxu0 0.0
    %5196 = vmatprep.subr.mxu0 0.0
    %5197 = vmatpush2.msra.mxu0 0.0
    %5198 = vmatprep.subr.mxu0 0.0
    %5199 = vmatpush2.msra.mxu0 0.0
    %5200 = vmatprep.subr.mxu0 0.0
    %5201 = vmatpush2.msra.mxu0 0.0
    %5202 = vmatprep.subr.mxu0 0.0
    %5203 = vmatpush2.msra.mxu0 0.0
    %5204 = vmatprep.subr.mxu0 0.0
    %5205 = vmatpush2.msra.mxu0 0.0
    %5206 = vmatprep.subr.mxu0 0.0
    %5207 = vmatpush2.msra.mxu0 0.0
    %5208 = vmatprep.subr.mxu0 0.0
    %5209 = vmatpush2.msra.mxu0 0.0
    %5210 = vmatprep.subr.mxu0 0.0
    %5211 = vmatpush2.msra.mxu0 0.0
    %5212 = vmatprep.subr.mxu0 0.0
    %5213 = vmatpush2.msra.mxu0 0.0
    %5214 = vmatprep.subr.mxu0 0.0
    %5215 = vmatpush2.msra.mxu0 0.0
    %5216 = vmatprep.mubr.f32.mxu0 0.0
    %5217 = vmatmul.mubr.f32.gmra.mxu0 %v5129
    %v5218 = vpop.f32.mrf.mxu0
    %v5219 = vadd.f32 %v5126, %v5218
    %v5220 = vpop.f32.mrf.mxu0
    %5221 = vmatprep.mubr.f32.mxu0 0.0
    %5222 = vmatmul.mubr.f32.gmra.mxu0 %v5132
    %v5223 = vpop.f32.mrf.mxu0
    %v5224 = vadd.f32 %v5126, %v5223
    %v5225 = vpop.f32.mrf.mxu0
    %5226 = vmatprep.mubr.f32.mxu0 0.0
    %5227 = vmatmul.mubr.f32.gmra.mxu0 %v5135
    %v5228 = vpop.f32.mrf.mxu0
    %v5229 = vadd.f32 %v5126, %v5228
    %v5230 = vpop.f32.mrf.mxu0
    %5231 = vmatprep.mubr.f32.mxu0 0.0
    %5232 = vmatmul.mubr.f32.gmra.mxu0 %v5138
    %v5233 = vpop.f32.mrf.mxu0
    %v5234 = vadd.f32 %v5126, %v5233
    %v5235 = vpop.f32.mrf.mxu0
    %5236 = vmatprep.mubr.f32.mxu0 0.0
    %5237 = vmatmul.mubr.f32.gmra.mxu0 %v5141
    %v5238 = vpop.f32.mrf.mxu0
    %v5239 = vadd.f32 %v5126, %v5238
    %v5240 = vpop.f32.mrf.mxu0
    %5241 = vmatprep.mubr.f32.mxu0 0.0
    %5242 = vmatmul.mubr.f32.gmra.mxu0 %v5144
    %v5243 = vpop.f32.mrf.mxu0
    %v5244 = vadd.f32 %v5126, %v5243
    %v5245 = vpop.f32.mrf.mxu0
    %5246 = vmatprep.mubr.f32.mxu0 0.0
    %5247 = vmatmul.mubr.f32.gmra.mxu0 %v5147
    %v5248 = vpop.f32.mrf.mxu0
    %v5249 = vadd.f32 %v5126, %v5248
    %v5250 = vpop.f32.mrf.mxu0
    %5251 = vmatprep.mubr.f32.mxu0 0.0
    %5252 = vmatmul.mubr.f32.gmra.mxu0 %v5150
    %v5253 = vpop.f32.mrf.mxu0
    %v5254 = vadd.f32 %v5126, %v5253
    %v5255 = vpop.f32.mrf.mxu0
    %5256 = vdwg.mxu0
    %5257 = vst [vmem:[#allocation18] sm:$0xff] %v5219
    %5258 = vst [vmem:[#allocation18 + $0x8] sm:$0xff] %v5224
    %5259 = vst [vmem:[#allocation18 + $0x10] sm:$0xff] %v5229
    %5260 = vst [vmem:[#allocation18 + $0x18] sm:$0xff] %v5234
    %5261 = vst [vmem:[#allocation18 + $0x20] sm:$0xff] %v5239
    %5262 = vst [vmem:[#allocation18 + $0x28] sm:$0xff] %v5244
    %5263 = vst [vmem:[#allocation18 + $0x30] sm:$0xff] %v5249
    %5264 = vst [vmem:[#allocation18 + $0x38] sm:$0xff] %v5254
    // Predicated region
    $region122: #{tpu_custom_call.1} parent=1 // pred_check
      _
    $region123: #{tpu_custom_call.1} parent=1 // pred_check_branch
      %5266 = sbr.rel (0) target = $region125
    $region124: #{tpu_custom_call.1} parent=1 // pred_region
      %s5268 = ssub.s32 1024, 1024
      %5269 = vsyncadd [#allocation5], %s5268
      %s5270 = sshll.u32 [#allocation18], 4
      %s5271 = int_to_ptr.vmem [resolvable:$true] %s5270
      %5276 = dma.vmem_to_hbm [thread:$0]  %s5271, 1024, %s21, [#allocation5], 128, 128, 8
    $region125: #{tpu_custom_call.1} parent=1 // pred_fallthru
      _
    // Predicated region
    $region126: #{tpu_custom_call.1} parent=1 // pred_check
      _
    $region127: #{tpu_custom_call.1} parent=1 // pred_check_branch
      %5278 = sbr.rel (0) target = $region129
    $region128: #{tpu_custom_call.1} parent=1 // pred_region
      %5279 = dma.done [#allocation5], 1024
    $region129: #{tpu_custom_call.1} parent=1 // pred_fallthru
      _
    %5280 = vsyncpa [#allocation4], 1
    %5281 = vsyncpa [#allocation7], 1
    %5282 = vsyncpa [#allocation10], 1
    %5283 = vsyncpa [#allocation13], 1
    %5284 = vsyncpa [#allocation16], 1
    %5285 = vsyncpa [#allocation5], 1

</llo_original>
